<compile_context>
chip_gen: v7x
topology: tpu7x:2x2x1
jax: 0.10.0
libtpu: 0.0.40
codegen_flags: <defaults>
</compile_context>

<pallas_src>
import jax
import jax.numpy as jnp
from jax.experimental import pallas as pl
from jax.experimental.pallas import tpu as pltpu

NEG_SLOPE = 0.01   # PyTorch LeakyReLU default
LN_EPS = 1e-5      # PyTorch LayerNorm default


def _layer_norm(x, gamma, beta):
    mean = jnp.mean(x, axis=-1, keepdims=True)
    var = jnp.mean((x - mean) ** 2, axis=-1, keepdims=True)
    return (x - mean) * jax.lax.rsqrt(var + LN_EPS) * gamma + beta


def _leaky_relu(x):
    return jnp.where(x > 0, x, NEG_SLOPE * x)


def _round_up(x, m):
    return (x + m - 1) // m * m


def gru_critic_kernel(xs_ref, xa_ref, h0_ref,
                      wihs_ref, wiha_ref, bih_ref,
                      whr_ref, whz_ref, whn_ref, bhn_ref,
                      w1_ref, b1_ref, g1_ref, be1_ref,
                      w2_ref, b2_ref, g2_ref, be2_ref,
                      w3_ref, b3_ref,
                      q_ref, hn_ref,
                      h_scr, h_all, gir_scr, giz_scr, gin_scr):
    t = pl.program_id(1)                      # time-block index (sequential axis)
    TT, BB, S = xs_ref.shape
    A = xa_ref.shape[-1]
    H = h_scr.shape[-1]
    H2 = w2_ref.shape[-1]
    M = TT * BB

    @pl.when(t == 0)
    def _():
        h_scr[...] = h0_ref[...].astype(jnp.float32)

    # ---- hoisted input projection for the whole time block (off the serial path)
    # bf16 operands -> single-pass MXU, f32 accumulation; b_hr/b_hz are already
    # folded into bih.
    xs = xs_ref[...].astype(jnp.bfloat16).reshape(M, S)
    xa = xa_ref[...].astype(jnp.bfloat16).reshape(M, A)
    gi = (jnp.dot(xs, wihs_ref[...], preferred_element_type=jnp.float32)
          + jnp.dot(xa, wiha_ref[...], preferred_element_type=jnp.float32)
          + bih_ref[...])                                        # (M, 3H)
    # Gate-separated, time-major scratch: the lane-axis split happens ONCE per
    # block here; the serial recurrence below only does whole-tile loads.
    gir_scr[...] = gi[:, 0:H].reshape(TT, BB, H)
    giz_scr[...] = gi[:, H:2 * H].reshape(TT, BB, H)
    gin_scr[...] = gi[:, 2 * H:3 * H].reshape(TT, BB, H)

    # Loop-invariant loads / broadcasts hoisted out of the recurrence.
    whr = whr_ref[...]
    whz = whz_ref[...]
    whn = whn_ref[...]
    bhn = jnp.broadcast_to(bhn_ref[...], (BB, H))

    def step(tt, h):
        # Three (BB,H)x(H,H) dots keep the r/z/n split off the lane axis
        # (no per-step XLU lane shuffles on the critical path).  f32 recurrent
        # matmul + f32 gate math (v5e has no bf16 VPU/EUP).
        ghr = jnp.dot(h, whr, preferred_element_type=jnp.float32)
        ghz = jnp.dot(h, whz, preferred_element_type=jnp.float32)
        ghn = jnp.dot(h, whn, preferred_element_type=jnp.float32) + bhn
        r = jax.nn.sigmoid(gir_scr[tt] + ghr)
        z = jax.nn.sigmoid(giz_scr[tt] + ghz)
        n = jnp.tanh(gin_scr[tt] + r * ghn)
        h = (1.0 - z) * n + z * h
        h_all[tt] = h
        return h

    h = jax.lax.fori_loop(0, TT, step, h_scr[...], unroll=True)
    h_scr[...] = h                             # carry across time blocks

    @pl.when(t == pl.num_programs(1) - 1)
    def _():
        hn_ref[...] = h.astype(hn_ref.dtype)

    # ---- batched MLP head over all TT*BB hidden states of the block ----
    hm = h_all[...].reshape(M, H).astype(jnp.bfloat16)
    y = jnp.dot(hm, w1_ref[...], preferred_element_type=jnp.float32) + b1_ref[...]
    y = _leaky_relu(_layer_norm(y, g1_ref[...], be1_ref[...]))
    y = jnp.dot(y.astype(jnp.bfloat16), w2_ref[...],
                preferred_element_type=jnp.float32) + b2_ref[...]
    y = _leaky_relu(_layer_norm(y, g2_ref[...], be2_ref[...]))
    # Final width-1 projection: VPU multiply + lane reduce (no N=1 MXU matmul).
    q = jnp.sum(y.reshape(TT, BB, H2) * w3_ref[...].reshape(1, 1, H2), axis=-1)
    q_ref[0, 0] = (q + b3_ref[...]).astype(q_ref.dtype)           # (TT, BB) slab


def _pick_time_block(T, BB, S, A, H, vmem_budget=12 * 2 ** 20):
    """Largest divisor of T <= 32, additionally capped by a per-block VMEM budget
    (double-buffered x inputs + h_all + 3 gi gate scratches)."""
    per_t = 4 * BB * (2 * (S + A) + 4 * H)
    cap = max(1, min(32, vmem_budget // max(per_t, 1)))
    best = 1
    for cand in range(1, min(T, cap) + 1):
        if T % cand == 0:
            best = cand
    return best


def _prepare_weights(params, state_dim):
    """Torch-layout params -> kernel-layout operands (pure reshapes/transposes)."""
    H = params["whh"].shape[1]
    wih_t = params["wih"].T                    # (D_in, 3H), columns ordered r|z|n
    whh_t = params["whh"].T                    # (H, 3H)
    bih = params["bih"]
    bhh = params["bhh"]
    # Fold b_hr, b_hz into the input-side bias; b_hn must stay inside r*(...).
    bih_eff = jnp.concatenate([bih[:2 * H] + bhh[:2 * H], bih[2 * H:]])
    return [
        wih_t[:state_dim].astype(jnp.bfloat16),          # wih (state part)
        wih_t[state_dim:].astype(jnp.bfloat16),          # wih (action part)
        bih_eff.reshape(1, 3 * H),
        whh_t[:, 0:H], whh_t[:, H:2 * H], whh_t[:, 2 * H:3 * H],
        bhh[2 * H:].reshape(1, H),
        params["w1"].T.astype(jnp.bfloat16), params["b1"].reshape(1, -1),
        params["g1"].reshape(1, -1), params["be1"].reshape(1, -1),
        params["w2"].T.astype(jnp.bfloat16), params["b2"].reshape(1, -1),
        params["g2"].reshape(1, -1), params["be2"].reshape(1, -1),
        params["w3"].reshape(1, -1), params["b3"].reshape(1, 1),
    ]


@jax.jit
def gru_critic_forward(params, state_seq, action_seq, hidden):
    """state_seq: (B,T,S), action_seq: (B,T,A), hidden: (1,B,H)
       -> (q_seq (B,T,1), hn (1,B,H))."""
    B, T, S = state_seq.shape
    A = action_seq.shape[-1]
    H = params["whh"].shape[1]

    BB = min(128, _round_up(B, 8))             # large batch tile (MXU rows, lanes)
    B_pad = _round_up(B, BB)
    NB = B_pad // BB
    pad_b = B_pad - B
    TT = _pick_time_block(T, BB, S, A, H)
    NT = T // TT

    # Time-major inputs; batch padded to BB (padded rows stay finite end-to-end).
    xs = jnp.transpose(state_seq, (1, 0, 2))   # (T, B, S)
    xa = jnp.transpose(action_seq, (1, 0, 2))
    h0 = hidden[0]
    if pad_b:
        xs = jnp.pad(xs, ((0, 0), (0, pad_b), (0, 0)))
        xa = jnp.pad(xa, ((0, 0), (0, pad_b), (0, 0)))
        h0 = jnp.pad(h0, ((0, pad_b), (0, 0)))

    weights = _prepare_weights(params, S)

    def full_spec(w):
        nd = w.ndim
        return pl.BlockSpec(w.shape, lambda b, t, _nd=nd: (0,) * _nd)

    in_specs = ([pl.BlockSpec((TT, BB, S), lambda b, t: (t, b, 0)),
                 pl.BlockSpec((TT, BB, A), lambda b, t: (t, b, 0)),
                 pl.BlockSpec((BB, H), lambda b, t: (b, 0))]
                + [full_spec(w) for w in weights])

    out_specs = (pl.BlockSpec((1, 1, TT, BB), lambda b, t: (b, t, 0, 0)),  # q slab
                 pl.BlockSpec((BB, H), lambda b, t: (b, 0)))               # hn resident
    out_shape = (jax.ShapeDtypeStruct((NB, NT, TT, BB), jnp.float32),
                 jax.ShapeDtypeStruct((B_pad, H), jnp.float32))

    scratch_shapes = [pltpu.VMEM((BB, H), jnp.float32),        # carried hidden
                      pltpu.VMEM((TT, BB, H), jnp.float32),    # block hidden states
                      pltpu.VMEM((TT, BB, H), jnp.float32),    # gi_r
                      pltpu.VMEM((TT, BB, H), jnp.float32),    # gi_z
                      pltpu.VMEM((TT, BB, H), jnp.float32)]    # gi_n

    # Rough per-block VMEM estimate; raise the scoped limit only when needed
    # (default scoped limits cover the small-shape case on all generations).
    weight_bytes = sum(w.size * w.dtype.itemsize for w in weights)
    est = (2 * 4 * (TT * BB * (S + A) + BB * H)        # double-buffered inputs
           + 2 * 4 * (TT * BB + BB * H)                # double-buffered outputs
           + 4 * (BB * H + 4 * TT * BB * H)            # scratch
           + 2 * weight_bytes)
    vmem_limit = None if est <= 12 * 2 ** 20 else int(min(2 * est, 48 * 2 ** 20))

    q4, hn_p = pl.pallas_call(
        gru_critic_kernel,
        out_shape=out_shape,
        grid_spec=pltpu.PrefetchScalarGridSpec(
            num_scalar_prefetch=0,
            grid=(NB, NT),
            in_specs=in_specs,
            out_specs=out_specs,
            scratch_shapes=scratch_shapes),
        compiler_params=pltpu.CompilerParams(
            # batch blocks are independent (shardable across v7x's 2 TCs);
            # the time axis carries the recurrence -> strictly sequential.
            dimension_semantics=("parallel", "arbitrary"),
            vmem_limit_bytes=vmem_limit),
    )(xs, xa, h0, *weights)

    q = jnp.transpose(q4.reshape(NB, T, BB), (0, 2, 1)).reshape(B_pad, T)
    q_seq = q[:B, :, None]                      # (B, T, 1)
    hn = hn_p[:B][None]                         # (1, B, H)
    return q_seq, hn


def init_params(key, state_dim, action_dim, hidden_dim):
    """Torch-equivalent parameter layout (GRU + Linear/LayerNorm head)."""
    D = state_dim + action_dim
    H = hidden_dim
    H2 = H // 2
    ks = jax.random.split(key, 10)

    def u(k, shape, bound):
        return jax.random.uniform(k, shape, jnp.float32, -bound, bound)

    kg = 1.0 / float(H) ** 0.5
    k3 = 1.0 / float(H2) ** 0.5
    return dict(
        wih=u(ks[0], (3 * H, D), kg),           # weight_ih_l0 (r,z,n)
        whh=u(ks[1], (3 * H, H), kg),           # weight_hh_l0
        bih=u(ks[2], (3 * H,), kg),
        bhh=u(ks[3], (3 * H,), kg),
        w1=u(ks[4], (H, H), kg), b1=u(ks[5], (H,), kg),
        g1=jnp.ones((H,), jnp.float32), be1=jnp.zeros((H,), jnp.float32),
        w2=u(ks[6], (H2, H), kg), b2=u(ks[7], (H2,), kg),
        g2=jnp.ones((H2,), jnp.float32), be2=jnp.zeros((H2,), jnp.float32),
        w3=u(ks[8], (1, H2), k3), b3=u(ks[9], (1,), k3),
    )


def reference_forward(params, state_seq, action_seq, hidden):
    """Pure-JAX f32 reference matching torch.nn.GRU + fc head semantics."""
    x = jnp.concatenate([state_seq, action_seq], axis=-1)
    H = params["whh"].shape[1]
    wih_t = params["wih"].T
    whh_t = params["whh"].T
    bih = params["bih"]
    bhh = params["bhh"]

    def step(h, x_t):
        gi = x_t @ wih_t + bih
        gh = h @ whh_t + bhh
        r = jax.nn.sigmoid(gi[:, :H] + gh[:, :H])
        z = jax.nn.sigmoid(gi[:, H:2 * H] + gh[:, H:2 * H])
        n = jnp.tanh(gi[:, 2 * H:] + r * gh[:, 2 * H:])
        h_new = (1.0 - z) * n + z * h
        return h_new, h_new

    hn, outs = jax.lax.scan(step, hidden[0], jnp.transpose(x, (1, 0, 2)))
    out = jnp.transpose(outs, (1, 0, 2))                 # (B, T, H)

    y = out @ params["w1"].T + params["b1"]
    y = _leaky_relu(_layer_norm(y, params["g1"], params["be1"]))
    y = y @ params["w2"].T + params["b2"]
    y = _leaky_relu(_layer_norm(y, params["g2"], params["be2"]))
    q = y @ params["w3"].T + params["b3"]
    return q, hn[None]


if __name__ == "__main__":
    STATE_DIM, ACTION_DIM, HIDDEN_DIM = 6, 2, 32
    B, T = 2, 8

    key = jax.random.PRNGKey(0)
    kp, kst, kac = jax.random.split(key, 3)
    params = init_params(kp, STATE_DIM, ACTION_DIM, HIDDEN_DIM)

    state_seq = jax.random.normal(kst, (B, T, STATE_DIM), jnp.float32)
    action_seq = jax.random.normal(kac, (B, T, ACTION_DIM), jnp.float32)
    hidden = jnp.zeros((1, B, HIDDEN_DIM), jnp.float32)  # GRUCritic.init_hidden

    q_seq, hn = gru_critic_forward(params, state_seq, action_seq, hidden)
    q_seq, hn = jax.block_until_ready((q_seq, hn))

    q_ref, hn_ref = reference_forward(params, state_seq, action_seq, hidden)
    assert q_seq.shape == (B, T, 1) and hn.shape == (1, B, HIDDEN_DIM)
    # bf16 operands on the bulk (non-recurrent) matmuls drift slightly vs. the
    # pure-f32 reference, hence the relaxed tolerance.
    assert jnp.allclose(q_seq, q_ref, atol=5e-2, rtol=5e-2), \
        float(jnp.max(jnp.abs(q_seq - q_ref)))
    assert jnp.allclose(hn, hn_ref, atol=5e-2, rtol=5e-2), \
        float(jnp.max(jnp.abs(hn - hn_ref)))

    print("KERNEL_OK")
</pallas_src>

<mosaic_0001>
module attributes {stable_mosaic.version = 11 : i64} {
  func.func @gru_critic_kernel(%arg0: i32, %arg1: i32, %arg2: memref<8x8x6xf32, #tpu.memory_space<vmem>>, %arg3: memref<8x8x2xf32, #tpu.memory_space<vmem>>, %arg4: memref<8x32xf32, #tpu.memory_space<vmem>>, %arg5: memref<6x96xbf16, #tpu.memory_space<vmem>>, %arg6: memref<2x96xbf16, #tpu.memory_space<vmem>>, %arg7: memref<1x96xf32, #tpu.memory_space<vmem>>, %arg8: memref<32x32xf32, #tpu.memory_space<vmem>>, %arg9: memref<32x32xf32, #tpu.memory_space<vmem>>, %arg10: memref<32x32xf32, #tpu.memory_space<vmem>>, %arg11: memref<1x32xf32, #tpu.memory_space<vmem>>, %arg12: memref<32x32xbf16, #tpu.memory_space<vmem>>, %arg13: memref<1x32xf32, #tpu.memory_space<vmem>>, %arg14: memref<1x32xf32, #tpu.memory_space<vmem>>, %arg15: memref<1x32xf32, #tpu.memory_space<vmem>>, %arg16: memref<32x16xbf16, #tpu.memory_space<vmem>>, %arg17: memref<1x16xf32, #tpu.memory_space<vmem>>, %arg18: memref<1x16xf32, #tpu.memory_space<vmem>>, %arg19: memref<1x16xf32, #tpu.memory_space<vmem>>, %arg20: memref<1x16xf32, #tpu.memory_space<vmem>>, %arg21: memref<1x1xf32, #tpu.memory_space<vmem>>, %arg22: memref<1x1x8x8xf32, #tpu.memory_space<vmem>>, %arg23: memref<8x32xf32, #tpu.memory_space<vmem>>, %arg24: memref<8x32xf32, #tpu.memory_space<vmem>>, %arg25: memref<8x8x32xf32, #tpu.memory_space<vmem>>, %arg26: memref<8x8x32xf32, #tpu.memory_space<vmem>>, %arg27: memref<8x8x32xf32, #tpu.memory_space<vmem>>, %arg28: memref<8x8x32xf32, #tpu.memory_space<vmem>>) attributes {dimension_semantics = [#tpu.dimension_semantics<parallel>, #tpu.dimension_semantics<arbitrary>], iteration_bounds = array<i64: 1, 1>, scalar_prefetch = 0 : i64, scratch_operands = 5 : i64, tpu.core_type = #tpu.core_type<tc>, window_params = [{transform_indices = @transform_0, window_bounds = array<i64: 8, 8, 6>}, {transform_indices = @transform_1, window_bounds = array<i64: 8, 8, 2>}, {transform_indices = @transform_2, window_bounds = array<i64: 8, 32>}, {pipeline_mode = #tpu.pipeline_mode<synchronous>, transform_indices = @transform_3, window_bounds = array<i64: 6, 96>}, {pipeline_mode = #tpu.pipeline_mode<synchronous>, transform_indices = @transform_4, window_bounds = array<i64: 2, 96>}, {pipeline_mode = #tpu.pipeline_mode<synchronous>, transform_indices = @transform_5, window_bounds = array<i64: 1, 96>}, {pipeline_mode = #tpu.pipeline_mode<synchronous>, transform_indices = @transform_6, window_bounds = array<i64: 32, 32>}, {pipeline_mode = #tpu.pipeline_mode<synchronous>, transform_indices = @transform_7, window_bounds = array<i64: 32, 32>}, {pipeline_mode = #tpu.pipeline_mode<synchronous>, transform_indices = @transform_8, window_bounds = array<i64: 32, 32>}, {pipeline_mode = #tpu.pipeline_mode<synchronous>, transform_indices = @transform_9, window_bounds = array<i64: 1, 32>}, {pipeline_mode = #tpu.pipeline_mode<synchronous>, transform_indices = @transform_10, window_bounds = array<i64: 32, 32>}, {pipeline_mode = #tpu.pipeline_mode<synchronous>, transform_indices = @transform_11, window_bounds = array<i64: 1, 32>}, {pipeline_mode = #tpu.pipeline_mode<synchronous>, transform_indices = @transform_12, window_bounds = array<i64: 1, 32>}, {pipeline_mode = #tpu.pipeline_mode<synchronous>, transform_indices = @transform_13, window_bounds = array<i64: 1, 32>}, {pipeline_mode = #tpu.pipeline_mode<synchronous>, transform_indices = @transform_14, window_bounds = array<i64: 32, 16>}, {pipeline_mode = #tpu.pipeline_mode<synchronous>, transform_indices = @transform_15, window_bounds = array<i64: 1, 16>}, {pipeline_mode = #tpu.pipeline_mode<synchronous>, transform_indices = @transform_16, window_bounds = array<i64: 1, 16>}, {pipeline_mode = #tpu.pipeline_mode<synchronous>, transform_indices = @transform_17, window_bounds = array<i64: 1, 16>}, {pipeline_mode = #tpu.pipeline_mode<synchronous>, transform_indices = @transform_18, window_bounds = array<i64: 1, 16>}, {pipeline_mode = #tpu.pipeline_mode<synchronous>, transform_indices = @transform_19, window_bounds = array<i64: 1, 1>}, {transform_indices = @transform_20, window_bounds = array<i64: 1, 1, 8, 8>}, {transform_indices = @transform_21, window_bounds = array<i64: 8, 32>}]} {
    %c0_i32 = arith.constant 0 : i32
    %0 = arith.cmpi eq, %arg1, %c0_i32 : i32
    %1 = arith.extui %0 : i1 to i32
    %c0_i32_0 = arith.constant 0 : i32
    %2 = arith.cmpi ne, %1, %c0_i32_0 : i32
    scf.if %2 {
      %c0_193 = arith.constant 0 : index
      %c0_194 = arith.constant 0 : index
      %417 = vector.load %arg4[%c0_193, %c0_194] : memref<8x32xf32, #tpu.memory_space<vmem>>, vector<8x32xf32>
      %c0_195 = arith.constant 0 : index
      %c0_196 = arith.constant 0 : index
      %418 = vector.load %arg24[%c0_195, %c0_196] : memref<8x32xf32, #tpu.memory_space<vmem>>, vector<8x32xf32>
      tpu.vector_store %arg24[%c0_195, %c0_196], %417 {strides = array<i32>} : memref<8x32xf32, #tpu.memory_space<vmem>>, vector<8x32xf32>,
    } else {
    }
    %c0 = arith.constant 0 : index
    %c0_1 = arith.constant 0 : index
    %c0_2 = arith.constant 0 : index
    %3 = vector.load %arg2[%c0, %c0_1, %c0_2] : memref<8x8x6xf32, #tpu.memory_space<vmem>>, vector<8x8x6xf32>
    %4 = arith.truncf %3 : vector<8x8x6xf32> to vector<8x8x6xbf16>
    %5 = vector.shape_cast %4 : vector<8x8x6xbf16> to vector<64x6xbf16>
    %c0_3 = arith.constant 0 : index
    %c0_4 = arith.constant 0 : index
    %c0_5 = arith.constant 0 : index
    %6 = vector.load %arg3[%c0_3, %c0_4, %c0_5] : memref<8x8x2xf32, #tpu.memory_space<vmem>>, vector<8x8x2xf32>
    %7 = arith.truncf %6 : vector<8x8x2xf32> to vector<8x8x2xbf16>
    %8 = vector.shape_cast %7 : vector<8x8x2xbf16> to vector<64x2xbf16>
    %c0_6 = arith.constant 0 : index
    %c0_7 = arith.constant 0 : index
    %9 = vector.load %arg5[%c0_6, %c0_7] : memref<6x96xbf16, #tpu.memory_space<vmem>>, vector<6x96xbf16>
    %cst = arith.constant dense<0.000000e+00> : vector<64x96xf32>
    %10 = tpu.matmul %5, %9, %cst {dimension_numbers = #tpu.dot_dimension_numbers<[1], [0], [0], [1], [0, 0, 1, 1], [], []>} : vector<64x6xbf16>, vector<6x96xbf16>, vector<64x96xf32> -> vector<64x96xf32>
    %c0_8 = arith.constant 0 : index
    %c0_9 = arith.constant 0 : index
    %11 = vector.load %arg6[%c0_8, %c0_9] : memref<2x96xbf16, #tpu.memory_space<vmem>>, vector<2x96xbf16>
    %cst_10 = arith.constant dense<0.000000e+00> : vector<64x96xf32>
    %12 = tpu.matmul %8, %11, %cst_10 {dimension_numbers = #tpu.dot_dimension_numbers<[1], [0], [0], [1], [0, 0, 1, 1], [], []>} : vector<64x2xbf16>, vector<2x96xbf16>, vector<64x96xf32> -> vector<64x96xf32>
    %13 = arith.addf %10, %12 : vector<64x96xf32>
    %c0_11 = arith.constant 0 : index
    %c0_12 = arith.constant 0 : index
    %14 = vector.load %arg7[%c0_11, %c0_12] : memref<1x96xf32, #tpu.memory_space<vmem>>, vector<1x96xf32>
    %15 = vector.broadcast %14 : vector<1x96xf32> to vector<64x96xf32>
    %16 = arith.addf %13, %15 : vector<64x96xf32>
    %17 = vector.extract_strided_slice %16 {offsets = [0, 0], sizes = [64, 32], strides = [1, 1]} : vector<64x96xf32> to vector<64x32xf32>
    %18 = vector.shape_cast %17 : vector<64x32xf32> to vector<8x8x32xf32>
    %c0_13 = arith.constant 0 : index
    %c0_14 = arith.constant 0 : index
    %c0_15 = arith.constant 0 : index
    %19 = vector.load %arg26[%c0_13, %c0_14, %c0_15] : memref<8x8x32xf32, #tpu.memory_space<vmem>>, vector<8x8x32xf32>
    tpu.vector_store %arg26[%c0_13, %c0_14, %c0_15], %18 {strides = array<i32>} : memref<8x8x32xf32, #tpu.memory_space<vmem>>, vector<8x8x32xf32>,
    %20 = vector.extract_strided_slice %16 {offsets = [0, 32], sizes = [64, 32], strides = [1, 1]} : vector<64x96xf32> to vector<64x32xf32>
    %21 = vector.shape_cast %20 : vector<64x32xf32> to vector<8x8x32xf32>
    %c0_16 = arith.constant 0 : index
    %c0_17 = arith.constant 0 : index
    %c0_18 = arith.constant 0 : index
    %22 = vector.load %arg27[%c0_16, %c0_17, %c0_18] : memref<8x8x32xf32, #tpu.memory_space<vmem>>, vector<8x8x32xf32>
    tpu.vector_store %arg27[%c0_16, %c0_17, %c0_18], %21 {strides = array<i32>} : memref<8x8x32xf32, #tpu.memory_space<vmem>>, vector<8x8x32xf32>,
    %23 = vector.extract_strided_slice %16 {offsets = [0, 64], sizes = [64, 32], strides = [1, 1]} : vector<64x96xf32> to vector<64x32xf32>
    %24 = vector.shape_cast %23 : vector<64x32xf32> to vector<8x8x32xf32>
    %c0_19 = arith.constant 0 : index
    %c0_20 = arith.constant 0 : index
    %c0_21 = arith.constant 0 : index
    %25 = vector.load %arg28[%c0_19, %c0_20, %c0_21] : memref<8x8x32xf32, #tpu.memory_space<vmem>>, vector<8x8x32xf32>
    tpu.vector_store %arg28[%c0_19, %c0_20, %c0_21], %24 {strides = array<i32>} : memref<8x8x32xf32, #tpu.memory_space<vmem>>, vector<8x8x32xf32>,
    %c0_22 = arith.constant 0 : index
    %c0_23 = arith.constant 0 : index
    %26 = vector.load %arg8[%c0_22, %c0_23] : memref<32x32xf32, #tpu.memory_space<vmem>>, vector<32x32xf32>
    %c0_24 = arith.constant 0 : index
    %c0_25 = arith.constant 0 : index
    %27 = vector.load %arg9[%c0_24, %c0_25] : memref<32x32xf32, #tpu.memory_space<vmem>>, vector<32x32xf32>
    %c0_26 = arith.constant 0 : index
    %c0_27 = arith.constant 0 : index
    %28 = vector.load %arg10[%c0_26, %c0_27] : memref<32x32xf32, #tpu.memory_space<vmem>>, vector<32x32xf32>
    %c0_28 = arith.constant 0 : index
    %c0_29 = arith.constant 0 : index
    %29 = vector.load %arg11[%c0_28, %c0_29] : memref<1x32xf32, #tpu.memory_space<vmem>>, vector<1x32xf32>
    %30 = vector.shape_cast %29 : vector<1x32xf32> to vector<1x32xf32>
    %31 = vector.broadcast %30 : vector<1x32xf32> to vector<8x32xf32>
    %c0_30 = arith.constant 0 : index
    %c0_31 = arith.constant 0 : index
    %32 = vector.load %arg24[%c0_30, %c0_31] : memref<8x32xf32, #tpu.memory_space<vmem>>, vector<8x32xf32>
    %c0_i32_32 = arith.constant 0 : i32
    %cst_33 = arith.constant dense<0.000000e+00> : vector<8x32xf32>
    %33 = tpu.matmul %32, %26, %cst_33 {dimension_numbers = #tpu.dot_dimension_numbers<[1], [0], [0], [1], [0, 0, 1, 1], [], []>} : vector<8x32xf32>, vector<32x32xf32>, vector<8x32xf32> -> vector<8x32xf32>
    %cst_34 = arith.constant dense<0.000000e+00> : vector<8x32xf32>
    %34 = tpu.matmul %32, %27, %cst_34 {dimension_numbers = #tpu.dot_dimension_numbers<[1], [0], [0], [1], [0, 0, 1, 1], [], []>} : vector<8x32xf32>, vector<32x32xf32>, vector<8x32xf32> -> vector<8x32xf32>
    %cst_35 = arith.constant dense<0.000000e+00> : vector<8x32xf32>
    %35 = tpu.matmul %32, %28, %cst_35 {dimension_numbers = #tpu.dot_dimension_numbers<[1], [0], [0], [1], [0, 0, 1, 1], [], []>} : vector<8x32xf32>, vector<32x32xf32>, vector<8x32xf32> -> vector<8x32xf32>
    %36 = arith.addf %35, %31 : vector<8x32xf32>
    %37 = arith.index_cast %c0_i32_32 : i32 to index
    %c0_36 = arith.constant 0 : index
    %c0_37 = arith.constant 0 : index
    %38 = vector.load %arg26[%37, %c0_36, %c0_37] : memref<8x8x32xf32, #tpu.memory_space<vmem>>, vector<1x8x32xf32>
    %39 = vector.shape_cast %38 : vector<1x8x32xf32> to vector<8x32xf32>
    %40 = arith.addf %39, %33 : vector<8x32xf32>
    %41 = arith.negf %40 : vector<8x32xf32>
    %42 = math.exp %41 : vector<8x32xf32>
    %cst_38 = arith.constant 1.000000e+00 : f32
    %43 = vector.broadcast %cst_38 : f32 to vector<8x32xf32>
    %44 = arith.addf %43, %42 : vector<8x32xf32>
    %45 = arith.divf %43, %44 : vector<8x32xf32>
    %46 = arith.index_cast %c0_i32_32 : i32 to index
    %c0_39 = arith.constant 0 : index
    %c0_40 = arith.constant 0 : index
    %47 = vector.load %arg27[%46, %c0_39, %c0_40] : memref<8x8x32xf32, #tpu.memory_space<vmem>>, vector<1x8x32xf32>
    %48 = vector.shape_cast %47 : vector<1x8x32xf32> to vector<8x32xf32>
    %49 = arith.addf %48, %34 : vector<8x32xf32>
    %50 = arith.negf %49 : vector<8x32xf32>
    %51 = math.exp %50 : vector<8x32xf32>
    %cst_41 = arith.constant 1.000000e+00 : f32
    %52 = vector.broadcast %cst_41 : f32 to vector<8x32xf32>
    %53 = arith.addf %52, %51 : vector<8x32xf32>
    %54 = arith.divf %52, %53 : vector<8x32xf32>
    %55 = arith.index_cast %c0_i32_32 : i32 to index
    %c0_42 = arith.constant 0 : index
    %c0_43 = arith.constant 0 : index
    %56 = vector.load %arg28[%55, %c0_42, %c0_43] : memref<8x8x32xf32, #tpu.memory_space<vmem>>, vector<1x8x32xf32>
    %57 = vector.shape_cast %56 : vector<1x8x32xf32> to vector<8x32xf32>
    %58 = arith.mulf %45, %36 : vector<8x32xf32>
    %59 = arith.addf %57, %58 : vector<8x32xf32>
    %60 = math.tanh %59 : vector<8x32xf32>
    %cst_44 = arith.constant 1.000000e+00 : f32
    %61 = vector.broadcast %cst_44 : f32 to vector<8x32xf32>
    %62 = arith.subf %61, %54 : vector<8x32xf32>
    %63 = arith.mulf %62, %60 : vector<8x32xf32>
    %64 = arith.mulf %54, %32 : vector<8x32xf32>
    %65 = arith.addf %63, %64 : vector<8x32xf32>
    %66 = arith.index_cast %c0_i32_32 : i32 to index
    %c0_45 = arith.constant 0 : index
    %c0_46 = arith.constant 0 : index
    %67 = vector.load %arg25[%66, %c0_45, %c0_46] : memref<8x8x32xf32, #tpu.memory_space<vmem>>, vector<1x8x32xf32>
    %68 = vector.shape_cast %67 : vector<1x8x32xf32> to vector<8x32xf32>
    %69 = vector.shape_cast %65 : vector<8x32xf32> to vector<1x8x32xf32>
    tpu.vector_store %arg25[%66, %c0_45, %c0_46], %69 {strides = array<i32>} : memref<8x8x32xf32, #tpu.memory_space<vmem>>, vector<1x8x32xf32>,
    %c1_i32 = arith.constant 1 : i32
    %cst_47 = arith.constant dense<0.000000e+00> : vector<8x32xf32>
    %70 = tpu.matmul %65, %26, %cst_47 {dimension_numbers = #tpu.dot_dimension_numbers<[1], [0], [0], [1], [0, 0, 1, 1], [], []>} : vector<8x32xf32>, vector<32x32xf32>, vector<8x32xf32> -> vector<8x32xf32>
    %cst_48 = arith.constant dense<0.000000e+00> : vector<8x32xf32>
    %71 = tpu.matmul %65, %27, %cst_48 {dimension_numbers = #tpu.dot_dimension_numbers<[1], [0], [0], [1], [0, 0, 1, 1], [], []>} : vector<8x32xf32>, vector<32x32xf32>, vector<8x32xf32> -> vector<8x32xf32>
    %cst_49 = arith.constant dense<0.000000e+00> : vector<8x32xf32>
    %72 = tpu.matmul %65, %28, %cst_49 {dimension_numbers = #tpu.dot_dimension_numbers<[1], [0], [0], [1], [0, 0, 1, 1], [], []>} : vector<8x32xf32>, vector<32x32xf32>, vector<8x32xf32> -> vector<8x32xf32>
    %73 = arith.addf %72, %31 : vector<8x32xf32>
    %74 = arith.index_cast %c1_i32 : i32 to index
    %c0_50 = arith.constant 0 : index
    %c0_51 = arith.constant 0 : index
    %75 = vector.load %arg26[%74, %c0_50, %c0_51] : memref<8x8x32xf32, #tpu.memory_space<vmem>>, vector<1x8x32xf32>
    %76 = vector.shape_cast %75 : vector<1x8x32xf32> to vector<8x32xf32>
    %77 = arith.addf %76, %70 : vector<8x32xf32>
    %78 = arith.negf %77 : vector<8x32xf32>
    %79 = math.exp %78 : vector<8x32xf32>
    %cst_52 = arith.constant 1.000000e+00 : f32
    %80 = vector.broadcast %cst_52 : f32 to vector<8x32xf32>
    %81 = arith.addf %80, %79 : vector<8x32xf32>
    %82 = arith.divf %80, %81 : vector<8x32xf32>
    %83 = arith.index_cast %c1_i32 : i32 to index
    %c0_53 = arith.constant 0 : index
    %c0_54 = arith.constant 0 : index
    %84 = vector.load %arg27[%83, %c0_53, %c0_54] : memref<8x8x32xf32, #tpu.memory_space<vmem>>, vector<1x8x32xf32>
    %85 = vector.shape_cast %84 : vector<1x8x32xf32> to vector<8x32xf32>
    %86 = arith.addf %85, %71 : vector<8x32xf32>
    %87 = arith.negf %86 : vector<8x32xf32>
    %88 = math.exp %87 : vector<8x32xf32>
    %cst_55 = arith.constant 1.000000e+00 : f32
    %89 = vector.broadcast %cst_55 : f32 to vector<8x32xf32>
    %90 = arith.addf %89, %88 : vector<8x32xf32>
    %91 = arith.divf %89, %90 : vector<8x32xf32>
    %92 = arith.index_cast %c1_i32 : i32 to index
    %c0_56 = arith.constant 0 : index
    %c0_57 = arith.constant 0 : index
    %93 = vector.load %arg28[%92, %c0_56, %c0_57] : memref<8x8x32xf32, #tpu.memory_space<vmem>>, vector<1x8x32xf32>
    %94 = vector.shape_cast %93 : vector<1x8x32xf32> to vector<8x32xf32>
    %95 = arith.mulf %82, %73 : vector<8x32xf32>
    %96 = arith.addf %94, %95 : vector<8x32xf32>
    %97 = math.tanh %96 : vector<8x32xf32>
    %cst_58 = arith.constant 1.000000e+00 : f32
    %98 = vector.broadcast %cst_58 : f32 to vector<8x32xf32>
    %99 = arith.subf %98, %91 : vector<8x32xf32>
    %100 = arith.mulf %99, %97 : vector<8x32xf32>
    %101 = arith.mulf %91, %65 : vector<8x32xf32>
    %102 = arith.addf %100, %101 : vector<8x32xf32>
    %103 = arith.index_cast %c1_i32 : i32 to index
    %c0_59 = arith.constant 0 : index
    %c0_60 = arith.constant 0 : index
    %104 = vector.load %arg25[%103, %c0_59, %c0_60] : memref<8x8x32xf32, #tpu.memory_space<vmem>>, vector<1x8x32xf32>
    %105 = vector.shape_cast %104 : vector<1x8x32xf32> to vector<8x32xf32>
    %106 = vector.shape_cast %102 : vector<8x32xf32> to vector<1x8x32xf32>
    tpu.vector_store %arg25[%103, %c0_59, %c0_60], %106 {strides = array<i32>} : memref<8x8x32xf32, #tpu.memory_space<vmem>>, vector<1x8x32xf32>,
    %c2_i32 = arith.constant 2 : i32
    %cst_61 = arith.constant dense<0.000000e+00> : vector<8x32xf32>
    %107 = tpu.matmul %102, %26, %cst_61 {dimension_numbers = #tpu.dot_dimension_numbers<[1], [0], [0], [1], [0, 0, 1, 1], [], []>} : vector<8x32xf32>, vector<32x32xf32>, vector<8x32xf32> -> vector<8x32xf32>
    %cst_62 = arith.constant dense<0.000000e+00> : vector<8x32xf32>
    %108 = tpu.matmul %102, %27, %cst_62 {dimension_numbers = #tpu.dot_dimension_numbers<[1], [0], [0], [1], [0, 0, 1, 1], [], []>} : vector<8x32xf32>, vector<32x32xf32>, vector<8x32xf32> -> vector<8x32xf32>
    %cst_63 = arith.constant dense<0.000000e+00> : vector<8x32xf32>
    %109 = tpu.matmul %102, %28, %cst_63 {dimension_numbers = #tpu.dot_dimension_numbers<[1], [0], [0], [1], [0, 0, 1, 1], [], []>} : vector<8x32xf32>, vector<32x32xf32>, vector<8x32xf32> -> vector<8x32xf32>
    %110 = arith.addf %109, %31 : vector<8x32xf32>
    %111 = arith.index_cast %c2_i32 : i32 to index
    %c0_64 = arith.constant 0 : index
    %c0_65 = arith.constant 0 : index
    %112 = vector.load %arg26[%111, %c0_64, %c0_65] : memref<8x8x32xf32, #tpu.memory_space<vmem>>, vector<1x8x32xf32>
    %113 = vector.shape_cast %112 : vector<1x8x32xf32> to vector<8x32xf32>
    %114 = arith.addf %113, %107 : vector<8x32xf32>
    %115 = arith.negf %114 : vector<8x32xf32>
    %116 = math.exp %115 : vector<8x32xf32>
    %cst_66 = arith.constant 1.000000e+00 : f32
    %117 = vector.broadcast %cst_66 : f32 to vector<8x32xf32>
    %118 = arith.addf %117, %116 : vector<8x32xf32>
    %119 = arith.divf %117, %118 : vector<8x32xf32>
    %120 = arith.index_cast %c2_i32 : i32 to index
    %c0_67 = arith.constant 0 : index
    %c0_68 = arith.constant 0 : index
    %121 = vector.load %arg27[%120, %c0_67, %c0_68] : memref<8x8x32xf32, #tpu.memory_space<vmem>>, vector<1x8x32xf32>
    %122 = vector.shape_cast %121 : vector<1x8x32xf32> to vector<8x32xf32>
    %123 = arith.addf %122, %108 : vector<8x32xf32>
    %124 = arith.negf %123 : vector<8x32xf32>
    %125 = math.exp %124 : vector<8x32xf32>
    %cst_69 = arith.constant 1.000000e+00 : f32
    %126 = vector.broadcast %cst_69 : f32 to vector<8x32xf32>
    %127 = arith.addf %126, %125 : vector<8x32xf32>
    %128 = arith.divf %126, %127 : vector<8x32xf32>
    %129 = arith.index_cast %c2_i32 : i32 to index
    %c0_70 = arith.constant 0 : index
    %c0_71 = arith.constant 0 : index
    %130 = vector.load %arg28[%129, %c0_70, %c0_71] : memref<8x8x32xf32, #tpu.memory_space<vmem>>, vector<1x8x32xf32>
    %131 = vector.shape_cast %130 : vector<1x8x32xf32> to vector<8x32xf32>
    %132 = arith.mulf %119, %110 : vector<8x32xf32>
    %133 = arith.addf %131, %132 : vector<8x32xf32>
    %134 = math.tanh %133 : vector<8x32xf32>
    %cst_72 = arith.constant 1.000000e+00 : f32
    %135 = vector.broadcast %cst_72 : f32 to vector<8x32xf32>
    %136 = arith.subf %135, %128 : vector<8x32xf32>
    %137 = arith.mulf %136, %134 : vector<8x32xf32>
    %138 = arith.mulf %128, %102 : vector<8x32xf32>
    %139 = arith.addf %137, %138 : vector<8x32xf32>
    %140 = arith.index_cast %c2_i32 : i32 to index
    %c0_73 = arith.constant 0 : index
    %c0_74 = arith.constant 0 : index
    %141 = vector.load %arg25[%140, %c0_73, %c0_74] : memref<8x8x32xf32, #tpu.memory_space<vmem>>, vector<1x8x32xf32>
    %142 = vector.shape_cast %141 : vector<1x8x32xf32> to vector<8x32xf32>
    %143 = vector.shape_cast %139 : vector<8x32xf32> to vector<1x8x32xf32>
    tpu.vector_store %arg25[%140, %c0_73, %c0_74], %143 {strides = array<i32>} : memref<8x8x32xf32, #tpu.memory_space<vmem>>, vector<1x8x32xf32>,
    %c3_i32 = arith.constant 3 : i32
    %cst_75 = arith.constant dense<0.000000e+00> : vector<8x32xf32>
    %144 = tpu.matmul %139, %26, %cst_75 {dimension_numbers = #tpu.dot_dimension_numbers<[1], [0], [0], [1], [0, 0, 1, 1], [], []>} : vector<8x32xf32>, vector<32x32xf32>, vector<8x32xf32> -> vector<8x32xf32>
    %cst_76 = arith.constant dense<0.000000e+00> : vector<8x32xf32>
    %145 = tpu.matmul %139, %27, %cst_76 {dimension_numbers = #tpu.dot_dimension_numbers<[1], [0], [0], [1], [0, 0, 1, 1], [], []>} : vector<8x32xf32>, vector<32x32xf32>, vector<8x32xf32> -> vector<8x32xf32>
    %cst_77 = arith.constant dense<0.000000e+00> : vector<8x32xf32>
    %146 = tpu.matmul %139, %28, %cst_77 {dimension_numbers = #tpu.dot_dimension_numbers<[1], [0], [0], [1], [0, 0, 1, 1], [], []>} : vector<8x32xf32>, vector<32x32xf32>, vector<8x32xf32> -> vector<8x32xf32>
    %147 = arith.addf %146, %31 : vector<8x32xf32>
    %148 = arith.index_cast %c3_i32 : i32 to index
    %c0_78 = arith.constant 0 : index
    %c0_79 = arith.constant 0 : index
    %149 = vector.load %arg26[%148, %c0_78, %c0_79] : memref<8x8x32xf32, #tpu.memory_space<vmem>>, vector<1x8x32xf32>
    %150 = vector.shape_cast %149 : vector<1x8x32xf32> to vector<8x32xf32>
    %151 = arith.addf %150, %144 : vector<8x32xf32>
    %152 = arith.negf %151 : vector<8x32xf32>
    %153 = math.exp %152 : vector<8x32xf32>
    %cst_80 = arith.constant 1.000000e+00 : f32
    %154 = vector.broadcast %cst_80 : f32 to vector<8x32xf32>
    %155 = arith.addf %154, %153 : vector<8x32xf32>
    %156 = arith.divf %154, %155 : vector<8x32xf32>
    %157 = arith.index_cast %c3_i32 : i32 to index
    %c0_81 = arith.constant 0 : index
    %c0_82 = arith.constant 0 : index
    %158 = vector.load %arg27[%157, %c0_81, %c0_82] : memref<8x8x32xf32, #tpu.memory_space<vmem>>, vector<1x8x32xf32>
    %159 = vector.shape_cast %158 : vector<1x8x32xf32> to vector<8x32xf32>
    %160 = arith.addf %159, %145 : vector<8x32xf32>
    %161 = arith.negf %160 : vector<8x32xf32>
    %162 = math.exp %161 : vector<8x32xf32>
    %cst_83 = arith.constant 1.000000e+00 : f32
    %163 = vector.broadcast %cst_83 : f32 to vector<8x32xf32>
    %164 = arith.addf %163, %162 : vector<8x32xf32>
    %165 = arith.divf %163, %164 : vector<8x32xf32>
    %166 = arith.index_cast %c3_i32 : i32 to index
    %c0_84 = arith.constant 0 : index
    %c0_85 = arith.constant 0 : index
    %167 = vector.load %arg28[%166, %c0_84, %c0_85] : memref<8x8x32xf32, #tpu.memory_space<vmem>>, vector<1x8x32xf32>
    %168 = vector.shape_cast %167 : vector<1x8x32xf32> to vector<8x32xf32>
    %169 = arith.mulf %156, %147 : vector<8x32xf32>
    %170 = arith.addf %168, %169 : vector<8x32xf32>
    %171 = math.tanh %170 : vector<8x32xf32>
    %cst_86 = arith.constant 1.000000e+00 : f32
    %172 = vector.broadcast %cst_86 : f32 to vector<8x32xf32>
    %173 = arith.subf %172, %165 : vector<8x32xf32>
    %174 = arith.mulf %173, %171 : vector<8x32xf32>
    %175 = arith.mulf %165, %139 : vector<8x32xf32>
    %176 = arith.addf %174, %175 : vector<8x32xf32>
    %177 = arith.index_cast %c3_i32 : i32 to index
    %c0_87 = arith.constant 0 : index
    %c0_88 = arith.constant 0 : index
    %178 = vector.load %arg25[%177, %c0_87, %c0_88] : memref<8x8x32xf32, #tpu.memory_space<vmem>>, vector<1x8x32xf32>
    %179 = vector.shape_cast %178 : vector<1x8x32xf32> to vector<8x32xf32>
    %180 = vector.shape_cast %176 : vector<8x32xf32> to vector<1x8x32xf32>
    tpu.vector_store %arg25[%177, %c0_87, %c0_88], %180 {strides = array<i32>} : memref<8x8x32xf32, #tpu.memory_space<vmem>>, vector<1x8x32xf32>,
    %c4_i32 = arith.constant 4 : i32
    %cst_89 = arith.constant dense<0.000000e+00> : vector<8x32xf32>
    %181 = tpu.matmul %176, %26, %cst_89 {dimension_numbers = #tpu.dot_dimension_numbers<[1], [0], [0], [1], [0, 0, 1, 1], [], []>} : vector<8x32xf32>, vector<32x32xf32>, vector<8x32xf32> -> vector<8x32xf32>
    %cst_90 = arith.constant dense<0.000000e+00> : vector<8x32xf32>
    %182 = tpu.matmul %176, %27, %cst_90 {dimension_numbers = #tpu.dot_dimension_numbers<[1], [0], [0], [1], [0, 0, 1, 1], [], []>} : vector<8x32xf32>, vector<32x32xf32>, vector<8x32xf32> -> vector<8x32xf32>
    %cst_91 = arith.constant dense<0.000000e+00> : vector<8x32xf32>
    %183 = tpu.matmul %176, %28, %cst_91 {dimension_numbers = #tpu.dot_dimension_numbers<[1], [0], [0], [1], [0, 0, 1, 1], [], []>} : vector<8x32xf32>, vector<32x32xf32>, vector<8x32xf32> -> vector<8x32xf32>
    %184 = arith.addf %183, %31 : vector<8x32xf32>
    %185 = arith.index_cast %c4_i32 : i32 to index
    %c0_92 = arith.constant 0 : index
    %c0_93 = arith.constant 0 : index
    %186 = vector.load %arg26[%185, %c0_92, %c0_93] : memref<8x8x32xf32, #tpu.memory_space<vmem>>, vector<1x8x32xf32>
    %187 = vector.shape_cast %186 : vector<1x8x32xf32> to vector<8x32xf32>
    %188 = arith.addf %187, %181 : vector<8x32xf32>
    %189 = arith.negf %188 : vector<8x32xf32>
    %190 = math.exp %189 : vector<8x32xf32>
    %cst_94 = arith.constant 1.000000e+00 : f32
    %191 = vector.broadcast %cst_94 : f32 to vector<8x32xf32>
    %192 = arith.addf %191, %190 : vector<8x32xf32>
    %193 = arith.divf %191, %192 : vector<8x32xf32>
    %194 = arith.index_cast %c4_i32 : i32 to index
    %c0_95 = arith.constant 0 : index
    %c0_96 = arith.constant 0 : index
    %195 = vector.load %arg27[%194, %c0_95, %c0_96] : memref<8x8x32xf32, #tpu.memory_space<vmem>>, vector<1x8x32xf32>
    %196 = vector.shape_cast %195 : vector<1x8x32xf32> to vector<8x32xf32>
    %197 = arith.addf %196, %182 : vector<8x32xf32>
    %198 = arith.negf %197 : vector<8x32xf32>
    %199 = math.exp %198 : vector<8x32xf32>
    %cst_97 = arith.constant 1.000000e+00 : f32
    %200 = vector.broadcast %cst_97 : f32 to vector<8x32xf32>
    %201 = arith.addf %200, %199 : vector<8x32xf32>
    %202 = arith.divf %200, %201 : vector<8x32xf32>
    %203 = arith.index_cast %c4_i32 : i32 to index
    %c0_98 = arith.constant 0 : index
    %c0_99 = arith.constant 0 : index
    %204 = vector.load %arg28[%203, %c0_98, %c0_99] : memref<8x8x32xf32, #tpu.memory_space<vmem>>, vector<1x8x32xf32>
    %205 = vector.shape_cast %204 : vector<1x8x32xf32> to vector<8x32xf32>
    %206 = arith.mulf %193, %184 : vector<8x32xf32>
    %207 = arith.addf %205, %206 : vector<8x32xf32>
    %208 = math.tanh %207 : vector<8x32xf32>
    %cst_100 = arith.constant 1.000000e+00 : f32
    %209 = vector.broadcast %cst_100 : f32 to vector<8x32xf32>
    %210 = arith.subf %209, %202 : vector<8x32xf32>
    %211 = arith.mulf %210, %208 : vector<8x32xf32>
    %212 = arith.mulf %202, %176 : vector<8x32xf32>
    %213 = arith.addf %211, %212 : vector<8x32xf32>
    %214 = arith.index_cast %c4_i32 : i32 to index
    %c0_101 = arith.constant 0 : index
    %c0_102 = arith.constant 0 : index
    %215 = vector.load %arg25[%214, %c0_101, %c0_102] : memref<8x8x32xf32, #tpu.memory_space<vmem>>, vector<1x8x32xf32>
    %216 = vector.shape_cast %215 : vector<1x8x32xf32> to vector<8x32xf32>
    %217 = vector.shape_cast %213 : vector<8x32xf32> to vector<1x8x32xf32>
    tpu.vector_store %arg25[%214, %c0_101, %c0_102], %217 {strides = array<i32>} : memref<8x8x32xf32, #tpu.memory_space<vmem>>, vector<1x8x32xf32>,
    %c5_i32 = arith.constant 5 : i32
    %cst_103 = arith.constant dense<0.000000e+00> : vector<8x32xf32>
    %218 = tpu.matmul %213, %26, %cst_103 {dimension_numbers = #tpu.dot_dimension_numbers<[1], [0], [0], [1], [0, 0, 1, 1], [], []>} : vector<8x32xf32>, vector<32x32xf32>, vector<8x32xf32> -> vector<8x32xf32>
    %cst_104 = arith.constant dense<0.000000e+00> : vector<8x32xf32>
    %219 = tpu.matmul %213, %27, %cst_104 {dimension_numbers = #tpu.dot_dimension_numbers<[1], [0], [0], [1], [0, 0, 1, 1], [], []>} : vector<8x32xf32>, vector<32x32xf32>, vector<8x32xf32> -> vector<8x32xf32>
    %cst_105 = arith.constant dense<0.000000e+00> : vector<8x32xf32>
    %220 = tpu.matmul %213, %28, %cst_105 {dimension_numbers = #tpu.dot_dimension_numbers<[1], [0], [0], [1], [0, 0, 1, 1], [], []>} : vector<8x32xf32>, vector<32x32xf32>, vector<8x32xf32> -> vector<8x32xf32>
    %221 = arith.addf %220, %31 : vector<8x32xf32>
    %222 = arith.index_cast %c5_i32 : i32 to index
    %c0_106 = arith.constant 0 : index
    %c0_107 = arith.constant 0 : index
    %223 = vector.load %arg26[%222, %c0_106, %c0_107] : memref<8x8x32xf32, #tpu.memory_space<vmem>>, vector<1x8x32xf32>
    %224 = vector.shape_cast %223 : vector<1x8x32xf32> to vector<8x32xf32>
    %225 = arith.addf %224, %218 : vector<8x32xf32>
    %226 = arith.negf %225 : vector<8x32xf32>
    %227 = math.exp %226 : vector<8x32xf32>
    %cst_108 = arith.constant 1.000000e+00 : f32
    %228 = vector.broadcast %cst_108 : f32 to vector<8x32xf32>
    %229 = arith.addf %228, %227 : vector<8x32xf32>
    %230 = arith.divf %228, %229 : vector<8x32xf32>
    %231 = arith.index_cast %c5_i32 : i32 to index
    %c0_109 = arith.constant 0 : index
    %c0_110 = arith.constant 0 : index
    %232 = vector.load %arg27[%231, %c0_109, %c0_110] : memref<8x8x32xf32, #tpu.memory_space<vmem>>, vector<1x8x32xf32>
    %233 = vector.shape_cast %232 : vector<1x8x32xf32> to vector<8x32xf32>
    %234 = arith.addf %233, %219 : vector<8x32xf32>
    %235 = arith.negf %234 : vector<8x32xf32>
    %236 = math.exp %235 : vector<8x32xf32>
    %cst_111 = arith.constant 1.000000e+00 : f32
    %237 = vector.broadcast %cst_111 : f32 to vector<8x32xf32>
    %238 = arith.addf %237, %236 : vector<8x32xf32>
    %239 = arith.divf %237, %238 : vector<8x32xf32>
    %240 = arith.index_cast %c5_i32 : i32 to index
    %c0_112 = arith.constant 0 : index
    %c0_113 = arith.constant 0 : index
    %241 = vector.load %arg28[%240, %c0_112, %c0_113] : memref<8x8x32xf32, #tpu.memory_space<vmem>>, vector<1x8x32xf32>
    %242 = vector.shape_cast %241 : vector<1x8x32xf32> to vector<8x32xf32>
    %243 = arith.mulf %230, %221 : vector<8x32xf32>
    %244 = arith.addf %242, %243 : vector<8x32xf32>
    %245 = math.tanh %244 : vector<8x32xf32>
    %cst_114 = arith.constant 1.000000e+00 : f32
    %246 = vector.broadcast %cst_114 : f32 to vector<8x32xf32>
    %247 = arith.subf %246, %239 : vector<8x32xf32>
    %248 = arith.mulf %247, %245 : vector<8x32xf32>
    %249 = arith.mulf %239, %213 : vector<8x32xf32>
    %250 = arith.addf %248, %249 : vector<8x32xf32>
    %251 = arith.index_cast %c5_i32 : i32 to index
    %c0_115 = arith.constant 0 : index
    %c0_116 = arith.constant 0 : index
    %252 = vector.load %arg25[%251, %c0_115, %c0_116] : memref<8x8x32xf32, #tpu.memory_space<vmem>>, vector<1x8x32xf32>
    %253 = vector.shape_cast %252 : vector<1x8x32xf32> to vector<8x32xf32>
    %254 = vector.shape_cast %250 : vector<8x32xf32> to vector<1x8x32xf32>
    tpu.vector_store %arg25[%251, %c0_115, %c0_116], %254 {strides = array<i32>} : memref<8x8x32xf32, #tpu.memory_space<vmem>>, vector<1x8x32xf32>,
    %c6_i32 = arith.constant 6 : i32
    %cst_117 = arith.constant dense<0.000000e+00> : vector<8x32xf32>
    %255 = tpu.matmul %250, %26, %cst_117 {dimension_numbers = #tpu.dot_dimension_numbers<[1], [0], [0], [1], [0, 0, 1, 1], [], []>} : vector<8x32xf32>, vector<32x32xf32>, vector<8x32xf32> -> vector<8x32xf32>
    %cst_118 = arith.constant dense<0.000000e+00> : vector<8x32xf32>
    %256 = tpu.matmul %250, %27, %cst_118 {dimension_numbers = #tpu.dot_dimension_numbers<[1], [0], [0], [1], [0, 0, 1, 1], [], []>} : vector<8x32xf32>, vector<32x32xf32>, vector<8x32xf32> -> vector<8x32xf32>
    %cst_119 = arith.constant dense<0.000000e+00> : vector<8x32xf32>
    %257 = tpu.matmul %250, %28, %cst_119 {dimension_numbers = #tpu.dot_dimension_numbers<[1], [0], [0], [1], [0, 0, 1, 1], [], []>} : vector<8x32xf32>, vector<32x32xf32>, vector<8x32xf32> -> vector<8x32xf32>
    %258 = arith.addf %257, %31 : vector<8x32xf32>
    %259 = arith.index_cast %c6_i32 : i32 to index
    %c0_120 = arith.constant 0 : index
    %c0_121 = arith.constant 0 : index
    %260 = vector.load %arg26[%259, %c0_120, %c0_121] : memref<8x8x32xf32, #tpu.memory_space<vmem>>, vector<1x8x32xf32>
    %261 = vector.shape_cast %260 : vector<1x8x32xf32> to vector<8x32xf32>
    %262 = arith.addf %261, %255 : vector<8x32xf32>
    %263 = arith.negf %262 : vector<8x32xf32>
    %264 = math.exp %263 : vector<8x32xf32>
    %cst_122 = arith.constant 1.000000e+00 : f32
    %265 = vector.broadcast %cst_122 : f32 to vector<8x32xf32>
    %266 = arith.addf %265, %264 : vector<8x32xf32>
    %267 = arith.divf %265, %266 : vector<8x32xf32>
    %268 = arith.index_cast %c6_i32 : i32 to index
    %c0_123 = arith.constant 0 : index
    %c0_124 = arith.constant 0 : index
    %269 = vector.load %arg27[%268, %c0_123, %c0_124] : memref<8x8x32xf32, #tpu.memory_space<vmem>>, vector<1x8x32xf32>
    %270 = vector.shape_cast %269 : vector<1x8x32xf32> to vector<8x32xf32>
    %271 = arith.addf %270, %256 : vector<8x32xf32>
    %272 = arith.negf %271 : vector<8x32xf32>
    %273 = math.exp %272 : vector<8x32xf32>
    %cst_125 = arith.constant 1.000000e+00 : f32
    %274 = vector.broadcast %cst_125 : f32 to vector<8x32xf32>
    %275 = arith.addf %274, %273 : vector<8x32xf32>
    %276 = arith.divf %274, %275 : vector<8x32xf32>
    %277 = arith.index_cast %c6_i32 : i32 to index
    %c0_126 = arith.constant 0 : index
    %c0_127 = arith.constant 0 : index
    %278 = vector.load %arg28[%277, %c0_126, %c0_127] : memref<8x8x32xf32, #tpu.memory_space<vmem>>, vector<1x8x32xf32>
    %279 = vector.shape_cast %278 : vector<1x8x32xf32> to vector<8x32xf32>
    %280 = arith.mulf %267, %258 : vector<8x32xf32>
    %281 = arith.addf %279, %280 : vector<8x32xf32>
    %282 = math.tanh %281 : vector<8x32xf32>
    %cst_128 = arith.constant 1.000000e+00 : f32
    %283 = vector.broadcast %cst_128 : f32 to vector<8x32xf32>
    %284 = arith.subf %283, %276 : vector<8x32xf32>
    %285 = arith.mulf %284, %282 : vector<8x32xf32>
    %286 = arith.mulf %276, %250 : vector<8x32xf32>
    %287 = arith.addf %285, %286 : vector<8x32xf32>
    %288 = arith.index_cast %c6_i32 : i32 to index
    %c0_129 = arith.constant 0 : index
    %c0_130 = arith.constant 0 : index
    %289 = vector.load %arg25[%288, %c0_129, %c0_130] : memref<8x8x32xf32, #tpu.memory_space<vmem>>, vector<1x8x32xf32>
    %290 = vector.shape_cast %289 : vector<1x8x32xf32> to vector<8x32xf32>
    %291 = vector.shape_cast %287 : vector<8x32xf32> to vector<1x8x32xf32>
    tpu.vector_store %arg25[%288, %c0_129, %c0_130], %291 {strides = array<i32>} : memref<8x8x32xf32, #tpu.memory_space<vmem>>, vector<1x8x32xf32>,
    %c7_i32 = arith.constant 7 : i32
    %cst_131 = arith.constant dense<0.000000e+00> : vector<8x32xf32>
    %292 = tpu.matmul %287, %26, %cst_131 {dimension_numbers = #tpu.dot_dimension_numbers<[1], [0], [0], [1], [0, 0, 1, 1], [], []>} : vector<8x32xf32>, vector<32x32xf32>, vector<8x32xf32> -> vector<8x32xf32>
    %cst_132 = arith.constant dense<0.000000e+00> : vector<8x32xf32>
    %293 = tpu.matmul %287, %27, %cst_132 {dimension_numbers = #tpu.dot_dimension_numbers<[1], [0], [0], [1], [0, 0, 1, 1], [], []>} : vector<8x32xf32>, vector<32x32xf32>, vector<8x32xf32> -> vector<8x32xf32>
    %cst_133 = arith.constant dense<0.000000e+00> : vector<8x32xf32>
    %294 = tpu.matmul %287, %28, %cst_133 {dimension_numbers = #tpu.dot_dimension_numbers<[1], [0], [0], [1], [0, 0, 1, 1], [], []>} : vector<8x32xf32>, vector<32x32xf32>, vector<8x32xf32> -> vector<8x32xf32>
    %295 = arith.addf %294, %31 : vector<8x32xf32>
    %296 = arith.index_cast %c7_i32 : i32 to index
    %c0_134 = arith.constant 0 : index
    %c0_135 = arith.constant 0 : index
    %297 = vector.load %arg26[%296, %c0_134, %c0_135] : memref<8x8x32xf32, #tpu.memory_space<vmem>>, vector<1x8x32xf32>
    %298 = vector.shape_cast %297 : vector<1x8x32xf32> to vector<8x32xf32>
    %299 = arith.addf %298, %292 : vector<8x32xf32>
    %300 = arith.negf %299 : vector<8x32xf32>
    %301 = math.exp %300 : vector<8x32xf32>
    %cst_136 = arith.constant 1.000000e+00 : f32
    %302 = vector.broadcast %cst_136 : f32 to vector<8x32xf32>
    %303 = arith.addf %302, %301 : vector<8x32xf32>
    %304 = arith.divf %302, %303 : vector<8x32xf32>
    %305 = arith.index_cast %c7_i32 : i32 to index
    %c0_137 = arith.constant 0 : index
    %c0_138 = arith.constant 0 : index
    %306 = vector.load %arg27[%305, %c0_137, %c0_138] : memref<8x8x32xf32, #tpu.memory_space<vmem>>, vector<1x8x32xf32>
    %307 = vector.shape_cast %306 : vector<1x8x32xf32> to vector<8x32xf32>
    %308 = arith.addf %307, %293 : vector<8x32xf32>
    %309 = arith.negf %308 : vector<8x32xf32>
    %310 = math.exp %309 : vector<8x32xf32>
    %cst_139 = arith.constant 1.000000e+00 : f32
    %311 = vector.broadcast %cst_139 : f32 to vector<8x32xf32>
    %312 = arith.addf %311, %310 : vector<8x32xf32>
    %313 = arith.divf %311, %312 : vector<8x32xf32>
    %314 = arith.index_cast %c7_i32 : i32 to index
    %c0_140 = arith.constant 0 : index
    %c0_141 = arith.constant 0 : index
    %315 = vector.load %arg28[%314, %c0_140, %c0_141] : memref<8x8x32xf32, #tpu.memory_space<vmem>>, vector<1x8x32xf32>
    %316 = vector.shape_cast %315 : vector<1x8x32xf32> to vector<8x32xf32>
    %317 = arith.mulf %304, %295 : vector<8x32xf32>
    %318 = arith.addf %316, %317 : vector<8x32xf32>
    %319 = math.tanh %318 : vector<8x32xf32>
    %cst_142 = arith.constant 1.000000e+00 : f32
    %320 = vector.broadcast %cst_142 : f32 to vector<8x32xf32>
    %321 = arith.subf %320, %313 : vector<8x32xf32>
    %322 = arith.mulf %321, %319 : vector<8x32xf32>
    %323 = arith.mulf %313, %287 : vector<8x32xf32>
    %324 = arith.addf %322, %323 : vector<8x32xf32>
    %325 = arith.index_cast %c7_i32 : i32 to index
    %c0_143 = arith.constant 0 : index
    %c0_144 = arith.constant 0 : index
    %326 = vector.load %arg25[%325, %c0_143, %c0_144] : memref<8x8x32xf32, #tpu.memory_space<vmem>>, vector<1x8x32xf32>
    %327 = vector.shape_cast %326 : vector<1x8x32xf32> to vector<8x32xf32>
    %328 = vector.shape_cast %324 : vector<8x32xf32> to vector<1x8x32xf32>
    tpu.vector_store %arg25[%325, %c0_143, %c0_144], %328 {strides = array<i32>} : memref<8x8x32xf32, #tpu.memory_space<vmem>>, vector<1x8x32xf32>,
    %c8_i32 = arith.constant 8 : i32
    %c0_145 = arith.constant 0 : index
    %c0_146 = arith.constant 0 : index
    %329 = vector.load %arg24[%c0_145, %c0_146] : memref<8x32xf32, #tpu.memory_space<vmem>>, vector<8x32xf32>
    tpu.vector_store %arg24[%c0_145, %c0_146], %324 {strides = array<i32>} : memref<8x32xf32, #tpu.memory_space<vmem>>, vector<8x32xf32>,
    %c0_i32_147 = arith.constant 0 : i32
    %330 = arith.cmpi eq, %arg1, %c0_i32_147 : i32
    %331 = arith.extui %330 : i1 to i32
    %c0_i32_148 = arith.constant 0 : i32
    %332 = arith.cmpi ne, %331, %c0_i32_148 : i32
    scf.if %332 {
      %c0_193 = arith.constant 0 : index
      %c0_194 = arith.constant 0 : index
      %417 = vector.load %arg23[%c0_193, %c0_194] : memref<8x32xf32, #tpu.memory_space<vmem>>, vector<8x32xf32>
      tpu.vector_store %arg23[%c0_193, %c0_194], %324 {strides = array<i32>} : memref<8x32xf32, #tpu.memory_space<vmem>>, vector<8x32xf32>,
    } else {
    }
    %c0_149 = arith.constant 0 : index
    %c0_150 = arith.constant 0 : index
    %c0_151 = arith.constant 0 : index
    %333 = vector.load %arg25[%c0_149, %c0_150, %c0_151] : memref<8x8x32xf32, #tpu.memory_space<vmem>>, vector<8x8x32xf32>
    %334 = vector.shape_cast %333 : vector<8x8x32xf32> to vector<64x32xf32>
    %335 = arith.truncf %334 : vector<64x32xf32> to vector<64x32xbf16>
    %c0_152 = arith.constant 0 : index
    %c0_153 = arith.constant 0 : index
    %336 = vector.load %arg12[%c0_152, %c0_153] : memref<32x32xbf16, #tpu.memory_space<vmem>>, vector<32x32xbf16>
    %cst_154 = arith.constant dense<0.000000e+00> : vector<64x32xf32>
    %337 = tpu.matmul %335, %336, %cst_154 {dimension_numbers = #tpu.dot_dimension_numbers<[1], [0], [0], [1], [0, 0, 1, 1], [], []>} : vector<64x32xbf16>, vector<32x32xbf16>, vector<64x32xf32> -> vector<64x32xf32>
    %c0_155 = arith.constant 0 : index
    %c0_156 = arith.constant 0 : index
    %338 = vector.load %arg13[%c0_155, %c0_156] : memref<1x32xf32, #tpu.memory_space<vmem>>, vector<1x32xf32>
    %339 = vector.broadcast %338 : vector<1x32xf32> to vector<64x32xf32>
    %340 = arith.addf %337, %339 : vector<64x32xf32>
    %c0_157 = arith.constant 0 : index
    %c0_158 = arith.constant 0 : index
    %341 = vector.load %arg14[%c0_157, %c0_158] : memref<1x32xf32, #tpu.memory_space<vmem>>, vector<1x32xf32>
    %c0_159 = arith.constant 0 : index
    %c0_160 = arith.constant 0 : index
    %342 = vector.load %arg15[%c0_159, %c0_160] : memref<1x32xf32, #tpu.memory_space<vmem>>, vector<1x32xf32>
    %cst_161 = arith.constant dense<0.000000e+00> : vector<64xf32>
    %343 = vector.multi_reduction <add>, %340, %cst_161 [1] : vector<64x32xf32> to vector<64xf32>
    %344 = vector.shape_cast %343 : vector<64xf32> to vector<64x1xf32>
    %cst_162 = arith.constant 3.200000e+01 : f32
    %345 = vector.broadcast %cst_162 : f32 to vector<64x1xf32>
    %346 = arith.divf %344, %345 : vector<64x1xf32>
    %347 = vector.broadcast %346 : vector<64x1xf32> to vector<64x32xf32>
    %348 = arith.subf %340, %347 : vector<64x32xf32>
    %349 = arith.mulf %348, %348 : vector<64x32xf32>
    %cst_163 = arith.constant dense<0.000000e+00> : vector<64xf32>
    %350 = vector.multi_reduction <add>, %349, %cst_163 [1] : vector<64x32xf32> to vector<64xf32>
    %351 = vector.shape_cast %350 : vector<64xf32> to vector<64x1xf32>
    %cst_164 = arith.constant 3.200000e+01 : f32
    %352 = vector.broadcast %cst_164 : f32 to vector<64x1xf32>
    %353 = arith.divf %351, %352 : vector<64x1xf32>
    %354 = vector.broadcast %346 : vector<64x1xf32> to vector<64x32xf32>
    %355 = arith.subf %340, %354 : vector<64x32xf32>
    %cst_165 = arith.constant 9.99999974E-6 : f32
    %356 = vector.broadcast %cst_165 : f32 to vector<64x1xf32>
    %357 = arith.addf %353, %356 : vector<64x1xf32>
    %358 = math.rsqrt %357 : vector<64x1xf32>
    %359 = vector.broadcast %358 : vector<64x1xf32> to vector<64x32xf32>
    %360 = arith.mulf %355, %359 : vector<64x32xf32>
    %361 = vector.broadcast %341 : vector<1x32xf32> to vector<64x32xf32>
    %362 = arith.mulf %360, %361 : vector<64x32xf32>
    %363 = vector.broadcast %342 : vector<1x32xf32> to vector<64x32xf32>
    %364 = arith.addf %362, %363 : vector<64x32xf32>
    %cst_166 = arith.constant 0.000000e+00 : f32
    %365 = vector.broadcast %cst_166 : f32 to vector<64x32xf32>
    %366 = arith.cmpf ogt, %364, %365 : vector<64x32xf32>
    %cst_167 = arith.constant 0.00999999977 : f32
    %367 = vector.broadcast %cst_167 : f32 to vector<64x32xf32>
    %368 = arith.mulf %367, %364 : vector<64x32xf32>
    %369 = arith.select %366, %364, %368 : vector<64x32xi1>, vector<64x32xf32>
    %370 = arith.truncf %369 : vector<64x32xf32> to vector<64x32xbf16>
    %c0_168 = arith.constant 0 : index
    %c0_169 = arith.constant 0 : index
    %371 = vector.load %arg16[%c0_168, %c0_169] : memref<32x16xbf16, #tpu.memory_space<vmem>>, vector<32x16xbf16>
    %cst_170 = arith.constant dense<0.000000e+00> : vector<64x16xf32>
    %372 = tpu.matmul %370, %371, %cst_170 {dimension_numbers = #tpu.dot_dimension_numbers<[1], [0], [0], [1], [0, 0, 1, 1], [], []>} : vector<64x32xbf16>, vector<32x16xbf16>, vector<64x16xf32> -> vector<64x16xf32>
    %c0_171 = arith.constant 0 : index
    %c0_172 = arith.constant 0 : index
    %373 = vector.load %arg17[%c0_171, %c0_172] : memref<1x16xf32, #tpu.memory_space<vmem>>, vector<1x16xf32>
    %374 = vector.broadcast %373 : vector<1x16xf32> to vector<64x16xf32>
    %375 = arith.addf %372, %374 : vector<64x16xf32>
    %c0_173 = arith.constant 0 : index
    %c0_174 = arith.constant 0 : index
    %376 = vector.load %arg18[%c0_173, %c0_174] : memref<1x16xf32, #tpu.memory_space<vmem>>, vector<1x16xf32>
    %c0_175 = arith.constant 0 : index
    %c0_176 = arith.constant 0 : index
    %377 = vector.load %arg19[%c0_175, %c0_176] : memref<1x16xf32, #tpu.memory_space<vmem>>, vector<1x16xf32>
    %cst_177 = arith.constant dense<0.000000e+00> : vector<64xf32>
    %378 = vector.multi_reduction <add>, %375, %cst_177 [1] : vector<64x16xf32> to vector<64xf32>
    %379 = vector.shape_cast %378 : vector<64xf32> to vector<64x1xf32>
    %cst_178 = arith.constant 1.600000e+01 : f32
    %380 = vector.broadcast %cst_178 : f32 to vector<64x1xf32>
    %381 = arith.divf %379, %380 : vector<64x1xf32>
    %382 = vector.broadcast %381 : vector<64x1xf32> to vector<64x16xf32>
    %383 = arith.subf %375, %382 : vector<64x16xf32>
    %384 = arith.mulf %383, %383 : vector<64x16xf32>
    %cst_179 = arith.constant dense<0.000000e+00> : vector<64xf32>
    %385 = vector.multi_reduction <add>, %384, %cst_179 [1] : vector<64x16xf32> to vector<64xf32>
    %386 = vector.shape_cast %385 : vector<64xf32> to vector<64x1xf32>
    %cst_180 = arith.constant 1.600000e+01 : f32
    %387 = vector.broadcast %cst_180 : f32 to vector<64x1xf32>
    %388 = arith.divf %386, %387 : vector<64x1xf32>
    %389 = vector.broadcast %381 : vector<64x1xf32> to vector<64x16xf32>
    %390 = arith.subf %375, %389 : vector<64x16xf32>
    %cst_181 = arith.constant 9.99999974E-6 : f32
    %391 = vector.broadcast %cst_181 : f32 to vector<64x1xf32>
    %392 = arith.addf %388, %391 : vector<64x1xf32>
    %393 = math.rsqrt %392 : vector<64x1xf32>
    %394 = vector.broadcast %393 : vector<64x1xf32> to vector<64x16xf32>
    %395 = arith.mulf %390, %394 : vector<64x16xf32>
    %396 = vector.broadcast %376 : vector<1x16xf32> to vector<64x16xf32>
    %397 = arith.mulf %395, %396 : vector<64x16xf32>
    %398 = vector.broadcast %377 : vector<1x16xf32> to vector<64x16xf32>
    %399 = arith.addf %397, %398 : vector<64x16xf32>
    %cst_182 = arith.constant 0.000000e+00 : f32
    %400 = vector.broadcast %cst_182 : f32 to vector<64x16xf32>
    %401 = arith.cmpf ogt, %399, %400 : vector<64x16xf32>
    %cst_183 = arith.constant 0.00999999977 : f32
    %402 = vector.broadcast %cst_183 : f32 to vector<64x16xf32>
    %403 = arith.mulf %402, %399 : vector<64x16xf32>
    %404 = arith.select %401, %399, %403 : vector<64x16xi1>, vector<64x16xf32>
    %405 = vector.shape_cast %404 : vector<64x16xf32> to vector<8x8x16xf32>
    %c0_184 = arith.constant 0 : index
    %c0_185 = arith.constant 0 : index
    %406 = vector.load %arg20[%c0_184, %c0_185] : memref<1x16xf32, #tpu.memory_space<vmem>>, vector<1x16xf32>
    %407 = vector.shape_cast %406 : vector<1x16xf32> to vector<1x1x16xf32>
    %408 = vector.broadcast %407 : vector<1x1x16xf32> to vector<8x8x16xf32>
    %409 = arith.mulf %405, %408 : vector<8x8x16xf32>
    %cst_186 = arith.constant dense<0.000000e+00> : vector<8x8xf32>
    %410 = vector.multi_reduction <add>, %409, %cst_186 [2] : vector<8x8x16xf32> to vector<8x8xf32>
    %c0_187 = arith.constant 0 : index
    %c0_188 = arith.constant 0 : index
    %411 = vector.load %arg21[%c0_187, %c0_188] : memref<1x1xf32, #tpu.memory_space<vmem>>, vector<1x1xf32>
    %412 = vector.broadcast %411 : vector<1x1xf32> to vector<8x8xf32>
    %413 = arith.addf %410, %412 : vector<8x8xf32>
    %c0_189 = arith.constant 0 : index
    %c0_190 = arith.constant 0 : index
    %c0_191 = arith.constant 0 : index
    %c0_192 = arith.constant 0 : index
    %414 = vector.load %arg22[%c0_189, %c0_190, %c0_191, %c0_192] : memref<1x1x8x8xf32, #tpu.memory_space<vmem>>, vector<1x1x8x8xf32>
    %415 = vector.shape_cast %414 : vector<1x1x8x8xf32> to vector<8x8xf32>
    %416 = vector.shape_cast %413 : vector<8x8xf32> to vector<1x1x8x8xf32>
    tpu.vector_store %arg22[%c0_189, %c0_190, %c0_191, %c0_192], %416 {strides = array<i32>} : memref<1x1x8x8xf32, #tpu.memory_space<vmem>>, vector<1x1x8x8xf32>,
    return
  }
  func.func @transform_0(%arg0: i32, %arg1: i32) -> (i32, i32, i32) {
    %c0_i32 = arith.constant 0 : i32
    %c0_i32_0 = arith.constant 0 : i32
    return %arg1, %arg0, %c0_i32 : i32, i32, i32
  }
  func.func @transform_1(%arg0: i32, %arg1: i32) -> (i32, i32, i32) {
    %c0_i32 = arith.constant 0 : i32
    %c0_i32_0 = arith.constant 0 : i32
    return %arg1, %arg0, %c0_i32 : i32, i32, i32
  }
  func.func @transform_2(%arg0: i32, %arg1: i32) -> (i32, i32) {
    %c0_i32 = arith.constant 0 : i32
    %c0_i32_0 = arith.constant 0 : i32
    return %arg0, %c0_i32 : i32, i32
  }
  func.func @transform_3(%arg0: i32, %arg1: i32) -> (i32, i32) {
    %c0_i32 = arith.constant 0 : i32
    %c0_i32_0 = arith.constant 0 : i32
    %c0_i32_1 = arith.constant 0 : i32
    return %c0_i32, %c0_i32_0 : i32, i32
  }
  func.func @transform_4(%arg0: i32, %arg1: i32) -> (i32, i32) {
    %c0_i32 = arith.constant 0 : i32
    %c0_i32_0 = arith.constant 0 : i32
    %c0_i32_1 = arith.constant 0 : i32
    return %c0_i32, %c0_i32_0 : i32, i32
  }
  func.func @transform_5(%arg0: i32, %arg1: i32) -> (i32, i32) {
    %c0_i32 = arith.constant 0 : i32
    %c0_i32_0 = arith.constant 0 : i32
    %c0_i32_1 = arith.constant 0 : i32
    return %c0_i32, %c0_i32_0 : i32, i32
  }
  func.func @transform_6(%arg0: i32, %arg1: i32) -> (i32, i32) {
    %c0_i32 = arith.constant 0 : i32
    %c0_i32_0 = arith.constant 0 : i32
    %c0_i32_1 = arith.constant 0 : i32
    return %c0_i32, %c0_i32_0 : i32, i32
  }
  func.func @transform_7(%arg0: i32, %arg1: i32) -> (i32, i32) {
    %c0_i32 = arith.constant 0 : i32
    %c0_i32_0 = arith.constant 0 : i32
    %c0_i32_1 = arith.constant 0 : i32
    return %c0_i32, %c0_i32_0 : i32, i32
  }
  func.func @transform_8(%arg0: i32, %arg1: i32) -> (i32, i32) {
    %c0_i32 = arith.constant 0 : i32
    %c0_i32_0 = arith.constant 0 : i32
    %c0_i32_1 = arith.constant 0 : i32
    return %c0_i32, %c0_i32_0 : i32, i32
  }
  func.func @transform_9(%arg0: i32, %arg1: i32) -> (i32, i32) {
    %c0_i32 = arith.constant 0 : i32
    %c0_i32_0 = arith.constant 0 : i32
    %c0_i32_1 = arith.constant 0 : i32
    return %c0_i32, %c0_i32_0 : i32, i32
  }
  func.func @transform_10(%arg0: i32, %arg1: i32) -> (i32, i32) {
    %c0_i32 = arith.constant 0 : i32
    %c0_i32_0 = arith.constant 0 : i32
    %c0_i32_1 = arith.constant 0 : i32
    return %c0_i32, %c0_i32_0 : i32, i32
  }
  func.func @transform_11(%arg0: i32, %arg1: i32) -> (i32, i32) {
    %c0_i32 = arith.constant 0 : i32
    %c0_i32_0 = arith.constant 0 : i32
    %c0_i32_1 = arith.constant 0 : i32
    return %c0_i32, %c0_i32_0 : i32, i32
  }
  func.func @transform_12(%arg0: i32, %arg1: i32) -> (i32, i32) {
    %c0_i32 = arith.constant 0 : i32
    %c0_i32_0 = arith.constant 0 : i32
    %c0_i32_1 = arith.constant 0 : i32
    return %c0_i32, %c0_i32_0 : i32, i32
  }
  func.func @transform_13(%arg0: i32, %arg1: i32) -> (i32, i32) {
    %c0_i32 = arith.constant 0 : i32
    %c0_i32_0 = arith.constant 0 : i32
    %c0_i32_1 = arith.constant 0 : i32
    return %c0_i32, %c0_i32_0 : i32, i32
  }
  func.func @transform_14(%arg0: i32, %arg1: i32) -> (i32, i32) {
    %c0_i32 = arith.constant 0 : i32
    %c0_i32_0 = arith.constant 0 : i32
    %c0_i32_1 = arith.constant 0 : i32
    return %c0_i32, %c0_i32_0 : i32, i32
  }
  func.func @transform_15(%arg0: i32, %arg1: i32) -> (i32, i32) {
    %c0_i32 = arith.constant 0 : i32
    %c0_i32_0 = arith.constant 0 : i32
    %c0_i32_1 = arith.constant 0 : i32
    return %c0_i32, %c0_i32_0 : i32, i32
  }
  func.func @transform_16(%arg0: i32, %arg1: i32) -> (i32, i32) {
    %c0_i32 = arith.constant 0 : i32
    %c0_i32_0 = arith.constant 0 : i32
    %c0_i32_1 = arith.constant 0 : i32
    return %c0_i32, %c0_i32_0 : i32, i32
  }
  func.func @transform_17(%arg0: i32, %arg1: i32) -> (i32, i32) {
    %c0_i32 = arith.constant 0 : i32
    %c0_i32_0 = arith.constant 0 : i32
    %c0_i32_1 = arith.constant 0 : i32
    return %c0_i32, %c0_i32_0 : i32, i32
  }
  func.func @transform_18(%arg0: i32, %arg1: i32) -> (i32, i32) {
    %c0_i32 = arith.constant 0 : i32
    %c0_i32_0 = arith.constant 0 : i32
    %c0_i32_1 = arith.constant 0 : i32
    return %c0_i32, %c0_i32_0 : i32, i32
  }
  func.func @transform_19(%arg0: i32, %arg1: i32) -> (i32, i32) {
    %c0_i32 = arith.constant 0 : i32
    %c0_i32_0 = arith.constant 0 : i32
    %c0_i32_1 = arith.constant 0 : i32
    return %c0_i32, %c0_i32_0 : i32, i32
  }
  func.func @transform_20(%arg0: i32, %arg1: i32) -> (i32, i32, i32, i32) {
    %c0_i32 = arith.constant 0 : i32
    %c0_i32_0 = arith.constant 0 : i32
    %c0_i32_1 = arith.constant 0 : i32
    return %arg0, %arg1, %c0_i32, %c0_i32_0 : i32, i32, i32, i32
  }
  func.func @transform_21(%arg0: i32, %arg1: i32) -> (i32, i32) {
    %c0_i32 = arith.constant 0 : i32
    %c0_i32_0 = arith.constant 0 : i32
    return %arg0, %c0_i32 : i32, i32
  }
}

</mosaic_0001>

<llo_original>
// kernel: gru_critic_forward.1
$region0: #{gru_critic_forward.1}
  #allocation0 [shape = 'u32[]', space=smem, size = 0x4, offset = 0x4, fixed_abs, tag = 'smem constant byte address 0x4 - core index']
  #allocation1 [shape = 'u32[144,128]{1,0:T(1,128)}', space=vmem, size = 0x12000, scoped, tag = 'internal scratch']
  #allocation2 [shape = 'f32[8,32]{1,0:T(8,128)}', space=vmem, size = 0x1000, scoped, tag = 'scratch operand']
  #allocation3 [shape = 'f32[8,8,32]{2,1,0:T(8,128)}', space=vmem, size = 0x8000, scoped, tag = 'scratch operand']
  #allocation4 [shape = 'f32[8,8,32]{2,1,0:T(8,128)}', space=vmem, size = 0x8000, scoped, tag = 'scratch operand']
  #allocation5 [shape = 'f32[8,8,32]{2,1,0:T(8,128)}', space=vmem, size = 0x8000, scoped, tag = 'scratch operand']
  #allocation6 [shape = 'f32[8,8,32]{2,1,0:T(8,128)}', space=vmem, size = 0x8000, scoped, tag = 'scratch operand']
  #allocation7 [shape = 'f32[1,1]{1,0:T(1,128)S(1)}', space=vmem, size = 0x200, scoped, tag = 'scoped memory for gru_critic_forward.1']
  %s0 = inlined_call_operand.vmem [shape: f32[8,8,6], index: 0, kind: input, shape index: {}]
  %s1 = inlined_call_operand.vmem [shape: f32[8,8,2], index: 1, kind: input, shape index: {}]
  %s2 = inlined_call_operand.vmem [shape: f32[8,32], index: 2, kind: input, shape index: {}]
  %s3 = inlined_call_operand.vmem [shape: bf16[6,96], index: 3, kind: input, shape index: {}]
  %s4 = inlined_call_operand.vmem [shape: bf16[2,96], index: 4, kind: input, shape index: {}]
  %s5 = inlined_call_operand.vmem [shape: f32[1,96], index: 5, kind: input, shape index: {}]
  %s6 = inlined_call_operand.vmem [shape: f32[32,32], index: 6, kind: input, shape index: {}]
  %s7 = inlined_call_operand.vmem [shape: f32[32,32], index: 7, kind: input, shape index: {}]
  %s8 = inlined_call_operand.vmem [shape: f32[32,32], index: 8, kind: input, shape index: {}]
  %s9 = inlined_call_operand.vmem [shape: f32[1,32], index: 9, kind: input, shape index: {}]
  %s10 = inlined_call_operand.vmem [shape: bf16[32,32], index: 10, kind: input, shape index: {}]
  %s11 = inlined_call_operand.vmem [shape: f32[1,32], index: 11, kind: input, shape index: {}]
  %s12 = inlined_call_operand.vmem [shape: f32[1,32], index: 12, kind: input, shape index: {}]
  %s13 = inlined_call_operand.vmem [shape: f32[1,32], index: 13, kind: input, shape index: {}]
  %s14 = inlined_call_operand.vmem [shape: bf16[32,16], index: 14, kind: input, shape index: {}]
  %s15 = inlined_call_operand.vmem [shape: f32[1,16], index: 15, kind: input, shape index: {}]
  %s16 = inlined_call_operand.vmem [shape: f32[1,16], index: 16, kind: input, shape index: {}]
  %s17 = inlined_call_operand.vmem [shape: f32[1,16], index: 17, kind: input, shape index: {}]
  %s18 = inlined_call_operand.vmem [shape: f32[1,16], index: 18, kind: input, shape index: {}]
  %s19 = inlined_call_operand.<no memory space> [shape: f32[1,1], index: 19, kind: input, shape index: {}]
  %s20 = inlined_call_operand.vmem [shape: f32[1,1,8,8], index: 20, kind: output, shape index: {0}]
  %s21 = inlined_call_operand.vmem [shape: f32[8,32], index: 21, kind: output, shape index: {1}]
  %22 = xla_tuple %s20, %s21
  %s23 = sld [smem:[#allocation0]]
  $region106: #{gru_critic_forward.1} parent=0
    _
  %s25 = ssub.s32 1, %s23
  %s26 = scalar_select 0, %s25, %s23
  %v27 = vstv %s19
  %28 = vst [vmem:[#allocation7] sm:$0x1] %v27
  // Predicated region
  $region2: #{gru_critic_forward.1} parent=0 // pred_check
    _
  $region3: #{gru_critic_forward.1} parent=0 // pred_check_branch
    %30 = sbr.rel (0) target = $region5
  $region4: #{gru_critic_forward.1} parent=0 // pred_region
    _
  $region5: #{gru_critic_forward.1} parent=0 // pred_fallthru
    _
  // Predicated region
  $region6: #{gru_critic_forward.1} parent=0 // pred_check
    _
  $region7: #{gru_critic_forward.1} parent=0 // pred_check_branch
    %32 = sbr.rel (0) target = $region9
  $region8: #{gru_critic_forward.1} parent=0 // pred_region
    _
  $region9: #{gru_critic_forward.1} parent=0 // pred_fallthru
    _
  // Predicated region
  $region10: #{gru_critic_forward.1} parent=0 // pred_check
    _
  $region11: #{gru_critic_forward.1} parent=0 // pred_check_branch
    %34 = sbr.rel (0) target = $region13
  $region12: #{gru_critic_forward.1} parent=0 // pred_region
    _
  $region13: #{gru_critic_forward.1} parent=0 // pred_fallthru
    _
  // Predicated region
  $region14: #{gru_critic_forward.1} parent=0 // pred_check
    _
  $region15: #{gru_critic_forward.1} parent=0 // pred_check_branch
    %36 = sbr.rel (0) target = $region17
  $region16: #{gru_critic_forward.1} parent=0 // pred_region
    _
  $region17: #{gru_critic_forward.1} parent=0 // pred_fallthru
    _
  // Predicated region
  $region18: #{gru_critic_forward.1} parent=0 // pred_check
    _
  $region19: #{gru_critic_forward.1} parent=0 // pred_check_branch
    %38 = sbr.rel (0) target = $region21
  $region20: #{gru_critic_forward.1} parent=0 // pred_region
    _
  $region21: #{gru_critic_forward.1} parent=0 // pred_fallthru
    _
  // Predicated region
  $region22: #{gru_critic_forward.1} parent=0 // pred_check
    _
  $region23: #{gru_critic_forward.1} parent=0 // pred_check_branch
    %40 = sbr.rel (0) target = $region25
  $region24: #{gru_critic_forward.1} parent=0 // pred_region
    _
  $region25: #{gru_critic_forward.1} parent=0 // pred_fallthru
    _
  // Predicated region
  $region26: #{gru_critic_forward.1} parent=0 // pred_check
    _
  $region27: #{gru_critic_forward.1} parent=0 // pred_check_branch
    %42 = sbr.rel (0) target = $region29
  $region28: #{gru_critic_forward.1} parent=0 // pred_region
    _
  $region29: #{gru_critic_forward.1} parent=0 // pred_fallthru
    _
  // Predicated region
  $region30: #{gru_critic_forward.1} parent=0 // pred_check
    _
  $region31: #{gru_critic_forward.1} parent=0 // pred_check_branch
    %44 = sbr.rel (0) target = $region33
  $region32: #{gru_critic_forward.1} parent=0 // pred_region
    _
  $region33: #{gru_critic_forward.1} parent=0 // pred_fallthru
    _
  // Predicated region
  $region34: #{gru_critic_forward.1} parent=0 // pred_check
    _
  $region35: #{gru_critic_forward.1} parent=0 // pred_check_branch
    %46 = sbr.rel (0) target = $region37
  $region36: #{gru_critic_forward.1} parent=0 // pred_region
    _
  $region37: #{gru_critic_forward.1} parent=0 // pred_fallthru
    _
  // Predicated region
  $region38: #{gru_critic_forward.1} parent=0 // pred_check
    _
  $region39: #{gru_critic_forward.1} parent=0 // pred_check_branch
    %48 = sbr.rel (0) target = $region41
  $region40: #{gru_critic_forward.1} parent=0 // pred_region
    _
  $region41: #{gru_critic_forward.1} parent=0 // pred_fallthru
    _
  // Predicated region
  $region42: #{gru_critic_forward.1} parent=0 // pred_check
    _
  $region43: #{gru_critic_forward.1} parent=0 // pred_check_branch
    %50 = sbr.rel (0) target = $region45
  $region44: #{gru_critic_forward.1} parent=0 // pred_region
    _
  $region45: #{gru_critic_forward.1} parent=0 // pred_fallthru
    _
  // Predicated region
  $region46: #{gru_critic_forward.1} parent=0 // pred_check
    _
  $region47: #{gru_critic_forward.1} parent=0 // pred_check_branch
    %52 = sbr.rel (0) target = $region49
  $region48: #{gru_critic_forward.1} parent=0 // pred_region
    _
  $region49: #{gru_critic_forward.1} parent=0 // pred_fallthru
    _
  // Predicated region
  $region50: #{gru_critic_forward.1} parent=0 // pred_check
    _
  $region51: #{gru_critic_forward.1} parent=0 // pred_check_branch
    %54 = sbr.rel (0) target = $region53
  $region52: #{gru_critic_forward.1} parent=0 // pred_region
    _
  $region53: #{gru_critic_forward.1} parent=0 // pred_fallthru
    _
  // Predicated region
  $region54: #{gru_critic_forward.1} parent=0 // pred_check
    _
  $region55: #{gru_critic_forward.1} parent=0 // pred_check_branch
    %56 = sbr.rel (0) target = $region57
  $region56: #{gru_critic_forward.1} parent=0 // pred_region
    _
  $region57: #{gru_critic_forward.1} parent=0 // pred_fallthru
    _
  // Predicated region
  $region58: #{gru_critic_forward.1} parent=0 // pred_check
    _
  $region59: #{gru_critic_forward.1} parent=0 // pred_check_branch
    %58 = sbr.rel (0) target = $region61
  $region60: #{gru_critic_forward.1} parent=0 // pred_region
    _
  $region61: #{gru_critic_forward.1} parent=0 // pred_fallthru
    _
  // Predicated region
  $region62: #{gru_critic_forward.1} parent=0 // pred_check
    _
  $region63: #{gru_critic_forward.1} parent=0 // pred_check_branch
    %60 = sbr.rel (0) target = $region65
  $region64: #{gru_critic_forward.1} parent=0 // pred_region
    _
  $region65: #{gru_critic_forward.1} parent=0 // pred_fallthru
    _
  // Predicated region
  $region66: #{gru_critic_forward.1} parent=0 // pred_check
    _
  $region67: #{gru_critic_forward.1} parent=0 // pred_check_branch
    %62 = sbr.rel (0) target = $region69
  $region68: #{gru_critic_forward.1} parent=0 // pred_region
    _
  $region69: #{gru_critic_forward.1} parent=0 // pred_fallthru
    _
  // Predicated region
  $region70: #{gru_critic_forward.1} parent=0 // pred_check
    _
  $region71: #{gru_critic_forward.1} parent=0 // pred_check_branch
    %64 = sbr.rel (0) target = $region73
  $region72: #{gru_critic_forward.1} parent=0 // pred_region
    _
  $region73: #{gru_critic_forward.1} parent=0 // pred_fallthru
    _
  // Predicated region
  $region74: #{gru_critic_forward.1} parent=0 // pred_check
    _
  $region75: #{gru_critic_forward.1} parent=0 // pred_check_branch
    %66 = sbr.rel (0) target = $region77
  $region76: #{gru_critic_forward.1} parent=0 // pred_region
    _
  $region77: #{gru_critic_forward.1} parent=0 // pred_fallthru
    _
  // Predicated region
  $region78: #{gru_critic_forward.1} parent=0 // pred_check
    _
  $region79: #{gru_critic_forward.1} parent=0 // pred_check_branch
    %68 = sbr.rel (0) target = $region81
  $region80: #{gru_critic_forward.1} parent=0 // pred_region
    _
  $region81: #{gru_critic_forward.1} parent=0 // pred_fallthru
    _
  %p70 = scmp.eq.s32.totalorder 0, 0
  // Predicated region
  $region82: #{gru_critic_forward.1} parent=0 // pred_check
    %p71 = pneg %p70
  $region83: #{gru_critic_forward.1} parent=0 // pred_check_branch
    %73 = sbr.rel (%p71) target = $region85
  $region84: #{gru_critic_forward.1} parent=0 // pred_region
    %v74 = vld [vmem:[%s2] sm:$0xff]
    %vm75 = vcmask 261120
    %76 = vst.msk [vmem:[#allocation2] sm:$0xff] %vm75, %v74
  $region85: #{gru_critic_forward.1} parent=0 // pred_fallthru
    _
  %v77 = vld [vmem:[%s0] sm:$0xff]
  %v78 = vld [vmem:[%s0 + $0x8] sm:$0xff]
  %v79 = vld [vmem:[%s0 + $0x10] sm:$0xff]
  %v80 = vld [vmem:[%s0 + $0x18] sm:$0xff]
  %v81 = vld [vmem:[%s0 + $0x20] sm:$0xff]
  %v82 = vld [vmem:[%s0 + $0x28] sm:$0xff]
  %v83 = vld [vmem:[%s0 + $0x30] sm:$0xff]
  %v84 = vld [vmem:[%s0 + $0x38] sm:$0xff]
  %v85 = vpack.c.bf16 %v77, %v77
  %v86 = vpack.c.bf16 %v78, %v78
  %v87 = vpack.c.bf16 %v79, %v79
  %v88 = vpack.c.bf16 %v80, %v80
  %v89 = vpack.c.bf16 %v81, %v81
  %v90 = vpack.c.bf16 %v82, %v82
  %v91 = vpack.c.bf16 %v83, %v83
  %v92 = vpack.c.bf16 %v84, %v84
  %v93 = vld [vmem:[%s1] sm:$0xff]
  %v94 = vld [vmem:[%s1 + $0x8] sm:$0xff]
  %v95 = vld [vmem:[%s1 + $0x10] sm:$0xff]
  %v96 = vld [vmem:[%s1 + $0x18] sm:$0xff]
  %v97 = vld [vmem:[%s1 + $0x20] sm:$0xff]
  %v98 = vld [vmem:[%s1 + $0x28] sm:$0xff]
  %v99 = vld [vmem:[%s1 + $0x30] sm:$0xff]
  %v100 = vld [vmem:[%s1 + $0x38] sm:$0xff]
  %v101 = vpack.c.bf16 %v93, %v93
  %v102 = vpack.c.bf16 %v94, %v94
  %v103 = vpack.c.bf16 %v95, %v95
  %v104 = vpack.c.bf16 %v96, %v96
  %v105 = vpack.c.bf16 %v97, %v97
  %v106 = vpack.c.bf16 %v98, %v98
  %v107 = vpack.c.bf16 %v99, %v99
  %v108 = vpack.c.bf16 %v100, %v100
  %v109 = vld [vmem:[%s3] sm:$0x7]
  %v110 = vld [vmem:[%s4] sm:$0x1]
  %v119 = vunpack.c.l.b16 %v101
  %v120 = vunpack.c.l.b16 %v102
  %v121 = vunpack.c.l.b16 %v103
  %v122 = vunpack.c.l.b16 %v104
  %v123 = vunpack.c.l.b16 %v105
  %v124 = vunpack.c.l.b16 %v106
  %v125 = vunpack.c.l.b16 %v107
  %v126 = vunpack.c.l.b16 %v108
  %v127 = vpack.c.b16 %v120, %v119
  %v128 = vpack.c.b16 %v122, %v121
  %v129 = vpack.c.b16 %v124, %v123
  %v130 = vpack.c.b16 %v126, %v125
  %vm131 = vcmask 15360
  %v133 = vsel %vm131, %v127, 0
  %v136 = vsel %vm131, %v128, 0
  %v139 = vsel %vm131, %v129, 0
  %v142 = vsel %vm131, %v130, 0
  %vm144 = vcmask 1040384
  %v146 = vsel %vm144, %v110, 0
  %148 = vmatprep.subr.bf16.mxu0 0
  %149 = vmatpush1.bf16.msra.mxu0 %v146
  %150 = vmatprep.subr.bf16.mxu0 0
  %151 = vmatpush1.bf16.msra.mxu0 0
  %152 = vmatprep.subr.bf16.mxu0 0
  %153 = vmatpush1.bf16.msra.mxu0 0
  %154 = vmatprep.subr.bf16.mxu0 0
  %155 = vmatpush1.bf16.msra.mxu0 0
  %156 = vmatprep.subr.bf16.mxu0 0
  %157 = vmatpush1.bf16.msra.mxu0 0
  %158 = vmatprep.subr.bf16.mxu0 0
  %159 = vmatpush1.bf16.msra.mxu0 0
  %160 = vmatprep.subr.bf16.mxu0 0
  %161 = vmatpush1.bf16.msra.mxu0 0
  %162 = vmatprep.subr.bf16.mxu0 0
  %163 = vmatpush1.bf16.msra.mxu0 0
  %164 = vmatprep.subr.bf16.mxu0 0
  %165 = vmatpush1.bf16.msra.mxu0 0
  %166 = vmatprep.subr.bf16.mxu0 0
  %167 = vmatpush1.bf16.msra.mxu0 0
  %168 = vmatprep.subr.bf16.mxu0 0
  %169 = vmatpush1.bf16.msra.mxu0 0
  %170 = vmatprep.subr.bf16.mxu0 0
  %171 = vmatpush1.bf16.msra.mxu0 0
  %172 = vmatprep.subr.bf16.mxu0 0
  %173 = vmatpush1.bf16.msra.mxu0 0
  %174 = vmatprep.subr.bf16.mxu0 0
  %175 = vmatpush1.bf16.msra.mxu0 0
  %176 = vmatprep.subr.bf16.mxu0 0
  %177 = vmatpush1.bf16.msra.mxu0 0
  %178 = vmatprep.subr.bf16.mxu0 0
  %179 = vmatpush1.bf16.msra.mxu0 0
  %180 = vmatprep.mubr.bf16.mxu0 0
  %181 = vmatmul.mubr.bf16.gmra.mrb[0].mxu0 %v133
  %v182 = vpop.f32.mrb[0].mxu0
  %v183 = vadd.f32 0.0, %v182
  %v184 = vpop.f32.mrb[0].mxu0
  %v185 = vpop.f32.mrb[0].mxu0
  %v186 = vadd.f32 0.0, %v185
  %v187 = vpop.f32.mrb[0].mxu0
  %188 = vmatprep.mubr.bf16.mxu0 0
  %189 = vmatmul.mubr.bf16.gmra.mrb[0].mxu0 %v136
  %v190 = vpop.f32.mrb[0].mxu0
  %v191 = vadd.f32 0.0, %v190
  %v192 = vpop.f32.mrb[0].mxu0
  %v193 = vpop.f32.mrb[0].mxu0
  %v194 = vadd.f32 0.0, %v193
  %v195 = vpop.f32.mrb[0].mxu0
  %196 = vmatprep.mubr.bf16.mxu0 0
  %197 = vmatmul.mubr.bf16.gmra.mrb[0].mxu0 %v139
  %v198 = vpop.f32.mrb[0].mxu0
  %v199 = vadd.f32 0.0, %v198
  %v200 = vpop.f32.mrb[0].mxu0
  %v201 = vpop.f32.mrb[0].mxu0
  %v202 = vadd.f32 0.0, %v201
  %v203 = vpop.f32.mrb[0].mxu0
  %204 = vmatprep.mubr.bf16.mxu0 0
  %205 = vmatmul.mubr.bf16.gmra.mrb[0].mxu0 %v142
  %v206 = vpop.f32.mrb[0].mxu0
  %v207 = vadd.f32 0.0, %v206
  %v208 = vpop.f32.mrb[0].mxu0
  %v209 = vpop.f32.mrb[0].mxu0
  %v210 = vadd.f32 0.0, %v209
  %v211 = vpop.f32.mrb[0].mxu0
  %212 = vdwg.mxu0
  %v221 = vunpack.c.l.b16 %v85
  %v222 = vunpack.c.l.b16 %v86
  %v223 = vunpack.c.l.b16 %v87
  %v224 = vunpack.c.l.b16 %v88
  %v225 = vunpack.c.l.b16 %v89
  %v226 = vunpack.c.l.b16 %v90
  %v227 = vunpack.c.l.b16 %v91
  %v228 = vunpack.c.l.b16 %v92
  %v229 = vpack.c.b16 %v222, %v221
  %v230 = vpack.c.b16 %v224, %v223
  %v231 = vpack.c.b16 %v226, %v225
  %v232 = vpack.c.b16 %v228, %v227
  %vm233 = vcmask 48128
  %v235 = vsel %vm233, %v229, 0
  %v238 = vsel %vm233, %v230, 0
  %v241 = vsel %vm233, %v231, 0
  %v244 = vsel %vm233, %v232, 0
  %vm246 = vcmask 1042432
  %v248 = vsel %vm246, %v109, 0
  %250 = vmatprep.subr.bf16.mxu0 0
  %251 = vmatpush1.bf16.msra.mxu0 %v248
  %252 = vmatprep.subr.bf16.mxu0 0
  %253 = vmatpush1.bf16.msra.mxu0 0
  %254 = vmatprep.subr.bf16.mxu0 0
  %255 = vmatpush1.bf16.msra.mxu0 0
  %256 = vmatprep.subr.bf16.mxu0 0
  %257 = vmatpush1.bf16.msra.mxu0 0
  %258 = vmatprep.subr.bf16.mxu0 0
  %259 = vmatpush1.bf16.msra.mxu0 0
  %260 = vmatprep.subr.bf16.mxu0 0
  %261 = vmatpush1.bf16.msra.mxu0 0
  %262 = vmatprep.subr.bf16.mxu0 0
  %263 = vmatpush1.bf16.msra.mxu0 0
  %264 = vmatprep.subr.bf16.mxu0 0
  %265 = vmatpush1.bf16.msra.mxu0 0
  %266 = vmatprep.subr.bf16.mxu0 0
  %267 = vmatpush1.bf16.msra.mxu0 0
  %268 = vmatprep.subr.bf16.mxu0 0
  %269 = vmatpush1.bf16.msra.mxu0 0
  %270 = vmatprep.subr.bf16.mxu0 0
  %271 = vmatpush1.bf16.msra.mxu0 0
  %272 = vmatprep.subr.bf16.mxu0 0
  %273 = vmatpush1.bf16.msra.mxu0 0
  %274 = vmatprep.subr.bf16.mxu0 0
  %275 = vmatpush1.bf16.msra.mxu0 0
  %276 = vmatprep.subr.bf16.mxu0 0
  %277 = vmatpush1.bf16.msra.mxu0 0
  %278 = vmatprep.subr.bf16.mxu0 0
  %279 = vmatpush1.bf16.msra.mxu0 0
  %280 = vmatprep.subr.bf16.mxu0 0
  %281 = vmatpush1.bf16.msra.mxu0 0
  %282 = vmatprep.mubr.bf16.mxu0 0
  %283 = vmatmul.mubr.bf16.gmra.mrb[0].mxu0 %v235
  %v284 = vpop.f32.mrb[0].mxu0
  %v285 = vadd.f32 %v183, %v284
  %v286 = vpop.f32.mrb[0].mxu0
  %v287 = vpop.f32.mrb[0].mxu0
  %v288 = vadd.f32 %v186, %v287
  %v289 = vpop.f32.mrb[0].mxu0
  %290 = vmatprep.mubr.bf16.mxu0 0
  %291 = vmatmul.mubr.bf16.gmra.mrb[0].mxu0 %v238
  %v292 = vpop.f32.mrb[0].mxu0
  %v293 = vadd.f32 %v191, %v292
  %v294 = vpop.f32.mrb[0].mxu0
  %v295 = vpop.f32.mrb[0].mxu0
  %v296 = vadd.f32 %v194, %v295
  %v297 = vpop.f32.mrb[0].mxu0
  %298 = vmatprep.mubr.bf16.mxu0 0
  %299 = vmatmul.mubr.bf16.gmra.mrb[0].mxu0 %v241
  %v300 = vpop.f32.mrb[0].mxu0
  %v301 = vadd.f32 %v199, %v300
  %v302 = vpop.f32.mrb[0].mxu0
  %v303 = vpop.f32.mrb[0].mxu0
  %v304 = vadd.f32 %v202, %v303
  %v305 = vpop.f32.mrb[0].mxu0
  %306 = vmatprep.mubr.bf16.mxu0 0
  %307 = vmatmul.mubr.bf16.gmra.mrb[0].mxu0 %v244
  %v308 = vpop.f32.mrb[0].mxu0
  %v309 = vadd.f32 %v207, %v308
  %v310 = vpop.f32.mrb[0].mxu0
  %v311 = vpop.f32.mrb[0].mxu0
  %v312 = vadd.f32 %v210, %v311
  %v313 = vpop.f32.mrb[0].mxu0
  %314 = vdwg.mxu0
  %v315 = vld [vmem:[%s5] sm:$0x1]
  %v317 = vlaneseq
  %v318 = vshrl.u32 %v317, 7
  %v319 = vsub.s32 0, %v318
  %v320 = vrot.slane %v315, %v319
  %v322 = vadd.f32 %v285, %v320
  %v323 = vadd.f32 %v288, %v320
  %v324 = vadd.f32 %v293, %v320
  %v325 = vadd.f32 %v296, %v320
  %v326 = vadd.f32 %v301, %v320
  %v327 = vadd.f32 %v304, %v320
  %v328 = vadd.f32 %v309, %v320
  %v329 = vadd.f32 %v312, %v320
  %vm330 = vcmask 261120
  %331 = vst.msk [vmem:[#allocation4] sm:$0xff] %vm330, %v322
  %332 = vst.msk [vmem:[#allocation4 + $0x8] sm:$0xff] %vm330, %v323
  %333 = vst.msk [vmem:[#allocation4 + $0x10] sm:$0xff] %vm330, %v324
  %334 = vst.msk [vmem:[#allocation4 + $0x18] sm:$0xff] %vm330, %v325
  %335 = vst.msk [vmem:[#allocation4 + $0x20] sm:$0xff] %vm330, %v326
  %336 = vst.msk [vmem:[#allocation4 + $0x28] sm:$0xff] %vm330, %v327
  %337 = vst.msk [vmem:[#allocation4 + $0x30] sm:$0xff] %vm330, %v328
  %338 = vst.msk [vmem:[#allocation4 + $0x38] sm:$0xff] %vm330, %v329
  %347 = vrot.lane.b32.xlu0 %v322, 96
  %v348 = vpop.permute.xlu0 %347
  %349 = vrot.lane.b32.xlu0 %v323, 96
  %v350 = vpop.permute.xlu0 %349
  %351 = vrot.lane.b32.xlu0 %v324, 96
  %v352 = vpop.permute.xlu0 %351
  %353 = vrot.lane.b32.xlu0 %v325, 96
  %v354 = vpop.permute.xlu0 %353
  %355 = vrot.lane.b32.xlu0 %v326, 96
  %v356 = vpop.permute.xlu0 %355
  %357 = vrot.lane.b32.xlu0 %v327, 96
  %v358 = vpop.permute.xlu0 %357
  %359 = vrot.lane.b32.xlu0 %v328, 96
  %v360 = vpop.permute.xlu0 %359
  %361 = vrot.lane.b32.xlu0 %v329, 96
  %v362 = vpop.permute.xlu0 %361
  %371 = vst.msk [vmem:[#allocation5] sm:$0xff] %vm330, %v348
  %372 = vst.msk [vmem:[#allocation5 + $0x8] sm:$0xff] %vm330, %v350
  %373 = vst.msk [vmem:[#allocation5 + $0x10] sm:$0xff] %vm330, %v352
  %374 = vst.msk [vmem:[#allocation5 + $0x18] sm:$0xff] %vm330, %v354
  %375 = vst.msk [vmem:[#allocation5 + $0x20] sm:$0xff] %vm330, %v356
  %376 = vst.msk [vmem:[#allocation5 + $0x28] sm:$0xff] %vm330, %v358
  %377 = vst.msk [vmem:[#allocation5 + $0x30] sm:$0xff] %vm330, %v360
  %378 = vst.msk [vmem:[#allocation5 + $0x38] sm:$0xff] %vm330, %v362
  %379 = vrot.lane.b32.xlu0 %v322, 64
  %v380 = vpop.permute.xlu0 %379
  %381 = vrot.lane.b32.xlu0 %v323, 64
  %v382 = vpop.permute.xlu0 %381
  %383 = vrot.lane.b32.xlu0 %v324, 64
  %v384 = vpop.permute.xlu0 %383
  %385 = vrot.lane.b32.xlu0 %v325, 64
  %v386 = vpop.permute.xlu0 %385
  %387 = vrot.lane.b32.xlu0 %v326, 64
  %v388 = vpop.permute.xlu0 %387
  %389 = vrot.lane.b32.xlu0 %v327, 64
  %v390 = vpop.permute.xlu0 %389
  %391 = vrot.lane.b32.xlu0 %v328, 64
  %v392 = vpop.permute.xlu0 %391
  %393 = vrot.lane.b32.xlu0 %v329, 64
  %v394 = vpop.permute.xlu0 %393
  %403 = vst.msk [vmem:[#allocation6] sm:$0xff] %vm330, %v380
  %404 = vst.msk [vmem:[#allocation6 + $0x8] sm:$0xff] %vm330, %v382
  %405 = vst.msk [vmem:[#allocation6 + $0x10] sm:$0xff] %vm330, %v384
  %406 = vst.msk [vmem:[#allocation6 + $0x18] sm:$0xff] %vm330, %v386
  %407 = vst.msk [vmem:[#allocation6 + $0x20] sm:$0xff] %vm330, %v388
  %408 = vst.msk [vmem:[#allocation6 + $0x28] sm:$0xff] %vm330, %v390
  %409 = vst.msk [vmem:[#allocation6 + $0x30] sm:$0xff] %vm330, %v392
  %410 = vst.msk [vmem:[#allocation6 + $0x38] sm:$0xff] %vm330, %v394
  %v411 = vld [vmem:[%s6] sm:$0xff]
  %v412 = vld [vmem:[%s6 + $0x8] sm:$0xff]
  %v413 = vld [vmem:[%s6 + $0x10] sm:$0xff]
  %v414 = vld [vmem:[%s6 + $0x18] sm:$0xff]
  %v415 = vld [vmem:[%s7] sm:$0xff]
  %v416 = vld [vmem:[%s7 + $0x8] sm:$0xff]
  %v417 = vld [vmem:[%s7 + $0x10] sm:$0xff]
  %v418 = vld [vmem:[%s7 + $0x18] sm:$0xff]
  %v419 = vld [vmem:[%s8] sm:$0xff]
  %v420 = vld [vmem:[%s8 + $0x8] sm:$0xff]
  %v421 = vld [vmem:[%s8 + $0x10] sm:$0xff]
  %v422 = vld [vmem:[%s8 + $0x18] sm:$0xff]
  %v423 = vld [vmem:[%s9] sm:$0x1]
  %v425 = vlaneseq
  %v426 = vshrl.u32 %v425, 7
  %v427 = vsub.s32 0, %v426
  %v428 = vrot.slane %v423, %v427
  %v430 = vld [vmem:[#allocation2] sm:$0xff]
  %v432 = vsel %vm330, %v430, 0
  %434 = vmatprep.subr.mxu0 0.0
  %435 = vmatpush1.msra.mxu0 %v411
  %436 = vmatprep.subr.mxu0 0.0
  %437 = vmatpush1.msra.mxu0 %v412
  %438 = vmatprep.subr.mxu0 0.0
  %439 = vmatpush1.msra.mxu0 %v413
  %440 = vmatprep.subr.mxu0 0.0
  %441 = vmatpush1.msra.mxu0 %v414
  %442 = vmatprep.subr.mxu0 0.0
  %443 = vmatpush1.msra.mxu0 0.0
  %444 = vmatprep.subr.mxu0 0.0
  %445 = vmatpush1.msra.mxu0 0.0
  %446 = vmatprep.subr.mxu0 0.0
  %447 = vmatpush1.msra.mxu0 0.0
  %448 = vmatprep.subr.mxu0 0.0
  %449 = vmatpush1.msra.mxu0 0.0
  %450 = vmatprep.subr.mxu0 0.0
  %451 = vmatpush1.msra.mxu0 0.0
  %452 = vmatprep.subr.mxu0 0.0
  %453 = vmatpush1.msra.mxu0 0.0
  %454 = vmatprep.subr.mxu0 0.0
  %455 = vmatpush1.msra.mxu0 0.0
  %456 = vmatprep.subr.mxu0 0.0
  %457 = vmatpush1.msra.mxu0 0.0
  %458 = vmatprep.subr.mxu0 0.0
  %459 = vmatpush1.msra.mxu0 0.0
  %460 = vmatprep.subr.mxu0 0.0
  %461 = vmatpush1.msra.mxu0 0.0
  %462 = vmatprep.subr.mxu0 0.0
  %463 = vmatpush1.msra.mxu0 0.0
  %464 = vmatprep.subr.mxu0 0.0
  %465 = vmatpush1.msra.mxu0 0.0
  %466 = vmatprep.subr.mxu0 0.0
  %467 = vmatpush1.msra.mxu0 0.0
  %468 = vmatprep.subr.mxu0 0.0
  %469 = vmatpush1.msra.mxu0 0.0
  %470 = vmatprep.subr.mxu0 0.0
  %471 = vmatpush1.msra.mxu0 0.0
  %472 = vmatprep.subr.mxu0 0.0
  %473 = vmatpush1.msra.mxu0 0.0
  %474 = vmatprep.subr.mxu0 0.0
  %475 = vmatpush1.msra.mxu0 0.0
  %476 = vmatprep.subr.mxu0 0.0
  %477 = vmatpush1.msra.mxu0 0.0
  %478 = vmatprep.subr.mxu0 0.0
  %479 = vmatpush1.msra.mxu0 0.0
  %480 = vmatprep.subr.mxu0 0.0
  %481 = vmatpush1.msra.mxu0 0.0
  %482 = vmatprep.subr.mxu0 0.0
  %483 = vmatpush1.msra.mxu0 0.0
  %484 = vmatprep.subr.mxu0 0.0
  %485 = vmatpush1.msra.mxu0 0.0
  %486 = vmatprep.subr.mxu0 0.0
  %487 = vmatpush1.msra.mxu0 0.0
  %488 = vmatprep.subr.mxu0 0.0
  %489 = vmatpush1.msra.mxu0 0.0
  %490 = vmatprep.subr.mxu0 0.0
  %491 = vmatpush1.msra.mxu0 0.0
  %492 = vmatprep.subr.mxu0 0.0
  %493 = vmatpush1.msra.mxu0 0.0
  %494 = vmatprep.subr.mxu0 0.0
  %495 = vmatpush1.msra.mxu0 0.0
  %496 = vmatprep.subr.mxu0 0.0
  %497 = vmatpush1.msra.mxu0 0.0
  %498 = vmatprep.mubr.f32.mxu0 0.0
  %499 = vmatmul.mubr.f32.gmra.mrb[0].mxu0 %v432
  %v500 = vpop.f32.mrb[0].mxu0
  %v501 = vadd.f32 0.0, %v500
  %v502 = vpop.f32.mrb[0].mxu0
  %503 = vdwg.mxu0
  %504 = vmatprep.subr.mxu0 0.0
  %505 = vmatpush1.msra.mxu0 %v415
  %506 = vmatprep.subr.mxu0 0.0
  %507 = vmatpush1.msra.mxu0 %v416
  %508 = vmatprep.subr.mxu0 0.0
  %509 = vmatpush1.msra.mxu0 %v417
  %510 = vmatprep.subr.mxu0 0.0
  %511 = vmatpush1.msra.mxu0 %v418
  %512 = vmatprep.subr.mxu0 0.0
  %513 = vmatpush1.msra.mxu0 0.0
  %514 = vmatprep.subr.mxu0 0.0
  %515 = vmatpush1.msra.mxu0 0.0
  %516 = vmatprep.subr.mxu0 0.0
  %517 = vmatpush1.msra.mxu0 0.0
  %518 = vmatprep.subr.mxu0 0.0
  %519 = vmatpush1.msra.mxu0 0.0
  %520 = vmatprep.subr.mxu0 0.0
  %521 = vmatpush1.msra.mxu0 0.0
  %522 = vmatprep.subr.mxu0 0.0
  %523 = vmatpush1.msra.mxu0 0.0
  %524 = vmatprep.subr.mxu0 0.0
  %525 = vmatpush1.msra.mxu0 0.0
  %526 = vmatprep.subr.mxu0 0.0
  %527 = vmatpush1.msra.mxu0 0.0
  %528 = vmatprep.subr.mxu0 0.0
  %529 = vmatpush1.msra.mxu0 0.0
  %530 = vmatprep.subr.mxu0 0.0
  %531 = vmatpush1.msra.mxu0 0.0
  %532 = vmatprep.subr.mxu0 0.0
  %533 = vmatpush1.msra.mxu0 0.0
  %534 = vmatprep.subr.mxu0 0.0
  %535 = vmatpush1.msra.mxu0 0.0
  %536 = vmatprep.subr.mxu0 0.0
  %537 = vmatpush1.msra.mxu0 0.0
  %538 = vmatprep.subr.mxu0 0.0
  %539 = vmatpush1.msra.mxu0 0.0
  %540 = vmatprep.subr.mxu0 0.0
  %541 = vmatpush1.msra.mxu0 0.0
  %542 = vmatprep.subr.mxu0 0.0
  %543 = vmatpush1.msra.mxu0 0.0
  %544 = vmatprep.subr.mxu0 0.0
  %545 = vmatpush1.msra.mxu0 0.0
  %546 = vmatprep.subr.mxu0 0.0
  %547 = vmatpush1.msra.mxu0 0.0
  %548 = vmatprep.subr.mxu0 0.0
  %549 = vmatpush1.msra.mxu0 0.0
  %550 = vmatprep.subr.mxu0 0.0
  %551 = vmatpush1.msra.mxu0 0.0
  %552 = vmatprep.subr.mxu0 0.0
  %553 = vmatpush1.msra.mxu0 0.0
  %554 = vmatprep.subr.mxu0 0.0
  %555 = vmatpush1.msra.mxu0 0.0
  %556 = vmatprep.subr.mxu0 0.0
  %557 = vmatpush1.msra.mxu0 0.0
  %558 = vmatprep.subr.mxu0 0.0
  %559 = vmatpush1.msra.mxu0 0.0
  %560 = vmatprep.subr.mxu0 0.0
  %561 = vmatpush1.msra.mxu0 0.0
  %562 = vmatprep.subr.mxu0 0.0
  %563 = vmatpush1.msra.mxu0 0.0
  %564 = vmatprep.subr.mxu0 0.0
  %565 = vmatpush1.msra.mxu0 0.0
  %566 = vmatprep.subr.mxu0 0.0
  %567 = vmatpush1.msra.mxu0 0.0
  %568 = vmatprep.mubr.f32.mxu0 0.0
  %569 = vmatmul.mubr.f32.gmra.mrb[0].mxu0 %v432
  %v570 = vpop.f32.mrb[0].mxu0
  %v571 = vadd.f32 0.0, %v570
  %v572 = vpop.f32.mrb[0].mxu0
  %573 = vdwg.mxu0
  %574 = vmatprep.subr.mxu0 0.0
  %575 = vmatpush1.msra.mxu0 %v419
  %576 = vmatprep.subr.mxu0 0.0
  %577 = vmatpush1.msra.mxu0 %v420
  %578 = vmatprep.subr.mxu0 0.0
  %579 = vmatpush1.msra.mxu0 %v421
  %580 = vmatprep.subr.mxu0 0.0
  %581 = vmatpush1.msra.mxu0 %v422
  %582 = vmatprep.subr.mxu0 0.0
  %583 = vmatpush1.msra.mxu0 0.0
  %584 = vmatprep.subr.mxu0 0.0
  %585 = vmatpush1.msra.mxu0 0.0
  %586 = vmatprep.subr.mxu0 0.0
  %587 = vmatpush1.msra.mxu0 0.0
  %588 = vmatprep.subr.mxu0 0.0
  %589 = vmatpush1.msra.mxu0 0.0
  %590 = vmatprep.subr.mxu0 0.0
  %591 = vmatpush1.msra.mxu0 0.0
  %592 = vmatprep.subr.mxu0 0.0
  %593 = vmatpush1.msra.mxu0 0.0
  %594 = vmatprep.subr.mxu0 0.0
  %595 = vmatpush1.msra.mxu0 0.0
  %596 = vmatprep.subr.mxu0 0.0
  %597 = vmatpush1.msra.mxu0 0.0
  %598 = vmatprep.subr.mxu0 0.0
  %599 = vmatpush1.msra.mxu0 0.0
  %600 = vmatprep.subr.mxu0 0.0
  %601 = vmatpush1.msra.mxu0 0.0
  %602 = vmatprep.subr.mxu0 0.0
  %603 = vmatpush1.msra.mxu0 0.0
  %604 = vmatprep.subr.mxu0 0.0
  %605 = vmatpush1.msra.mxu0 0.0
  %606 = vmatprep.subr.mxu0 0.0
  %607 = vmatpush1.msra.mxu0 0.0
  %608 = vmatprep.subr.mxu0 0.0
  %609 = vmatpush1.msra.mxu0 0.0
  %610 = vmatprep.subr.mxu0 0.0
  %611 = vmatpush1.msra.mxu0 0.0
  %612 = vmatprep.subr.mxu0 0.0
  %613 = vmatpush1.msra.mxu0 0.0
  %614 = vmatprep.subr.mxu0 0.0
  %615 = vmatpush1.msra.mxu0 0.0
  %616 = vmatprep.subr.mxu0 0.0
  %617 = vmatpush1.msra.mxu0 0.0
  %618 = vmatprep.subr.mxu0 0.0
  %619 = vmatpush1.msra.mxu0 0.0
  %620 = vmatprep.subr.mxu0 0.0
  %621 = vmatpush1.msra.mxu0 0.0
  %622 = vmatprep.subr.mxu0 0.0
  %623 = vmatpush1.msra.mxu0 0.0
  %624 = vmatprep.subr.mxu0 0.0
  %625 = vmatpush1.msra.mxu0 0.0
  %626 = vmatprep.subr.mxu0 0.0
  %627 = vmatpush1.msra.mxu0 0.0
  %628 = vmatprep.subr.mxu0 0.0
  %629 = vmatpush1.msra.mxu0 0.0
  %630 = vmatprep.subr.mxu0 0.0
  %631 = vmatpush1.msra.mxu0 0.0
  %632 = vmatprep.subr.mxu0 0.0
  %633 = vmatpush1.msra.mxu0 0.0
  %634 = vmatprep.subr.mxu0 0.0
  %635 = vmatpush1.msra.mxu0 0.0
  %636 = vmatprep.subr.mxu0 0.0
  %637 = vmatpush1.msra.mxu0 0.0
  %638 = vmatprep.mubr.f32.mxu0 0.0
  %639 = vmatmul.mubr.f32.gmra.mrb[0].mxu0 %v432
  %v640 = vpop.f32.mrb[0].mxu0
  %v641 = vadd.f32 %v428, %v640
  %v642 = vpop.f32.mrb[0].mxu0
  %643 = vdwg.mxu0
  %v644 = vld [vmem:[#allocation4] sm:$0xff]
  %v645 = vadd.f32 %v644, %v501
  %v646 = vxor.u32 %v645, 2147483648
  %v647 = vmul.f32 %v646, 1.442695
  %v648 = vpow.pop %v647
  %v649 = vadd.f32 %v648, 1.0
  %v650 = vrcp.pop %v649
  %v651 = vmul.f32 1.0, %v650
  %v652 = vld [vmem:[#allocation5] sm:$0xff]
  %v653 = vadd.f32 %v652, %v571
  %v654 = vxor.u32 %v653, 2147483648
  %v655 = vmul.f32 %v654, 1.442695
  %v656 = vpow.pop %v655
  %v657 = vadd.f32 %v656, 1.0
  %v658 = vrcp.pop %v657
  %v659 = vmul.f32 1.0, %v658
  %v660 = vld [vmem:[#allocation6] sm:$0xff]
  %v661 = vmul.f32 %v651, %v641
  %v662 = vadd.f32 %v660, %v661
  %v663 = vtanh.pop %v662
  %v664 = vsub.f32 1.0, %v659
  %v665 = vmul.f32 %v664, %v663
  %v666 = vmul.f32 %v659, %v430
  %v667 = vadd.f32 %v665, %v666
  %668 = vst.msk [vmem:[#allocation3] sm:$0xff] %vm330, %v667
  %v670 = vsel %vm330, %v667, 0
  %672 = vmatprep.subr.mxu0 0.0
  %673 = vmatpush1.msra.mxu0 %v411
  %674 = vmatprep.subr.mxu0 0.0
  %675 = vmatpush1.msra.mxu0 %v412
  %676 = vmatprep.subr.mxu0 0.0
  %677 = vmatpush1.msra.mxu0 %v413
  %678 = vmatprep.subr.mxu0 0.0
  %679 = vmatpush1.msra.mxu0 %v414
  %680 = vmatprep.subr.mxu0 0.0
  %681 = vmatpush1.msra.mxu0 0.0
  %682 = vmatprep.subr.mxu0 0.0
  %683 = vmatpush1.msra.mxu0 0.0
  %684 = vmatprep.subr.mxu0 0.0
  %685 = vmatpush1.msra.mxu0 0.0
  %686 = vmatprep.subr.mxu0 0.0
  %687 = vmatpush1.msra.mxu0 0.0
  %688 = vmatprep.subr.mxu0 0.0
  %689 = vmatpush1.msra.mxu0 0.0
  %690 = vmatprep.subr.mxu0 0.0
  %691 = vmatpush1.msra.mxu0 0.0
  %692 = vmatprep.subr.mxu0 0.0
  %693 = vmatpush1.msra.mxu0 0.0
  %694 = vmatprep.subr.mxu0 0.0
  %695 = vmatpush1.msra.mxu0 0.0
  %696 = vmatprep.subr.mxu0 0.0
  %697 = vmatpush1.msra.mxu0 0.0
  %698 = vmatprep.subr.mxu0 0.0
  %699 = vmatpush1.msra.mxu0 0.0
  %700 = vmatprep.subr.mxu0 0.0
  %701 = vmatpush1.msra.mxu0 0.0
  %702 = vmatprep.subr.mxu0 0.0
  %703 = vmatpush1.msra.mxu0 0.0
  %704 = vmatprep.subr.mxu0 0.0
  %705 = vmatpush1.msra.mxu0 0.0
  %706 = vmatprep.subr.mxu0 0.0
  %707 = vmatpush1.msra.mxu0 0.0
  %708 = vmatprep.subr.mxu0 0.0
  %709 = vmatpush1.msra.mxu0 0.0
  %710 = vmatprep.subr.mxu0 0.0
  %711 = vmatpush1.msra.mxu0 0.0
  %712 = vmatprep.subr.mxu0 0.0
  %713 = vmatpush1.msra.mxu0 0.0
  %714 = vmatprep.subr.mxu0 0.0
  %715 = vmatpush1.msra.mxu0 0.0
  %716 = vmatprep.subr.mxu0 0.0
  %717 = vmatpush1.msra.mxu0 0.0
  %718 = vmatprep.subr.mxu0 0.0
  %719 = vmatpush1.msra.mxu0 0.0
  %720 = vmatprep.subr.mxu0 0.0
  %721 = vmatpush1.msra.mxu0 0.0
  %722 = vmatprep.subr.mxu0 0.0
  %723 = vmatpush1.msra.mxu0 0.0
  %724 = vmatprep.subr.mxu0 0.0
  %725 = vmatpush1.msra.mxu0 0.0
  %726 = vmatprep.subr.mxu0 0.0
  %727 = vmatpush1.msra.mxu0 0.0
  %728 = vmatprep.subr.mxu0 0.0
  %729 = vmatpush1.msra.mxu0 0.0
  %730 = vmatprep.subr.mxu0 0.0
  %731 = vmatpush1.msra.mxu0 0.0
  %732 = vmatprep.subr.mxu0 0.0
  %733 = vmatpush1.msra.mxu0 0.0
  %734 = vmatprep.subr.mxu0 0.0
  %735 = vmatpush1.msra.mxu0 0.0
  %736 = vmatprep.mubr.f32.mxu0 0.0
  %737 = vmatmul.mubr.f32.gmra.mrb[0].mxu0 %v670
  %v738 = vpop.f32.mrb[0].mxu0
  %v739 = vadd.f32 0.0, %v738
  %v740 = vpop.f32.mrb[0].mxu0
  %741 = vdwg.mxu0
  %742 = vmatprep.subr.mxu0 0.0
  %743 = vmatpush1.msra.mxu0 %v415
  %744 = vmatprep.subr.mxu0 0.0
  %745 = vmatpush1.msra.mxu0 %v416
  %746 = vmatprep.subr.mxu0 0.0
  %747 = vmatpush1.msra.mxu0 %v417
  %748 = vmatprep.subr.mxu0 0.0
  %749 = vmatpush1.msra.mxu0 %v418
  %750 = vmatprep.subr.mxu0 0.0
  %751 = vmatpush1.msra.mxu0 0.0
  %752 = vmatprep.subr.mxu0 0.0
  %753 = vmatpush1.msra.mxu0 0.0
  %754 = vmatprep.subr.mxu0 0.0
  %755 = vmatpush1.msra.mxu0 0.0
  %756 = vmatprep.subr.mxu0 0.0
  %757 = vmatpush1.msra.mxu0 0.0
  %758 = vmatprep.subr.mxu0 0.0
  %759 = vmatpush1.msra.mxu0 0.0
  %760 = vmatprep.subr.mxu0 0.0
  %761 = vmatpush1.msra.mxu0 0.0
  %762 = vmatprep.subr.mxu0 0.0
  %763 = vmatpush1.msra.mxu0 0.0
  %764 = vmatprep.subr.mxu0 0.0
  %765 = vmatpush1.msra.mxu0 0.0
  %766 = vmatprep.subr.mxu0 0.0
  %767 = vmatpush1.msra.mxu0 0.0
  %768 = vmatprep.subr.mxu0 0.0
  %769 = vmatpush1.msra.mxu0 0.0
  %770 = vmatprep.subr.mxu0 0.0
  %771 = vmatpush1.msra.mxu0 0.0
  %772 = vmatprep.subr.mxu0 0.0
  %773 = vmatpush1.msra.mxu0 0.0
  %774 = vmatprep.subr.mxu0 0.0
  %775 = vmatpush1.msra.mxu0 0.0
  %776 = vmatprep.subr.mxu0 0.0
  %777 = vmatpush1.msra.mxu0 0.0
  %778 = vmatprep.subr.mxu0 0.0
  %779 = vmatpush1.msra.mxu0 0.0
  %780 = vmatprep.subr.mxu0 0.0
  %781 = vmatpush1.msra.mxu0 0.0
  %782 = vmatprep.subr.mxu0 0.0
  %783 = vmatpush1.msra.mxu0 0.0
  %784 = vmatprep.subr.mxu0 0.0
  %785 = vmatpush1.msra.mxu0 0.0
  %786 = vmatprep.subr.mxu0 0.0
  %787 = vmatpush1.msra.mxu0 0.0
  %788 = vmatprep.subr.mxu0 0.0
  %789 = vmatpush1.msra.mxu0 0.0
  %790 = vmatprep.subr.mxu0 0.0
  %791 = vmatpush1.msra.mxu0 0.0
  %792 = vmatprep.subr.mxu0 0.0
  %793 = vmatpush1.msra.mxu0 0.0
  %794 = vmatprep.subr.mxu0 0.0
  %795 = vmatpush1.msra.mxu0 0.0
  %796 = vmatprep.subr.mxu0 0.0
  %797 = vmatpush1.msra.mxu0 0.0
  %798 = vmatprep.subr.mxu0 0.0
  %799 = vmatpush1.msra.mxu0 0.0
  %800 = vmatprep.subr.mxu0 0.0
  %801 = vmatpush1.msra.mxu0 0.0
  %802 = vmatprep.subr.mxu0 0.0
  %803 = vmatpush1.msra.mxu0 0.0
  %804 = vmatprep.subr.mxu0 0.0
  %805 = vmatpush1.msra.mxu0 0.0
  %806 = vmatprep.mubr.f32.mxu0 0.0
  %807 = vmatmul.mubr.f32.gmra.mrb[0].mxu0 %v670
  %v808 = vpop.f32.mrb[0].mxu0
  %v809 = vadd.f32 0.0, %v808
  %v810 = vpop.f32.mrb[0].mxu0
  %811 = vdwg.mxu0
  %812 = vmatprep.subr.mxu0 0.0
  %813 = vmatpush1.msra.mxu0 %v419
  %814 = vmatprep.subr.mxu0 0.0
  %815 = vmatpush1.msra.mxu0 %v420
  %816 = vmatprep.subr.mxu0 0.0
  %817 = vmatpush1.msra.mxu0 %v421
  %818 = vmatprep.subr.mxu0 0.0
  %819 = vmatpush1.msra.mxu0 %v422
  %820 = vmatprep.subr.mxu0 0.0
  %821 = vmatpush1.msra.mxu0 0.0
  %822 = vmatprep.subr.mxu0 0.0
  %823 = vmatpush1.msra.mxu0 0.0
  %824 = vmatprep.subr.mxu0 0.0
  %825 = vmatpush1.msra.mxu0 0.0
  %826 = vmatprep.subr.mxu0 0.0
  %827 = vmatpush1.msra.mxu0 0.0
  %828 = vmatprep.subr.mxu0 0.0
  %829 = vmatpush1.msra.mxu0 0.0
  %830 = vmatprep.subr.mxu0 0.0
  %831 = vmatpush1.msra.mxu0 0.0
  %832 = vmatprep.subr.mxu0 0.0
  %833 = vmatpush1.msra.mxu0 0.0
  %834 = vmatprep.subr.mxu0 0.0
  %835 = vmatpush1.msra.mxu0 0.0
  %836 = vmatprep.subr.mxu0 0.0
  %837 = vmatpush1.msra.mxu0 0.0
  %838 = vmatprep.subr.mxu0 0.0
  %839 = vmatpush1.msra.mxu0 0.0
  %840 = vmatprep.subr.mxu0 0.0
  %841 = vmatpush1.msra.mxu0 0.0
  %842 = vmatprep.subr.mxu0 0.0
  %843 = vmatpush1.msra.mxu0 0.0
  %844 = vmatprep.subr.mxu0 0.0
  %845 = vmatpush1.msra.mxu0 0.0
  %846 = vmatprep.subr.mxu0 0.0
  %847 = vmatpush1.msra.mxu0 0.0
  %848 = vmatprep.subr.mxu0 0.0
  %849 = vmatpush1.msra.mxu0 0.0
  %850 = vmatprep.subr.mxu0 0.0
  %851 = vmatpush1.msra.mxu0 0.0
  %852 = vmatprep.subr.mxu0 0.0
  %853 = vmatpush1.msra.mxu0 0.0
  %854 = vmatprep.subr.mxu0 0.0
  %855 = vmatpush1.msra.mxu0 0.0
  %856 = vmatprep.subr.mxu0 0.0
  %857 = vmatpush1.msra.mxu0 0.0
  %858 = vmatprep.subr.mxu0 0.0
  %859 = vmatpush1.msra.mxu0 0.0
  %860 = vmatprep.subr.mxu0 0.0
  %861 = vmatpush1.msra.mxu0 0.0
  %862 = vmatprep.subr.mxu0 0.0
  %863 = vmatpush1.msra.mxu0 0.0
  %864 = vmatprep.subr.mxu0 0.0
  %865 = vmatpush1.msra.mxu0 0.0
  %866 = vmatprep.subr.mxu0 0.0
  %867 = vmatpush1.msra.mxu0 0.0
  %868 = vmatprep.subr.mxu0 0.0
  %869 = vmatpush1.msra.mxu0 0.0
  %870 = vmatprep.subr.mxu0 0.0
  %871 = vmatpush1.msra.mxu0 0.0
  %872 = vmatprep.subr.mxu0 0.0
  %873 = vmatpush1.msra.mxu0 0.0
  %874 = vmatprep.subr.mxu0 0.0
  %875 = vmatpush1.msra.mxu0 0.0
  %876 = vmatprep.mubr.f32.mxu0 0.0
  %877 = vmatmul.mubr.f32.gmra.mrb[0].mxu0 %v670
  %v878 = vpop.f32.mrb[0].mxu0
  %v879 = vadd.f32 %v428, %v878
  %v880 = vpop.f32.mrb[0].mxu0
  %881 = vdwg.mxu0
  %s882 = scalar_lea.vmem [#allocation4], 8
  %v883 = vld [vmem:[%s882] sm:$0xff]
  %v884 = vadd.f32 %v883, %v739
  %v885 = vxor.u32 %v884, 2147483648
  %v886 = vmul.f32 %v885, 1.442695
  %v887 = vpow.pop %v886
  %v888 = vadd.f32 %v887, 1.0
  %v889 = vrcp.pop %v888
  %v890 = vmul.f32 1.0, %v889
  %s891 = scalar_lea.vmem [#allocation5], 8
  %v892 = vld [vmem:[%s891] sm:$0xff]
  %v893 = vadd.f32 %v892, %v809
  %v894 = vxor.u32 %v893, 2147483648
  %v895 = vmul.f32 %v894, 1.442695
  %v896 = vpow.pop %v895
  %v897 = vadd.f32 %v896, 1.0
  %v898 = vrcp.pop %v897
  %v899 = vmul.f32 1.0, %v898
  %s900 = scalar_lea.vmem [#allocation6], 8
  %v901 = vld [vmem:[%s900] sm:$0xff]
  %v902 = vmul.f32 %v890, %v879
  %v903 = vadd.f32 %v901, %v902
  %v904 = vtanh.pop %v903
  %v905 = vsub.f32 1.0, %v899
  %v906 = vmul.f32 %v905, %v904
  %v907 = vmul.f32 %v899, %v667
  %v908 = vadd.f32 %v906, %v907
  %s909 = scalar_lea.vmem [#allocation3], 8
  %910 = vst.msk [vmem:[%s909] sm:$0xff] %vm330, %v908
  %v912 = vsel %vm330, %v908, 0
  %914 = vmatprep.subr.mxu0 0.0
  %915 = vmatpush1.msra.mxu0 %v411
  %916 = vmatprep.subr.mxu0 0.0
  %917 = vmatpush1.msra.mxu0 %v412
  %918 = vmatprep.subr.mxu0 0.0
  %919 = vmatpush1.msra.mxu0 %v413
  %920 = vmatprep.subr.mxu0 0.0
  %921 = vmatpush1.msra.mxu0 %v414
  %922 = vmatprep.subr.mxu0 0.0
  %923 = vmatpush1.msra.mxu0 0.0
  %924 = vmatprep.subr.mxu0 0.0
  %925 = vmatpush1.msra.mxu0 0.0
  %926 = vmatprep.subr.mxu0 0.0
  %927 = vmatpush1.msra.mxu0 0.0
  %928 = vmatprep.subr.mxu0 0.0
  %929 = vmatpush1.msra.mxu0 0.0
  %930 = vmatprep.subr.mxu0 0.0
  %931 = vmatpush1.msra.mxu0 0.0
  %932 = vmatprep.subr.mxu0 0.0
  %933 = vmatpush1.msra.mxu0 0.0
  %934 = vmatprep.subr.mxu0 0.0
  %935 = vmatpush1.msra.mxu0 0.0
  %936 = vmatprep.subr.mxu0 0.0
  %937 = vmatpush1.msra.mxu0 0.0
  %938 = vmatprep.subr.mxu0 0.0
  %939 = vmatpush1.msra.mxu0 0.0
  %940 = vmatprep.subr.mxu0 0.0
  %941 = vmatpush1.msra.mxu0 0.0
  %942 = vmatprep.subr.mxu0 0.0
  %943 = vmatpush1.msra.mxu0 0.0
  %944 = vmatprep.subr.mxu0 0.0
  %945 = vmatpush1.msra.mxu0 0.0
  %946 = vmatprep.subr.mxu0 0.0
  %947 = vmatpush1.msra.mxu0 0.0
  %948 = vmatprep.subr.mxu0 0.0
  %949 = vmatpush1.msra.mxu0 0.0
  %950 = vmatprep.subr.mxu0 0.0
  %951 = vmatpush1.msra.mxu0 0.0
  %952 = vmatprep.subr.mxu0 0.0
  %953 = vmatpush1.msra.mxu0 0.0
  %954 = vmatprep.subr.mxu0 0.0
  %955 = vmatpush1.msra.mxu0 0.0
  %956 = vmatprep.subr.mxu0 0.0
  %957 = vmatpush1.msra.mxu0 0.0
  %958 = vmatprep.subr.mxu0 0.0
  %959 = vmatpush1.msra.mxu0 0.0
  %960 = vmatprep.subr.mxu0 0.0
  %961 = vmatpush1.msra.mxu0 0.0
  %962 = vmatprep.subr.mxu0 0.0
  %963 = vmatpush1.msra.mxu0 0.0
  %964 = vmatprep.subr.mxu0 0.0
  %965 = vmatpush1.msra.mxu0 0.0
  %966 = vmatprep.subr.mxu0 0.0
  %967 = vmatpush1.msra.mxu0 0.0
  %968 = vmatprep.subr.mxu0 0.0
  %969 = vmatpush1.msra.mxu0 0.0
  %970 = vmatprep.subr.mxu0 0.0
  %971 = vmatpush1.msra.mxu0 0.0
  %972 = vmatprep.subr.mxu0 0.0
  %973 = vmatpush1.msra.mxu0 0.0
  %974 = vmatprep.subr.mxu0 0.0
  %975 = vmatpush1.msra.mxu0 0.0
  %976 = vmatprep.subr.mxu0 0.0
  %977 = vmatpush1.msra.mxu0 0.0
  %978 = vmatprep.mubr.f32.mxu0 0.0
  %979 = vmatmul.mubr.f32.gmra.mrb[0].mxu0 %v912
  %v980 = vpop.f32.mrb[0].mxu0
  %v981 = vadd.f32 0.0, %v980
  %v982 = vpop.f32.mrb[0].mxu0
  %983 = vdwg.mxu0
  %984 = vmatprep.subr.mxu0 0.0
  %985 = vmatpush1.msra.mxu0 %v415
  %986 = vmatprep.subr.mxu0 0.0
  %987 = vmatpush1.msra.mxu0 %v416
  %988 = vmatprep.subr.mxu0 0.0
  %989 = vmatpush1.msra.mxu0 %v417
  %990 = vmatprep.subr.mxu0 0.0
  %991 = vmatpush1.msra.mxu0 %v418
  %992 = vmatprep.subr.mxu0 0.0
  %993 = vmatpush1.msra.mxu0 0.0
  %994 = vmatprep.subr.mxu0 0.0
  %995 = vmatpush1.msra.mxu0 0.0
  %996 = vmatprep.subr.mxu0 0.0
  %997 = vmatpush1.msra.mxu0 0.0
  %998 = vmatprep.subr.mxu0 0.0
  %999 = vmatpush1.msra.mxu0 0.0
  %1000 = vmatprep.subr.mxu0 0.0
  %1001 = vmatpush1.msra.mxu0 0.0
  %1002 = vmatprep.subr.mxu0 0.0
  %1003 = vmatpush1.msra.mxu0 0.0
  %1004 = vmatprep.subr.mxu0 0.0
  %1005 = vmatpush1.msra.mxu0 0.0
  %1006 = vmatprep.subr.mxu0 0.0
  %1007 = vmatpush1.msra.mxu0 0.0
  %1008 = vmatprep.subr.mxu0 0.0
  %1009 = vmatpush1.msra.mxu0 0.0
  %1010 = vmatprep.subr.mxu0 0.0
  %1011 = vmatpush1.msra.mxu0 0.0
  %1012 = vmatprep.subr.mxu0 0.0
  %1013 = vmatpush1.msra.mxu0 0.0
  %1014 = vmatprep.subr.mxu0 0.0
  %1015 = vmatpush1.msra.mxu0 0.0
  %1016 = vmatprep.subr.mxu0 0.0
  %1017 = vmatpush1.msra.mxu0 0.0
  %1018 = vmatprep.subr.mxu0 0.0
  %1019 = vmatpush1.msra.mxu0 0.0
  %1020 = vmatprep.subr.mxu0 0.0
  %1021 = vmatpush1.msra.mxu0 0.0
  %1022 = vmatprep.subr.mxu0 0.0
  %1023 = vmatpush1.msra.mxu0 0.0
  %1024 = vmatprep.subr.mxu0 0.0
  %1025 = vmatpush1.msra.mxu0 0.0
  %1026 = vmatprep.subr.mxu0 0.0
  %1027 = vmatpush1.msra.mxu0 0.0
  %1028 = vmatprep.subr.mxu0 0.0
  %1029 = vmatpush1.msra.mxu0 0.0
  %1030 = vmatprep.subr.mxu0 0.0
  %1031 = vmatpush1.msra.mxu0 0.0
  %1032 = vmatprep.subr.mxu0 0.0
  %1033 = vmatpush1.msra.mxu0 0.0
  %1034 = vmatprep.subr.mxu0 0.0
  %1035 = vmatpush1.msra.mxu0 0.0
  %1036 = vmatprep.subr.mxu0 0.0
  %1037 = vmatpush1.msra.mxu0 0.0
  %1038 = vmatprep.subr.mxu0 0.0
  %1039 = vmatpush1.msra.mxu0 0.0
  %1040 = vmatprep.subr.mxu0 0.0
  %1041 = vmatpush1.msra.mxu0 0.0
  %1042 = vmatprep.subr.mxu0 0.0
  %1043 = vmatpush1.msra.mxu0 0.0
  %1044 = vmatprep.subr.mxu0 0.0
  %1045 = vmatpush1.msra.mxu0 0.0
  %1046 = vmatprep.subr.mxu0 0.0
  %1047 = vmatpush1.msra.mxu0 0.0
  %1048 = vmatprep.mubr.f32.mxu0 0.0
  %1049 = vmatmul.mubr.f32.gmra.mrb[0].mxu0 %v912
  %v1050 = vpop.f32.mrb[0].mxu0
  %v1051 = vadd.f32 0.0, %v1050
  %v1052 = vpop.f32.mrb[0].mxu0
  %1053 = vdwg.mxu0
  %1054 = vmatprep.subr.mxu0 0.0
  %1055 = vmatpush1.msra.mxu0 %v419
  %1056 = vmatprep.subr.mxu0 0.0
  %1057 = vmatpush1.msra.mxu0 %v420
  %1058 = vmatprep.subr.mxu0 0.0
  %1059 = vmatpush1.msra.mxu0 %v421
  %1060 = vmatprep.subr.mxu0 0.0
  %1061 = vmatpush1.msra.mxu0 %v422
  %1062 = vmatprep.subr.mxu0 0.0
  %1063 = vmatpush1.msra.mxu0 0.0
  %1064 = vmatprep.subr.mxu0 0.0
  %1065 = vmatpush1.msra.mxu0 0.0
  %1066 = vmatprep.subr.mxu0 0.0
  %1067 = vmatpush1.msra.mxu0 0.0
  %1068 = vmatprep.subr.mxu0 0.0
  %1069 = vmatpush1.msra.mxu0 0.0
  %1070 = vmatprep.subr.mxu0 0.0
  %1071 = vmatpush1.msra.mxu0 0.0
  %1072 = vmatprep.subr.mxu0 0.0
  %1073 = vmatpush1.msra.mxu0 0.0
  %1074 = vmatprep.subr.mxu0 0.0
  %1075 = vmatpush1.msra.mxu0 0.0
  %1076 = vmatprep.subr.mxu0 0.0
  %1077 = vmatpush1.msra.mxu0 0.0
  %1078 = vmatprep.subr.mxu0 0.0
  %1079 = vmatpush1.msra.mxu0 0.0
  %1080 = vmatprep.subr.mxu0 0.0
  %1081 = vmatpush1.msra.mxu0 0.0
  %1082 = vmatprep.subr.mxu0 0.0
  %1083 = vmatpush1.msra.mxu0 0.0
  %1084 = vmatprep.subr.mxu0 0.0
  %1085 = vmatpush1.msra.mxu0 0.0
  %1086 = vmatprep.subr.mxu0 0.0
  %1087 = vmatpush1.msra.mxu0 0.0
  %1088 = vmatprep.subr.mxu0 0.0
  %1089 = vmatpush1.msra.mxu0 0.0
  %1090 = vmatprep.subr.mxu0 0.0
  %1091 = vmatpush1.msra.mxu0 0.0
  %1092 = vmatprep.subr.mxu0 0.0
  %1093 = vmatpush1.msra.mxu0 0.0
  %1094 = vmatprep.subr.mxu0 0.0
  %1095 = vmatpush1.msra.mxu0 0.0
  %1096 = vmatprep.subr.mxu0 0.0
  %1097 = vmatpush1.msra.mxu0 0.0
  %1098 = vmatprep.subr.mxu0 0.0
  %1099 = vmatpush1.msra.mxu0 0.0
  %1100 = vmatprep.subr.mxu0 0.0
  %1101 = vmatpush1.msra.mxu0 0.0
  %1102 = vmatprep.subr.mxu0 0.0
  %1103 = vmatpush1.msra.mxu0 0.0
  %1104 = vmatprep.subr.mxu0 0.0
  %1105 = vmatpush1.msra.mxu0 0.0
  %1106 = vmatprep.subr.mxu0 0.0
  %1107 = vmatpush1.msra.mxu0 0.0
  %1108 = vmatprep.subr.mxu0 0.0
  %1109 = vmatpush1.msra.mxu0 0.0
  %1110 = vmatprep.subr.mxu0 0.0
  %1111 = vmatpush1.msra.mxu0 0.0
  %1112 = vmatprep.subr.mxu0 0.0
  %1113 = vmatpush1.msra.mxu0 0.0
  %1114 = vmatprep.subr.mxu0 0.0
  %1115 = vmatpush1.msra.mxu0 0.0
  %1116 = vmatprep.subr.mxu0 0.0
  %1117 = vmatpush1.msra.mxu0 0.0
  %1118 = vmatprep.mubr.f32.mxu0 0.0
  %1119 = vmatmul.mubr.f32.gmra.mrb[0].mxu0 %v912
  %v1120 = vpop.f32.mrb[0].mxu0
  %v1121 = vadd.f32 %v428, %v1120
  %v1122 = vpop.f32.mrb[0].mxu0
  %1123 = vdwg.mxu0
  %s1124 = scalar_lea.vmem [#allocation4], 16
  %v1125 = vld [vmem:[%s1124] sm:$0xff]
  %v1126 = vadd.f32 %v1125, %v981
  %v1127 = vxor.u32 %v1126, 2147483648
  %v1128 = vmul.f32 %v1127, 1.442695
  %v1129 = vpow.pop %v1128
  %v1130 = vadd.f32 %v1129, 1.0
  %v1131 = vrcp.pop %v1130
  %v1132 = vmul.f32 1.0, %v1131
  %s1133 = scalar_lea.vmem [#allocation5], 16
  %v1134 = vld [vmem:[%s1133] sm:$0xff]
  %v1135 = vadd.f32 %v1134, %v1051
  %v1136 = vxor.u32 %v1135, 2147483648
  %v1137 = vmul.f32 %v1136, 1.442695
  %v1138 = vpow.pop %v1137
  %v1139 = vadd.f32 %v1138, 1.0
  %v1140 = vrcp.pop %v1139
  %v1141 = vmul.f32 1.0, %v1140
  %s1142 = scalar_lea.vmem [#allocation6], 16
  %v1143 = vld [vmem:[%s1142] sm:$0xff]
  %v1144 = vmul.f32 %v1132, %v1121
  %v1145 = vadd.f32 %v1143, %v1144
  %v1146 = vtanh.pop %v1145
  %v1147 = vsub.f32 1.0, %v1141
  %v1148 = vmul.f32 %v1147, %v1146
  %v1149 = vmul.f32 %v1141, %v908
  %v1150 = vadd.f32 %v1148, %v1149
  %s1151 = scalar_lea.vmem [#allocation3], 16
  %1152 = vst.msk [vmem:[%s1151] sm:$0xff] %vm330, %v1150
  %v1154 = vsel %vm330, %v1150, 0
  %1156 = vmatprep.subr.mxu0 0.0
  %1157 = vmatpush1.msra.mxu0 %v411
  %1158 = vmatprep.subr.mxu0 0.0
  %1159 = vmatpush1.msra.mxu0 %v412
  %1160 = vmatprep.subr.mxu0 0.0
  %1161 = vmatpush1.msra.mxu0 %v413
  %1162 = vmatprep.subr.mxu0 0.0
  %1163 = vmatpush1.msra.mxu0 %v414
  %1164 = vmatprep.subr.mxu0 0.0
  %1165 = vmatpush1.msra.mxu0 0.0
  %1166 = vmatprep.subr.mxu0 0.0
  %1167 = vmatpush1.msra.mxu0 0.0
  %1168 = vmatprep.subr.mxu0 0.0
  %1169 = vmatpush1.msra.mxu0 0.0
  %1170 = vmatprep.subr.mxu0 0.0
  %1171 = vmatpush1.msra.mxu0 0.0
  %1172 = vmatprep.subr.mxu0 0.0
  %1173 = vmatpush1.msra.mxu0 0.0
  %1174 = vmatprep.subr.mxu0 0.0
  %1175 = vmatpush1.msra.mxu0 0.0
  %1176 = vmatprep.subr.mxu0 0.0
  %1177 = vmatpush1.msra.mxu0 0.0
  %1178 = vmatprep.subr.mxu0 0.0
  %1179 = vmatpush1.msra.mxu0 0.0
  %1180 = vmatprep.subr.mxu0 0.0
  %1181 = vmatpush1.msra.mxu0 0.0
  %1182 = vmatprep.subr.mxu0 0.0
  %1183 = vmatpush1.msra.mxu0 0.0
  %1184 = vmatprep.subr.mxu0 0.0
  %1185 = vmatpush1.msra.mxu0 0.0
  %1186 = vmatprep.subr.mxu0 0.0
  %1187 = vmatpush1.msra.mxu0 0.0
  %1188 = vmatprep.subr.mxu0 0.0
  %1189 = vmatpush1.msra.mxu0 0.0
  %1190 = vmatprep.subr.mxu0 0.0
  %1191 = vmatpush1.msra.mxu0 0.0
  %1192 = vmatprep.subr.mxu0 0.0
  %1193 = vmatpush1.msra.mxu0 0.0
  %1194 = vmatprep.subr.mxu0 0.0
  %1195 = vmatpush1.msra.mxu0 0.0
  %1196 = vmatprep.subr.mxu0 0.0
  %1197 = vmatpush1.msra.mxu0 0.0
  %1198 = vmatprep.subr.mxu0 0.0
  %1199 = vmatpush1.msra.mxu0 0.0
  %1200 = vmatprep.subr.mxu0 0.0
  %1201 = vmatpush1.msra.mxu0 0.0
  %1202 = vmatprep.subr.mxu0 0.0
  %1203 = vmatpush1.msra.mxu0 0.0
  %1204 = vmatprep.subr.mxu0 0.0
  %1205 = vmatpush1.msra.mxu0 0.0
  %1206 = vmatprep.subr.mxu0 0.0
  %1207 = vmatpush1.msra.mxu0 0.0
  %1208 = vmatprep.subr.mxu0 0.0
  %1209 = vmatpush1.msra.mxu0 0.0
  %1210 = vmatprep.subr.mxu0 0.0
  %1211 = vmatpush1.msra.mxu0 0.0
  %1212 = vmatprep.subr.mxu0 0.0
  %1213 = vmatpush1.msra.mxu0 0.0
  %1214 = vmatprep.subr.mxu0 0.0
  %1215 = vmatpush1.msra.mxu0 0.0
  %1216 = vmatprep.subr.mxu0 0.0
  %1217 = vmatpush1.msra.mxu0 0.0
  %1218 = vmatprep.subr.mxu0 0.0
  %1219 = vmatpush1.msra.mxu0 0.0
  %1220 = vmatprep.mubr.f32.mxu0 0.0
  %1221 = vmatmul.mubr.f32.gmra.mrb[0].mxu0 %v1154
  %v1222 = vpop.f32.mrb[0].mxu0
  %v1223 = vadd.f32 0.0, %v1222
  %v1224 = vpop.f32.mrb[0].mxu0
  %1225 = vdwg.mxu0
  %1226 = vmatprep.subr.mxu0 0.0
  %1227 = vmatpush1.msra.mxu0 %v415
  %1228 = vmatprep.subr.mxu0 0.0
  %1229 = vmatpush1.msra.mxu0 %v416
  %1230 = vmatprep.subr.mxu0 0.0
  %1231 = vmatpush1.msra.mxu0 %v417
  %1232 = vmatprep.subr.mxu0 0.0
  %1233 = vmatpush1.msra.mxu0 %v418
  %1234 = vmatprep.subr.mxu0 0.0
  %1235 = vmatpush1.msra.mxu0 0.0
  %1236 = vmatprep.subr.mxu0 0.0
  %1237 = vmatpush1.msra.mxu0 0.0
  %1238 = vmatprep.subr.mxu0 0.0
  %1239 = vmatpush1.msra.mxu0 0.0
  %1240 = vmatprep.subr.mxu0 0.0
  %1241 = vmatpush1.msra.mxu0 0.0
  %1242 = vmatprep.subr.mxu0 0.0
  %1243 = vmatpush1.msra.mxu0 0.0
  %1244 = vmatprep.subr.mxu0 0.0
  %1245 = vmatpush1.msra.mxu0 0.0
  %1246 = vmatprep.subr.mxu0 0.0
  %1247 = vmatpush1.msra.mxu0 0.0
  %1248 = vmatprep.subr.mxu0 0.0
  %1249 = vmatpush1.msra.mxu0 0.0
  %1250 = vmatprep.subr.mxu0 0.0
  %1251 = vmatpush1.msra.mxu0 0.0
  %1252 = vmatprep.subr.mxu0 0.0
  %1253 = vmatpush1.msra.mxu0 0.0
  %1254 = vmatprep.subr.mxu0 0.0
  %1255 = vmatpush1.msra.mxu0 0.0
  %1256 = vmatprep.subr.mxu0 0.0
  %1257 = vmatpush1.msra.mxu0 0.0
  %1258 = vmatprep.subr.mxu0 0.0
  %1259 = vmatpush1.msra.mxu0 0.0
  %1260 = vmatprep.subr.mxu0 0.0
  %1261 = vmatpush1.msra.mxu0 0.0
  %1262 = vmatprep.subr.mxu0 0.0
  %1263 = vmatpush1.msra.mxu0 0.0
  %1264 = vmatprep.subr.mxu0 0.0
  %1265 = vmatpush1.msra.mxu0 0.0
  %1266 = vmatprep.subr.mxu0 0.0
  %1267 = vmatpush1.msra.mxu0 0.0
  %1268 = vmatprep.subr.mxu0 0.0
  %1269 = vmatpush1.msra.mxu0 0.0
  %1270 = vmatprep.subr.mxu0 0.0
  %1271 = vmatpush1.msra.mxu0 0.0
  %1272 = vmatprep.subr.mxu0 0.0
  %1273 = vmatpush1.msra.mxu0 0.0
  %1274 = vmatprep.subr.mxu0 0.0
  %1275 = vmatpush1.msra.mxu0 0.0
  %1276 = vmatprep.subr.mxu0 0.0
  %1277 = vmatpush1.msra.mxu0 0.0
  %1278 = vmatprep.subr.mxu0 0.0
  %1279 = vmatpush1.msra.mxu0 0.0
  %1280 = vmatprep.subr.mxu0 0.0
  %1281 = vmatpush1.msra.mxu0 0.0
  %1282 = vmatprep.subr.mxu0 0.0
  %1283 = vmatpush1.msra.mxu0 0.0
  %1284 = vmatprep.subr.mxu0 0.0
  %1285 = vmatpush1.msra.mxu0 0.0
  %1286 = vmatprep.subr.mxu0 0.0
  %1287 = vmatpush1.msra.mxu0 0.0
  %1288 = vmatprep.subr.mxu0 0.0
  %1289 = vmatpush1.msra.mxu0 0.0
  %1290 = vmatprep.mubr.f32.mxu0 0.0
  %1291 = vmatmul.mubr.f32.gmra.mrb[0].mxu0 %v1154
  %v1292 = vpop.f32.mrb[0].mxu0
  %v1293 = vadd.f32 0.0, %v1292
  %v1294 = vpop.f32.mrb[0].mxu0
  %1295 = vdwg.mxu0
  %1296 = vmatprep.subr.mxu0 0.0
  %1297 = vmatpush1.msra.mxu0 %v419
  %1298 = vmatprep.subr.mxu0 0.0
  %1299 = vmatpush1.msra.mxu0 %v420
  %1300 = vmatprep.subr.mxu0 0.0
  %1301 = vmatpush1.msra.mxu0 %v421
  %1302 = vmatprep.subr.mxu0 0.0
  %1303 = vmatpush1.msra.mxu0 %v422
  %1304 = vmatprep.subr.mxu0 0.0
  %1305 = vmatpush1.msra.mxu0 0.0
  %1306 = vmatprep.subr.mxu0 0.0
  %1307 = vmatpush1.msra.mxu0 0.0
  %1308 = vmatprep.subr.mxu0 0.0
  %1309 = vmatpush1.msra.mxu0 0.0
  %1310 = vmatprep.subr.mxu0 0.0
  %1311 = vmatpush1.msra.mxu0 0.0
  %1312 = vmatprep.subr.mxu0 0.0
  %1313 = vmatpush1.msra.mxu0 0.0
  %1314 = vmatprep.subr.mxu0 0.0
  %1315 = vmatpush1.msra.mxu0 0.0
  %1316 = vmatprep.subr.mxu0 0.0
  %1317 = vmatpush1.msra.mxu0 0.0
  %1318 = vmatprep.subr.mxu0 0.0
  %1319 = vmatpush1.msra.mxu0 0.0
  %1320 = vmatprep.subr.mxu0 0.0
  %1321 = vmatpush1.msra.mxu0 0.0
  %1322 = vmatprep.subr.mxu0 0.0
  %1323 = vmatpush1.msra.mxu0 0.0
  %1324 = vmatprep.subr.mxu0 0.0
  %1325 = vmatpush1.msra.mxu0 0.0
  %1326 = vmatprep.subr.mxu0 0.0
  %1327 = vmatpush1.msra.mxu0 0.0
  %1328 = vmatprep.subr.mxu0 0.0
  %1329 = vmatpush1.msra.mxu0 0.0
  %1330 = vmatprep.subr.mxu0 0.0
  %1331 = vmatpush1.msra.mxu0 0.0
  %1332 = vmatprep.subr.mxu0 0.0
  %1333 = vmatpush1.msra.mxu0 0.0
  %1334 = vmatprep.subr.mxu0 0.0
  %1335 = vmatpush1.msra.mxu0 0.0
  %1336 = vmatprep.subr.mxu0 0.0
  %1337 = vmatpush1.msra.mxu0 0.0
  %1338 = vmatprep.subr.mxu0 0.0
  %1339 = vmatpush1.msra.mxu0 0.0
  %1340 = vmatprep.subr.mxu0 0.0
  %1341 = vmatpush1.msra.mxu0 0.0
  %1342 = vmatprep.subr.mxu0 0.0
  %1343 = vmatpush1.msra.mxu0 0.0
  %1344 = vmatprep.subr.mxu0 0.0
  %1345 = vmatpush1.msra.mxu0 0.0
  %1346 = vmatprep.subr.mxu0 0.0
  %1347 = vmatpush1.msra.mxu0 0.0
  %1348 = vmatprep.subr.mxu0 0.0
  %1349 = vmatpush1.msra.mxu0 0.0
  %1350 = vmatprep.subr.mxu0 0.0
  %1351 = vmatpush1.msra.mxu0 0.0
  %1352 = vmatprep.subr.mxu0 0.0
  %1353 = vmatpush1.msra.mxu0 0.0
  %1354 = vmatprep.subr.mxu0 0.0
  %1355 = vmatpush1.msra.mxu0 0.0
  %1356 = vmatprep.subr.mxu0 0.0
  %1357 = vmatpush1.msra.mxu0 0.0
  %1358 = vmatprep.subr.mxu0 0.0
  %1359 = vmatpush1.msra.mxu0 0.0
  %1360 = vmatprep.mubr.f32.mxu0 0.0
  %1361 = vmatmul.mubr.f32.gmra.mrb[0].mxu0 %v1154
  %v1362 = vpop.f32.mrb[0].mxu0
  %v1363 = vadd.f32 %v428, %v1362
  %v1364 = vpop.f32.mrb[0].mxu0
  %1365 = vdwg.mxu0
  %s1366 = scalar_lea.vmem [#allocation4], 24
  %v1367 = vld [vmem:[%s1366] sm:$0xff]
  %v1368 = vadd.f32 %v1367, %v1223
  %v1369 = vxor.u32 %v1368, 2147483648
  %v1370 = vmul.f32 %v1369, 1.442695
  %v1371 = vpow.pop %v1370
  %v1372 = vadd.f32 %v1371, 1.0
  %v1373 = vrcp.pop %v1372
  %v1374 = vmul.f32 1.0, %v1373
  %s1375 = scalar_lea.vmem [#allocation5], 24
  %v1376 = vld [vmem:[%s1375] sm:$0xff]
  %v1377 = vadd.f32 %v1376, %v1293
  %v1378 = vxor.u32 %v1377, 2147483648
  %v1379 = vmul.f32 %v1378, 1.442695
  %v1380 = vpow.pop %v1379
  %v1381 = vadd.f32 %v1380, 1.0
  %v1382 = vrcp.pop %v1381
  %v1383 = vmul.f32 1.0, %v1382
  %s1384 = scalar_lea.vmem [#allocation6], 24
  %v1385 = vld [vmem:[%s1384] sm:$0xff]
  %v1386 = vmul.f32 %v1374, %v1363
  %v1387 = vadd.f32 %v1385, %v1386
  %v1388 = vtanh.pop %v1387
  %v1389 = vsub.f32 1.0, %v1383
  %v1390 = vmul.f32 %v1389, %v1388
  %v1391 = vmul.f32 %v1383, %v1150
  %v1392 = vadd.f32 %v1390, %v1391
  %s1393 = scalar_lea.vmem [#allocation3], 24
  %1394 = vst.msk [vmem:[%s1393] sm:$0xff] %vm330, %v1392
  %v1396 = vsel %vm330, %v1392, 0
  %1398 = vmatprep.subr.mxu0 0.0
  %1399 = vmatpush1.msra.mxu0 %v411
  %1400 = vmatprep.subr.mxu0 0.0
  %1401 = vmatpush1.msra.mxu0 %v412
  %1402 = vmatprep.subr.mxu0 0.0
  %1403 = vmatpush1.msra.mxu0 %v413
  %1404 = vmatprep.subr.mxu0 0.0
  %1405 = vmatpush1.msra.mxu0 %v414
  %1406 = vmatprep.subr.mxu0 0.0
  %1407 = vmatpush1.msra.mxu0 0.0
  %1408 = vmatprep.subr.mxu0 0.0
  %1409 = vmatpush1.msra.mxu0 0.0
  %1410 = vmatprep.subr.mxu0 0.0
  %1411 = vmatpush1.msra.mxu0 0.0
  %1412 = vmatprep.subr.mxu0 0.0
  %1413 = vmatpush1.msra.mxu0 0.0
  %1414 = vmatprep.subr.mxu0 0.0
  %1415 = vmatpush1.msra.mxu0 0.0
  %1416 = vmatprep.subr.mxu0 0.0
  %1417 = vmatpush1.msra.mxu0 0.0
  %1418 = vmatprep.subr.mxu0 0.0
  %1419 = vmatpush1.msra.mxu0 0.0
  %1420 = vmatprep.subr.mxu0 0.0
  %1421 = vmatpush1.msra.mxu0 0.0
  %1422 = vmatprep.subr.mxu0 0.0
  %1423 = vmatpush1.msra.mxu0 0.0
  %1424 = vmatprep.subr.mxu0 0.0
  %1425 = vmatpush1.msra.mxu0 0.0
  %1426 = vmatprep.subr.mxu0 0.0
  %1427 = vmatpush1.msra.mxu0 0.0
  %1428 = vmatprep.subr.mxu0 0.0
  %1429 = vmatpush1.msra.mxu0 0.0
  %1430 = vmatprep.subr.mxu0 0.0
  %1431 = vmatpush1.msra.mxu0 0.0
  %1432 = vmatprep.subr.mxu0 0.0
  %1433 = vmatpush1.msra.mxu0 0.0
  %1434 = vmatprep.subr.mxu0 0.0
  %1435 = vmatpush1.msra.mxu0 0.0
  %1436 = vmatprep.subr.mxu0 0.0
  %1437 = vmatpush1.msra.mxu0 0.0
  %1438 = vmatprep.subr.mxu0 0.0
  %1439 = vmatpush1.msra.mxu0 0.0
  %1440 = vmatprep.subr.mxu0 0.0
  %1441 = vmatpush1.msra.mxu0 0.0
  %1442 = vmatprep.subr.mxu0 0.0
  %1443 = vmatpush1.msra.mxu0 0.0
  %1444 = vmatprep.subr.mxu0 0.0
  %1445 = vmatpush1.msra.mxu0 0.0
  %1446 = vmatprep.subr.mxu0 0.0
  %1447 = vmatpush1.msra.mxu0 0.0
  %1448 = vmatprep.subr.mxu0 0.0
  %1449 = vmatpush1.msra.mxu0 0.0
  %1450 = vmatprep.subr.mxu0 0.0
  %1451 = vmatpush1.msra.mxu0 0.0
  %1452 = vmatprep.subr.mxu0 0.0
  %1453 = vmatpush1.msra.mxu0 0.0
  %1454 = vmatprep.subr.mxu0 0.0
  %1455 = vmatpush1.msra.mxu0 0.0
  %1456 = vmatprep.subr.mxu0 0.0
  %1457 = vmatpush1.msra.mxu0 0.0
  %1458 = vmatprep.subr.mxu0 0.0
  %1459 = vmatpush1.msra.mxu0 0.0
  %1460 = vmatprep.subr.mxu0 0.0
  %1461 = vmatpush1.msra.mxu0 0.0
  %1462 = vmatprep.mubr.f32.mxu0 0.0
  %1463 = vmatmul.mubr.f32.gmra.mrb[0].mxu0 %v1396
  %v1464 = vpop.f32.mrb[0].mxu0
  %v1465 = vadd.f32 0.0, %v1464
  %v1466 = vpop.f32.mrb[0].mxu0
  %1467 = vdwg.mxu0
  %1468 = vmatprep.subr.mxu0 0.0
  %1469 = vmatpush1.msra.mxu0 %v415
  %1470 = vmatprep.subr.mxu0 0.0
  %1471 = vmatpush1.msra.mxu0 %v416
  %1472 = vmatprep.subr.mxu0 0.0
  %1473 = vmatpush1.msra.mxu0 %v417
  %1474 = vmatprep.subr.mxu0 0.0
  %1475 = vmatpush1.msra.mxu0 %v418
  %1476 = vmatprep.subr.mxu0 0.0
  %1477 = vmatpush1.msra.mxu0 0.0
  %1478 = vmatprep.subr.mxu0 0.0
  %1479 = vmatpush1.msra.mxu0 0.0
  %1480 = vmatprep.subr.mxu0 0.0
  %1481 = vmatpush1.msra.mxu0 0.0
  %1482 = vmatprep.subr.mxu0 0.0
  %1483 = vmatpush1.msra.mxu0 0.0
  %1484 = vmatprep.subr.mxu0 0.0
  %1485 = vmatpush1.msra.mxu0 0.0
  %1486 = vmatprep.subr.mxu0 0.0
  %1487 = vmatpush1.msra.mxu0 0.0
  %1488 = vmatprep.subr.mxu0 0.0
  %1489 = vmatpush1.msra.mxu0 0.0
  %1490 = vmatprep.subr.mxu0 0.0
  %1491 = vmatpush1.msra.mxu0 0.0
  %1492 = vmatprep.subr.mxu0 0.0
  %1493 = vmatpush1.msra.mxu0 0.0
  %1494 = vmatprep.subr.mxu0 0.0
  %1495 = vmatpush1.msra.mxu0 0.0
  %1496 = vmatprep.subr.mxu0 0.0
  %1497 = vmatpush1.msra.mxu0 0.0
  %1498 = vmatprep.subr.mxu0 0.0
  %1499 = vmatpush1.msra.mxu0 0.0
  %1500 = vmatprep.subr.mxu0 0.0
  %1501 = vmatpush1.msra.mxu0 0.0
  %1502 = vmatprep.subr.mxu0 0.0
  %1503 = vmatpush1.msra.mxu0 0.0
  %1504 = vmatprep.subr.mxu0 0.0
  %1505 = vmatpush1.msra.mxu0 0.0
  %1506 = vmatprep.subr.mxu0 0.0
  %1507 = vmatpush1.msra.mxu0 0.0
  %1508 = vmatprep.subr.mxu0 0.0
  %1509 = vmatpush1.msra.mxu0 0.0
  %1510 = vmatprep.subr.mxu0 0.0
  %1511 = vmatpush1.msra.mxu0 0.0
  %1512 = vmatprep.subr.mxu0 0.0
  %1513 = vmatpush1.msra.mxu0 0.0
  %1514 = vmatprep.subr.mxu0 0.0
  %1515 = vmatpush1.msra.mxu0 0.0
  %1516 = vmatprep.subr.mxu0 0.0
  %1517 = vmatpush1.msra.mxu0 0.0
  %1518 = vmatprep.subr.mxu0 0.0
  %1519 = vmatpush1.msra.mxu0 0.0
  %1520 = vmatprep.subr.mxu0 0.0
  %1521 = vmatpush1.msra.mxu0 0.0
  %1522 = vmatprep.subr.mxu0 0.0
  %1523 = vmatpush1.msra.mxu0 0.0
  %1524 = vmatprep.subr.mxu0 0.0
  %1525 = vmatpush1.msra.mxu0 0.0
  %1526 = vmatprep.subr.mxu0 0.0
  %1527 = vmatpush1.msra.mxu0 0.0
  %1528 = vmatprep.subr.mxu0 0.0
  %1529 = vmatpush1.msra.mxu0 0.0
  %1530 = vmatprep.subr.mxu0 0.0
  %1531 = vmatpush1.msra.mxu0 0.0
  %1532 = vmatprep.mubr.f32.mxu0 0.0
  %1533 = vmatmul.mubr.f32.gmra.mrb[0].mxu0 %v1396
  %v1534 = vpop.f32.mrb[0].mxu0
  %v1535 = vadd.f32 0.0, %v1534
  %v1536 = vpop.f32.mrb[0].mxu0
  %1537 = vdwg.mxu0
  %1538 = vmatprep.subr.mxu0 0.0
  %1539 = vmatpush1.msra.mxu0 %v419
  %1540 = vmatprep.subr.mxu0 0.0
  %1541 = vmatpush1.msra.mxu0 %v420
  %1542 = vmatprep.subr.mxu0 0.0
  %1543 = vmatpush1.msra.mxu0 %v421
  %1544 = vmatprep.subr.mxu0 0.0
  %1545 = vmatpush1.msra.mxu0 %v422
  %1546 = vmatprep.subr.mxu0 0.0
  %1547 = vmatpush1.msra.mxu0 0.0
  %1548 = vmatprep.subr.mxu0 0.0
  %1549 = vmatpush1.msra.mxu0 0.0
  %1550 = vmatprep.subr.mxu0 0.0
  %1551 = vmatpush1.msra.mxu0 0.0
  %1552 = vmatprep.subr.mxu0 0.0
  %1553 = vmatpush1.msra.mxu0 0.0
  %1554 = vmatprep.subr.mxu0 0.0
  %1555 = vmatpush1.msra.mxu0 0.0
  %1556 = vmatprep.subr.mxu0 0.0
  %1557 = vmatpush1.msra.mxu0 0.0
  %1558 = vmatprep.subr.mxu0 0.0
  %1559 = vmatpush1.msra.mxu0 0.0
  %1560 = vmatprep.subr.mxu0 0.0
  %1561 = vmatpush1.msra.mxu0 0.0
  %1562 = vmatprep.subr.mxu0 0.0
  %1563 = vmatpush1.msra.mxu0 0.0
  %1564 = vmatprep.subr.mxu0 0.0
  %1565 = vmatpush1.msra.mxu0 0.0
  %1566 = vmatprep.subr.mxu0 0.0
  %1567 = vmatpush1.msra.mxu0 0.0
  %1568 = vmatprep.subr.mxu0 0.0
  %1569 = vmatpush1.msra.mxu0 0.0
  %1570 = vmatprep.subr.mxu0 0.0
  %1571 = vmatpush1.msra.mxu0 0.0
  %1572 = vmatprep.subr.mxu0 0.0
  %1573 = vmatpush1.msra.mxu0 0.0
  %1574 = vmatprep.subr.mxu0 0.0
  %1575 = vmatpush1.msra.mxu0 0.0
  %1576 = vmatprep.subr.mxu0 0.0
  %1577 = vmatpush1.msra.mxu0 0.0
  %1578 = vmatprep.subr.mxu0 0.0
  %1579 = vmatpush1.msra.mxu0 0.0
  %1580 = vmatprep.subr.mxu0 0.0
  %1581 = vmatpush1.msra.mxu0 0.0
  %1582 = vmatprep.subr.mxu0 0.0
  %1583 = vmatpush1.msra.mxu0 0.0
  %1584 = vmatprep.subr.mxu0 0.0
  %1585 = vmatpush1.msra.mxu0 0.0
  %1586 = vmatprep.subr.mxu0 0.0
  %1587 = vmatpush1.msra.mxu0 0.0
  %1588 = vmatprep.subr.mxu0 0.0
  %1589 = vmatpush1.msra.mxu0 0.0
  %1590 = vmatprep.subr.mxu0 0.0
  %1591 = vmatpush1.msra.mxu0 0.0
  %1592 = vmatprep.subr.mxu0 0.0
  %1593 = vmatpush1.msra.mxu0 0.0
  %1594 = vmatprep.subr.mxu0 0.0
  %1595 = vmatpush1.msra.mxu0 0.0
  %1596 = vmatprep.subr.mxu0 0.0
  %1597 = vmatpush1.msra.mxu0 0.0
  %1598 = vmatprep.subr.mxu0 0.0
  %1599 = vmatpush1.msra.mxu0 0.0
  %1600 = vmatprep.subr.mxu0 0.0
  %1601 = vmatpush1.msra.mxu0 0.0
  %1602 = vmatprep.mubr.f32.mxu0 0.0
  %1603 = vmatmul.mubr.f32.gmra.mrb[0].mxu0 %v1396
  %v1604 = vpop.f32.mrb[0].mxu0
  %v1605 = vadd.f32 %v428, %v1604
  %v1606 = vpop.f32.mrb[0].mxu0
  %1607 = vdwg.mxu0
  %s1608 = scalar_lea.vmem [#allocation4], 32
  %v1609 = vld [vmem:[%s1608] sm:$0xff]
  %v1610 = vadd.f32 %v1609, %v1465
  %v1611 = vxor.u32 %v1610, 2147483648
  %v1612 = vmul.f32 %v1611, 1.442695
  %v1613 = vpow.pop %v1612
  %v1614 = vadd.f32 %v1613, 1.0
  %v1615 = vrcp.pop %v1614
  %v1616 = vmul.f32 1.0, %v1615
  %s1617 = scalar_lea.vmem [#allocation5], 32
  %v1618 = vld [vmem:[%s1617] sm:$0xff]
  %v1619 = vadd.f32 %v1618, %v1535
  %v1620 = vxor.u32 %v1619, 2147483648
  %v1621 = vmul.f32 %v1620, 1.442695
  %v1622 = vpow.pop %v1621
  %v1623 = vadd.f32 %v1622, 1.0
  %v1624 = vrcp.pop %v1623
  %v1625 = vmul.f32 1.0, %v1624
  %s1626 = scalar_lea.vmem [#allocation6], 32
  %v1627 = vld [vmem:[%s1626] sm:$0xff]
  %v1628 = vmul.f32 %v1616, %v1605
  %v1629 = vadd.f32 %v1627, %v1628
  %v1630 = vtanh.pop %v1629
  %v1631 = vsub.f32 1.0, %v1625
  %v1632 = vmul.f32 %v1631, %v1630
  %v1633 = vmul.f32 %v1625, %v1392
  %v1634 = vadd.f32 %v1632, %v1633
  %s1635 = scalar_lea.vmem [#allocation3], 32
  %1636 = vst.msk [vmem:[%s1635] sm:$0xff] %vm330, %v1634
  %v1638 = vsel %vm330, %v1634, 0
  %1640 = vmatprep.subr.mxu0 0.0
  %1641 = vmatpush1.msra.mxu0 %v411
  %1642 = vmatprep.subr.mxu0 0.0
  %1643 = vmatpush1.msra.mxu0 %v412
  %1644 = vmatprep.subr.mxu0 0.0
  %1645 = vmatpush1.msra.mxu0 %v413
  %1646 = vmatprep.subr.mxu0 0.0
  %1647 = vmatpush1.msra.mxu0 %v414
  %1648 = vmatprep.subr.mxu0 0.0
  %1649 = vmatpush1.msra.mxu0 0.0
  %1650 = vmatprep.subr.mxu0 0.0
  %1651 = vmatpush1.msra.mxu0 0.0
  %1652 = vmatprep.subr.mxu0 0.0
  %1653 = vmatpush1.msra.mxu0 0.0
  %1654 = vmatprep.subr.mxu0 0.0
  %1655 = vmatpush1.msra.mxu0 0.0
  %1656 = vmatprep.subr.mxu0 0.0
  %1657 = vmatpush1.msra.mxu0 0.0
  %1658 = vmatprep.subr.mxu0 0.0
  %1659 = vmatpush1.msra.mxu0 0.0
  %1660 = vmatprep.subr.mxu0 0.0
  %1661 = vmatpush1.msra.mxu0 0.0
  %1662 = vmatprep.subr.mxu0 0.0
  %1663 = vmatpush1.msra.mxu0 0.0
  %1664 = vmatprep.subr.mxu0 0.0
  %1665 = vmatpush1.msra.mxu0 0.0
  %1666 = vmatprep.subr.mxu0 0.0
  %1667 = vmatpush1.msra.mxu0 0.0
  %1668 = vmatprep.subr.mxu0 0.0
  %1669 = vmatpush1.msra.mxu0 0.0
  %1670 = vmatprep.subr.mxu0 0.0
  %1671 = vmatpush1.msra.mxu0 0.0
  %1672 = vmatprep.subr.mxu0 0.0
  %1673 = vmatpush1.msra.mxu0 0.0
  %1674 = vmatprep.subr.mxu0 0.0
  %1675 = vmatpush1.msra.mxu0 0.0
  %1676 = vmatprep.subr.mxu0 0.0
  %1677 = vmatpush1.msra.mxu0 0.0
  %1678 = vmatprep.subr.mxu0 0.0
  %1679 = vmatpush1.msra.mxu0 0.0
  %1680 = vmatprep.subr.mxu0 0.0
  %1681 = vmatpush1.msra.mxu0 0.0
  %1682 = vmatprep.subr.mxu0 0.0
  %1683 = vmatpush1.msra.mxu0 0.0
  %1684 = vmatprep.subr.mxu0 0.0
  %1685 = vmatpush1.msra.mxu0 0.0
  %1686 = vmatprep.subr.mxu0 0.0
  %1687 = vmatpush1.msra.mxu0 0.0
  %1688 = vmatprep.subr.mxu0 0.0
  %1689 = vmatpush1.msra.mxu0 0.0
  %1690 = vmatprep.subr.mxu0 0.0
  %1691 = vmatpush1.msra.mxu0 0.0
  %1692 = vmatprep.subr.mxu0 0.0
  %1693 = vmatpush1.msra.mxu0 0.0
  %1694 = vmatprep.subr.mxu0 0.0
  %1695 = vmatpush1.msra.mxu0 0.0
  %1696 = vmatprep.subr.mxu0 0.0
  %1697 = vmatpush1.msra.mxu0 0.0
  %1698 = vmatprep.subr.mxu0 0.0
  %1699 = vmatpush1.msra.mxu0 0.0
  %1700 = vmatprep.subr.mxu0 0.0
  %1701 = vmatpush1.msra.mxu0 0.0
  %1702 = vmatprep.subr.mxu0 0.0
  %1703 = vmatpush1.msra.mxu0 0.0
  %1704 = vmatprep.mubr.f32.mxu0 0.0
  %1705 = vmatmul.mubr.f32.gmra.mrb[0].mxu0 %v1638
  %v1706 = vpop.f32.mrb[0].mxu0
  %v1707 = vadd.f32 0.0, %v1706
  %v1708 = vpop.f32.mrb[0].mxu0
  %1709 = vdwg.mxu0
  %1710 = vmatprep.subr.mxu0 0.0
  %1711 = vmatpush1.msra.mxu0 %v415
  %1712 = vmatprep.subr.mxu0 0.0
  %1713 = vmatpush1.msra.mxu0 %v416
  %1714 = vmatprep.subr.mxu0 0.0
  %1715 = vmatpush1.msra.mxu0 %v417
  %1716 = vmatprep.subr.mxu0 0.0
  %1717 = vmatpush1.msra.mxu0 %v418
  %1718 = vmatprep.subr.mxu0 0.0
  %1719 = vmatpush1.msra.mxu0 0.0
  %1720 = vmatprep.subr.mxu0 0.0
  %1721 = vmatpush1.msra.mxu0 0.0
  %1722 = vmatprep.subr.mxu0 0.0
  %1723 = vmatpush1.msra.mxu0 0.0
  %1724 = vmatprep.subr.mxu0 0.0
  %1725 = vmatpush1.msra.mxu0 0.0
  %1726 = vmatprep.subr.mxu0 0.0
  %1727 = vmatpush1.msra.mxu0 0.0
  %1728 = vmatprep.subr.mxu0 0.0
  %1729 = vmatpush1.msra.mxu0 0.0
  %1730 = vmatprep.subr.mxu0 0.0
  %1731 = vmatpush1.msra.mxu0 0.0
  %1732 = vmatprep.subr.mxu0 0.0
  %1733 = vmatpush1.msra.mxu0 0.0
  %1734 = vmatprep.subr.mxu0 0.0
  %1735 = vmatpush1.msra.mxu0 0.0
  %1736 = vmatprep.subr.mxu0 0.0
  %1737 = vmatpush1.msra.mxu0 0.0
  %1738 = vmatprep.subr.mxu0 0.0
  %1739 = vmatpush1.msra.mxu0 0.0
  %1740 = vmatprep.subr.mxu0 0.0
  %1741 = vmatpush1.msra.mxu0 0.0
  %1742 = vmatprep.subr.mxu0 0.0
  %1743 = vmatpush1.msra.mxu0 0.0
  %1744 = vmatprep.subr.mxu0 0.0
  %1745 = vmatpush1.msra.mxu0 0.0
  %1746 = vmatprep.subr.mxu0 0.0
  %1747 = vmatpush1.msra.mxu0 0.0
  %1748 = vmatprep.subr.mxu0 0.0
  %1749 = vmatpush1.msra.mxu0 0.0
  %1750 = vmatprep.subr.mxu0 0.0
  %1751 = vmatpush1.msra.mxu0 0.0
  %1752 = vmatprep.subr.mxu0 0.0
  %1753 = vmatpush1.msra.mxu0 0.0
  %1754 = vmatprep.subr.mxu0 0.0
  %1755 = vmatpush1.msra.mxu0 0.0
  %1756 = vmatprep.subr.mxu0 0.0
  %1757 = vmatpush1.msra.mxu0 0.0
  %1758 = vmatprep.subr.mxu0 0.0
  %1759 = vmatpush1.msra.mxu0 0.0
  %1760 = vmatprep.subr.mxu0 0.0
  %1761 = vmatpush1.msra.mxu0 0.0
  %1762 = vmatprep.subr.mxu0 0.0
  %1763 = vmatpush1.msra.mxu0 0.0
  %1764 = vmatprep.subr.mxu0 0.0
  %1765 = vmatpush1.msra.mxu0 0.0
  %1766 = vmatprep.subr.mxu0 0.0
  %1767 = vmatpush1.msra.mxu0 0.0
  %1768 = vmatprep.subr.mxu0 0.0
  %1769 = vmatpush1.msra.mxu0 0.0
  %1770 = vmatprep.subr.mxu0 0.0
  %1771 = vmatpush1.msra.mxu0 0.0
  %1772 = vmatprep.subr.mxu0 0.0
  %1773 = vmatpush1.msra.mxu0 0.0
  %1774 = vmatprep.mubr.f32.mxu0 0.0
  %1775 = vmatmul.mubr.f32.gmra.mrb[0].mxu0 %v1638
  %v1776 = vpop.f32.mrb[0].mxu0
  %v1777 = vadd.f32 0.0, %v1776
  %v1778 = vpop.f32.mrb[0].mxu0
  %1779 = vdwg.mxu0
  %1780 = vmatprep.subr.mxu0 0.0
  %1781 = vmatpush1.msra.mxu0 %v419
  %1782 = vmatprep.subr.mxu0 0.0
  %1783 = vmatpush1.msra.mxu0 %v420
  %1784 = vmatprep.subr.mxu0 0.0
  %1785 = vmatpush1.msra.mxu0 %v421
  %1786 = vmatprep.subr.mxu0 0.0
  %1787 = vmatpush1.msra.mxu0 %v422
  %1788 = vmatprep.subr.mxu0 0.0
  %1789 = vmatpush1.msra.mxu0 0.0
  %1790 = vmatprep.subr.mxu0 0.0
  %1791 = vmatpush1.msra.mxu0 0.0
  %1792 = vmatprep.subr.mxu0 0.0
  %1793 = vmatpush1.msra.mxu0 0.0
  %1794 = vmatprep.subr.mxu0 0.0
  %1795 = vmatpush1.msra.mxu0 0.0
  %1796 = vmatprep.subr.mxu0 0.0
  %1797 = vmatpush1.msra.mxu0 0.0
  %1798 = vmatprep.subr.mxu0 0.0
  %1799 = vmatpush1.msra.mxu0 0.0
  %1800 = vmatprep.subr.mxu0 0.0
  %1801 = vmatpush1.msra.mxu0 0.0
  %1802 = vmatprep.subr.mxu0 0.0
  %1803 = vmatpush1.msra.mxu0 0.0
  %1804 = vmatprep.subr.mxu0 0.0
  %1805 = vmatpush1.msra.mxu0 0.0
  %1806 = vmatprep.subr.mxu0 0.0
  %1807 = vmatpush1.msra.mxu0 0.0
  %1808 = vmatprep.subr.mxu0 0.0
  %1809 = vmatpush1.msra.mxu0 0.0
  %1810 = vmatprep.subr.mxu0 0.0
  %1811 = vmatpush1.msra.mxu0 0.0
  %1812 = vmatprep.subr.mxu0 0.0
  %1813 = vmatpush1.msra.mxu0 0.0
  %1814 = vmatprep.subr.mxu0 0.0
  %1815 = vmatpush1.msra.mxu0 0.0
  %1816 = vmatprep.subr.mxu0 0.0
  %1817 = vmatpush1.msra.mxu0 0.0
  %1818 = vmatprep.subr.mxu0 0.0
  %1819 = vmatpush1.msra.mxu0 0.0
  %1820 = vmatprep.subr.mxu0 0.0
  %1821 = vmatpush1.msra.mxu0 0.0
  %1822 = vmatprep.subr.mxu0 0.0
  %1823 = vmatpush1.msra.mxu0 0.0
  %1824 = vmatprep.subr.mxu0 0.0
  %1825 = vmatpush1.msra.mxu0 0.0
  %1826 = vmatprep.subr.mxu0 0.0
  %1827 = vmatpush1.msra.mxu0 0.0
  %1828 = vmatprep.subr.mxu0 0.0
  %1829 = vmatpush1.msra.mxu0 0.0
  %1830 = vmatprep.subr.mxu0 0.0
  %1831 = vmatpush1.msra.mxu0 0.0
  %1832 = vmatprep.subr.mxu0 0.0
  %1833 = vmatpush1.msra.mxu0 0.0
  %1834 = vmatprep.subr.mxu0 0.0
  %1835 = vmatpush1.msra.mxu0 0.0
  %1836 = vmatprep.subr.mxu0 0.0
  %1837 = vmatpush1.msra.mxu0 0.0
  %1838 = vmatprep.subr.mxu0 0.0
  %1839 = vmatpush1.msra.mxu0 0.0
  %1840 = vmatprep.subr.mxu0 0.0
  %1841 = vmatpush1.msra.mxu0 0.0
  %1842 = vmatprep.subr.mxu0 0.0
  %1843 = vmatpush1.msra.mxu0 0.0
  %1844 = vmatprep.mubr.f32.mxu0 0.0
  %1845 = vmatmul.mubr.f32.gmra.mrb[0].mxu0 %v1638
  %v1846 = vpop.f32.mrb[0].mxu0
  %v1847 = vadd.f32 %v428, %v1846
  %v1848 = vpop.f32.mrb[0].mxu0
  %1849 = vdwg.mxu0
  %s1850 = scalar_lea.vmem [#allocation4], 40
  %v1851 = vld [vmem:[%s1850] sm:$0xff]
  %v1852 = vadd.f32 %v1851, %v1707
  %v1853 = vxor.u32 %v1852, 2147483648
  %v1854 = vmul.f32 %v1853, 1.442695
  %v1855 = vpow.pop %v1854
  %v1856 = vadd.f32 %v1855, 1.0
  %v1857 = vrcp.pop %v1856
  %v1858 = vmul.f32 1.0, %v1857
  %s1859 = scalar_lea.vmem [#allocation5], 40
  %v1860 = vld [vmem:[%s1859] sm:$0xff]
  %v1861 = vadd.f32 %v1860, %v1777
  %v1862 = vxor.u32 %v1861, 2147483648
  %v1863 = vmul.f32 %v1862, 1.442695
  %v1864 = vpow.pop %v1863
  %v1865 = vadd.f32 %v1864, 1.0
  %v1866 = vrcp.pop %v1865
  %v1867 = vmul.f32 1.0, %v1866
  %s1868 = scalar_lea.vmem [#allocation6], 40
  %v1869 = vld [vmem:[%s1868] sm:$0xff]
  %v1870 = vmul.f32 %v1858, %v1847
  %v1871 = vadd.f32 %v1869, %v1870
  %v1872 = vtanh.pop %v1871
  %v1873 = vsub.f32 1.0, %v1867
  %v1874 = vmul.f32 %v1873, %v1872
  %v1875 = vmul.f32 %v1867, %v1634
  %v1876 = vadd.f32 %v1874, %v1875
  %s1877 = scalar_lea.vmem [#allocation3], 40
  %1878 = vst.msk [vmem:[%s1877] sm:$0xff] %vm330, %v1876
  %v1880 = vsel %vm330, %v1876, 0
  %1882 = vmatprep.subr.mxu0 0.0
  %1883 = vmatpush1.msra.mxu0 %v411
  %1884 = vmatprep.subr.mxu0 0.0
  %1885 = vmatpush1.msra.mxu0 %v412
  %1886 = vmatprep.subr.mxu0 0.0
  %1887 = vmatpush1.msra.mxu0 %v413
  %1888 = vmatprep.subr.mxu0 0.0
  %1889 = vmatpush1.msra.mxu0 %v414
  %1890 = vmatprep.subr.mxu0 0.0
  %1891 = vmatpush1.msra.mxu0 0.0
  %1892 = vmatprep.subr.mxu0 0.0
  %1893 = vmatpush1.msra.mxu0 0.0
  %1894 = vmatprep.subr.mxu0 0.0
  %1895 = vmatpush1.msra.mxu0 0.0
  %1896 = vmatprep.subr.mxu0 0.0
  %1897 = vmatpush1.msra.mxu0 0.0
  %1898 = vmatprep.subr.mxu0 0.0
  %1899 = vmatpush1.msra.mxu0 0.0
  %1900 = vmatprep.subr.mxu0 0.0
  %1901 = vmatpush1.msra.mxu0 0.0
  %1902 = vmatprep.subr.mxu0 0.0
  %1903 = vmatpush1.msra.mxu0 0.0
  %1904 = vmatprep.subr.mxu0 0.0
  %1905 = vmatpush1.msra.mxu0 0.0
  %1906 = vmatprep.subr.mxu0 0.0
  %1907 = vmatpush1.msra.mxu0 0.0
  %1908 = vmatprep.subr.mxu0 0.0
  %1909 = vmatpush1.msra.mxu0 0.0
  %1910 = vmatprep.subr.mxu0 0.0
  %1911 = vmatpush1.msra.mxu0 0.0
  %1912 = vmatprep.subr.mxu0 0.0
  %1913 = vmatpush1.msra.mxu0 0.0
  %1914 = vmatprep.subr.mxu0 0.0
  %1915 = vmatpush1.msra.mxu0 0.0
  %1916 = vmatprep.subr.mxu0 0.0
  %1917 = vmatpush1.msra.mxu0 0.0
  %1918 = vmatprep.subr.mxu0 0.0
  %1919 = vmatpush1.msra.mxu0 0.0
  %1920 = vmatprep.subr.mxu0 0.0
  %1921 = vmatpush1.msra.mxu0 0.0
  %1922 = vmatprep.subr.mxu0 0.0
  %1923 = vmatpush1.msra.mxu0 0.0
  %1924 = vmatprep.subr.mxu0 0.0
  %1925 = vmatpush1.msra.mxu0 0.0
  %1926 = vmatprep.subr.mxu0 0.0
  %1927 = vmatpush1.msra.mxu0 0.0
  %1928 = vmatprep.subr.mxu0 0.0
  %1929 = vmatpush1.msra.mxu0 0.0
  %1930 = vmatprep.subr.mxu0 0.0
  %1931 = vmatpush1.msra.mxu0 0.0
  %1932 = vmatprep.subr.mxu0 0.0
  %1933 = vmatpush1.msra.mxu0 0.0
  %1934 = vmatprep.subr.mxu0 0.0
  %1935 = vmatpush1.msra.mxu0 0.0
  %1936 = vmatprep.subr.mxu0 0.0
  %1937 = vmatpush1.msra.mxu0 0.0
  %1938 = vmatprep.subr.mxu0 0.0
  %1939 = vmatpush1.msra.mxu0 0.0
  %1940 = vmatprep.subr.mxu0 0.0
  %1941 = vmatpush1.msra.mxu0 0.0
  %1942 = vmatprep.subr.mxu0 0.0
  %1943 = vmatpush1.msra.mxu0 0.0
  %1944 = vmatprep.subr.mxu0 0.0
  %1945 = vmatpush1.msra.mxu0 0.0
  %1946 = vmatprep.mubr.f32.mxu0 0.0
  %1947 = vmatmul.mubr.f32.gmra.mrb[0].mxu0 %v1880
  %v1948 = vpop.f32.mrb[0].mxu0
  %v1949 = vadd.f32 0.0, %v1948
  %v1950 = vpop.f32.mrb[0].mxu0
  %1951 = vdwg.mxu0
  %1952 = vmatprep.subr.mxu0 0.0
  %1953 = vmatpush1.msra.mxu0 %v415
  %1954 = vmatprep.subr.mxu0 0.0
  %1955 = vmatpush1.msra.mxu0 %v416
  %1956 = vmatprep.subr.mxu0 0.0
  %1957 = vmatpush1.msra.mxu0 %v417
  %1958 = vmatprep.subr.mxu0 0.0
  %1959 = vmatpush1.msra.mxu0 %v418
  %1960 = vmatprep.subr.mxu0 0.0
  %1961 = vmatpush1.msra.mxu0 0.0
  %1962 = vmatprep.subr.mxu0 0.0
  %1963 = vmatpush1.msra.mxu0 0.0
  %1964 = vmatprep.subr.mxu0 0.0
  %1965 = vmatpush1.msra.mxu0 0.0
  %1966 = vmatprep.subr.mxu0 0.0
  %1967 = vmatpush1.msra.mxu0 0.0
  %1968 = vmatprep.subr.mxu0 0.0
  %1969 = vmatpush1.msra.mxu0 0.0
  %1970 = vmatprep.subr.mxu0 0.0
  %1971 = vmatpush1.msra.mxu0 0.0
  %1972 = vmatprep.subr.mxu0 0.0
  %1973 = vmatpush1.msra.mxu0 0.0
  %1974 = vmatprep.subr.mxu0 0.0
  %1975 = vmatpush1.msra.mxu0 0.0
  %1976 = vmatprep.subr.mxu0 0.0
  %1977 = vmatpush1.msra.mxu0 0.0
  %1978 = vmatprep.subr.mxu0 0.0
  %1979 = vmatpush1.msra.mxu0 0.0
  %1980 = vmatprep.subr.mxu0 0.0
  %1981 = vmatpush1.msra.mxu0 0.0
  %1982 = vmatprep.subr.mxu0 0.0
  %1983 = vmatpush1.msra.mxu0 0.0
  %1984 = vmatprep.subr.mxu0 0.0
  %1985 = vmatpush1.msra.mxu0 0.0
  %1986 = vmatprep.subr.mxu0 0.0
  %1987 = vmatpush1.msra.mxu0 0.0
  %1988 = vmatprep.subr.mxu0 0.0
  %1989 = vmatpush1.msra.mxu0 0.0
  %1990 = vmatprep.subr.mxu0 0.0
  %1991 = vmatpush1.msra.mxu0 0.0
  %1992 = vmatprep.subr.mxu0 0.0
  %1993 = vmatpush1.msra.mxu0 0.0
  %1994 = vmatprep.subr.mxu0 0.0
  %1995 = vmatpush1.msra.mxu0 0.0
  %1996 = vmatprep.subr.mxu0 0.0
  %1997 = vmatpush1.msra.mxu0 0.0
  %1998 = vmatprep.subr.mxu0 0.0
  %1999 = vmatpush1.msra.mxu0 0.0
  %2000 = vmatprep.subr.mxu0 0.0
  %2001 = vmatpush1.msra.mxu0 0.0
  %2002 = vmatprep.subr.mxu0 0.0
  %2003 = vmatpush1.msra.mxu0 0.0
  %2004 = vmatprep.subr.mxu0 0.0
  %2005 = vmatpush1.msra.mxu0 0.0
  %2006 = vmatprep.subr.mxu0 0.0
  %2007 = vmatpush1.msra.mxu0 0.0
  %2008 = vmatprep.subr.mxu0 0.0
  %2009 = vmatpush1.msra.mxu0 0.0
  %2010 = vmatprep.subr.mxu0 0.0
  %2011 = vmatpush1.msra.mxu0 0.0
  %2012 = vmatprep.subr.mxu0 0.0
  %2013 = vmatpush1.msra.mxu0 0.0
  %2014 = vmatprep.subr.mxu0 0.0
  %2015 = vmatpush1.msra.mxu0 0.0
  %2016 = vmatprep.mubr.f32.mxu0 0.0
  %2017 = vmatmul.mubr.f32.gmra.mrb[0].mxu0 %v1880
  %v2018 = vpop.f32.mrb[0].mxu0
  %v2019 = vadd.f32 0.0, %v2018
  %v2020 = vpop.f32.mrb[0].mxu0
  %2021 = vdwg.mxu0
  %2022 = vmatprep.subr.mxu0 0.0
  %2023 = vmatpush1.msra.mxu0 %v419
  %2024 = vmatprep.subr.mxu0 0.0
  %2025 = vmatpush1.msra.mxu0 %v420
  %2026 = vmatprep.subr.mxu0 0.0
  %2027 = vmatpush1.msra.mxu0 %v421
  %2028 = vmatprep.subr.mxu0 0.0
  %2029 = vmatpush1.msra.mxu0 %v422
  %2030 = vmatprep.subr.mxu0 0.0
  %2031 = vmatpush1.msra.mxu0 0.0
  %2032 = vmatprep.subr.mxu0 0.0
  %2033 = vmatpush1.msra.mxu0 0.0
  %2034 = vmatprep.subr.mxu0 0.0
  %2035 = vmatpush1.msra.mxu0 0.0
  %2036 = vmatprep.subr.mxu0 0.0
  %2037 = vmatpush1.msra.mxu0 0.0
  %2038 = vmatprep.subr.mxu0 0.0
  %2039 = vmatpush1.msra.mxu0 0.0
  %2040 = vmatprep.subr.mxu0 0.0
  %2041 = vmatpush1.msra.mxu0 0.0
  %2042 = vmatprep.subr.mxu0 0.0
  %2043 = vmatpush1.msra.mxu0 0.0
  %2044 = vmatprep.subr.mxu0 0.0
  %2045 = vmatpush1.msra.mxu0 0.0
  %2046 = vmatprep.subr.mxu0 0.0
  %2047 = vmatpush1.msra.mxu0 0.0
  %2048 = vmatprep.subr.mxu0 0.0
  %2049 = vmatpush1.msra.mxu0 0.0
  %2050 = vmatprep.subr.mxu0 0.0
  %2051 = vmatpush1.msra.mxu0 0.0
  %2052 = vmatprep.subr.mxu0 0.0
  %2053 = vmatpush1.msra.mxu0 0.0
  %2054 = vmatprep.subr.mxu0 0.0
  %2055 = vmatpush1.msra.mxu0 0.0
  %2056 = vmatprep.subr.mxu0 0.0
  %2057 = vmatpush1.msra.mxu0 0.0
  %2058 = vmatprep.subr.mxu0 0.0
  %2059 = vmatpush1.msra.mxu0 0.0
  %2060 = vmatprep.subr.mxu0 0.0
  %2061 = vmatpush1.msra.mxu0 0.0
  %2062 = vmatprep.subr.mxu0 0.0
  %2063 = vmatpush1.msra.mxu0 0.0
  %2064 = vmatprep.subr.mxu0 0.0
  %2065 = vmatpush1.msra.mxu0 0.0
  %2066 = vmatprep.subr.mxu0 0.0
  %2067 = vmatpush1.msra.mxu0 0.0
  %2068 = vmatprep.subr.mxu0 0.0
  %2069 = vmatpush1.msra.mxu0 0.0
  %2070 = vmatprep.subr.mxu0 0.0
  %2071 = vmatpush1.msra.mxu0 0.0
  %2072 = vmatprep.subr.mxu0 0.0
  %2073 = vmatpush1.msra.mxu0 0.0
  %2074 = vmatprep.subr.mxu0 0.0
  %2075 = vmatpush1.msra.mxu0 0.0
  %2076 = vmatprep.subr.mxu0 0.0
  %2077 = vmatpush1.msra.mxu0 0.0
  %2078 = vmatprep.subr.mxu0 0.0
  %2079 = vmatpush1.msra.mxu0 0.0
  %2080 = vmatprep.subr.mxu0 0.0
  %2081 = vmatpush1.msra.mxu0 0.0
  %2082 = vmatprep.subr.mxu0 0.0
  %2083 = vmatpush1.msra.mxu0 0.0
  %2084 = vmatprep.subr.mxu0 0.0
  %2085 = vmatpush1.msra.mxu0 0.0
  %2086 = vmatprep.mubr.f32.mxu0 0.0
  %2087 = vmatmul.mubr.f32.gmra.mrb[0].mxu0 %v1880
  %v2088 = vpop.f32.mrb[0].mxu0
  %v2089 = vadd.f32 %v428, %v2088
  %v2090 = vpop.f32.mrb[0].mxu0
  %2091 = vdwg.mxu0
  %s2092 = scalar_lea.vmem [#allocation4], 48
  %v2093 = vld [vmem:[%s2092] sm:$0xff]
  %v2094 = vadd.f32 %v2093, %v1949
  %v2095 = vxor.u32 %v2094, 2147483648
  %v2096 = vmul.f32 %v2095, 1.442695
  %v2097 = vpow.pop %v2096
  %v2098 = vadd.f32 %v2097, 1.0
  %v2099 = vrcp.pop %v2098
  %v2100 = vmul.f32 1.0, %v2099
  %s2101 = scalar_lea.vmem [#allocation5], 48
  %v2102 = vld [vmem:[%s2101] sm:$0xff]
  %v2103 = vadd.f32 %v2102, %v2019
  %v2104 = vxor.u32 %v2103, 2147483648
  %v2105 = vmul.f32 %v2104, 1.442695
  %v2106 = vpow.pop %v2105
  %v2107 = vadd.f32 %v2106, 1.0
  %v2108 = vrcp.pop %v2107
  %v2109 = vmul.f32 1.0, %v2108
  %s2110 = scalar_lea.vmem [#allocation6], 48
  %v2111 = vld [vmem:[%s2110] sm:$0xff]
  %v2112 = vmul.f32 %v2100, %v2089
  %v2113 = vadd.f32 %v2111, %v2112
  %v2114 = vtanh.pop %v2113
  %v2115 = vsub.f32 1.0, %v2109
  %v2116 = vmul.f32 %v2115, %v2114
  %v2117 = vmul.f32 %v2109, %v1876
  %v2118 = vadd.f32 %v2116, %v2117
  %s2119 = scalar_lea.vmem [#allocation3], 48
  %2120 = vst.msk [vmem:[%s2119] sm:$0xff] %vm330, %v2118
  %v2122 = vsel %vm330, %v2118, 0
  %2124 = vmatprep.subr.mxu0 0.0
  %2125 = vmatpush1.msra.mxu0 %v411
  %2126 = vmatprep.subr.mxu0 0.0
  %2127 = vmatpush1.msra.mxu0 %v412
  %2128 = vmatprep.subr.mxu0 0.0
  %2129 = vmatpush1.msra.mxu0 %v413
  %2130 = vmatprep.subr.mxu0 0.0
  %2131 = vmatpush1.msra.mxu0 %v414
  %2132 = vmatprep.subr.mxu0 0.0
  %2133 = vmatpush1.msra.mxu0 0.0
  %2134 = vmatprep.subr.mxu0 0.0
  %2135 = vmatpush1.msra.mxu0 0.0
  %2136 = vmatprep.subr.mxu0 0.0
  %2137 = vmatpush1.msra.mxu0 0.0
  %2138 = vmatprep.subr.mxu0 0.0
  %2139 = vmatpush1.msra.mxu0 0.0
  %2140 = vmatprep.subr.mxu0 0.0
  %2141 = vmatpush1.msra.mxu0 0.0
  %2142 = vmatprep.subr.mxu0 0.0
  %2143 = vmatpush1.msra.mxu0 0.0
  %2144 = vmatprep.subr.mxu0 0.0
  %2145 = vmatpush1.msra.mxu0 0.0
  %2146 = vmatprep.subr.mxu0 0.0
  %2147 = vmatpush1.msra.mxu0 0.0
  %2148 = vmatprep.subr.mxu0 0.0
  %2149 = vmatpush1.msra.mxu0 0.0
  %2150 = vmatprep.subr.mxu0 0.0
  %2151 = vmatpush1.msra.mxu0 0.0
  %2152 = vmatprep.subr.mxu0 0.0
  %2153 = vmatpush1.msra.mxu0 0.0
  %2154 = vmatprep.subr.mxu0 0.0
  %2155 = vmatpush1.msra.mxu0 0.0
  %2156 = vmatprep.subr.mxu0 0.0
  %2157 = vmatpush1.msra.mxu0 0.0
  %2158 = vmatprep.subr.mxu0 0.0
  %2159 = vmatpush1.msra.mxu0 0.0
  %2160 = vmatprep.subr.mxu0 0.0
  %2161 = vmatpush1.msra.mxu0 0.0
  %2162 = vmatprep.subr.mxu0 0.0
  %2163 = vmatpush1.msra.mxu0 0.0
  %2164 = vmatprep.subr.mxu0 0.0
  %2165 = vmatpush1.msra.mxu0 0.0
  %2166 = vmatprep.subr.mxu0 0.0
  %2167 = vmatpush1.msra.mxu0 0.0
  %2168 = vmatprep.subr.mxu0 0.0
  %2169 = vmatpush1.msra.mxu0 0.0
  %2170 = vmatprep.subr.mxu0 0.0
  %2171 = vmatpush1.msra.mxu0 0.0
  %2172 = vmatprep.subr.mxu0 0.0
  %2173 = vmatpush1.msra.mxu0 0.0
  %2174 = vmatprep.subr.mxu0 0.0
  %2175 = vmatpush1.msra.mxu0 0.0
  %2176 = vmatprep.subr.mxu0 0.0
  %2177 = vmatpush1.msra.mxu0 0.0
  %2178 = vmatprep.subr.mxu0 0.0
  %2179 = vmatpush1.msra.mxu0 0.0
  %2180 = vmatprep.subr.mxu0 0.0
  %2181 = vmatpush1.msra.mxu0 0.0
  %2182 = vmatprep.subr.mxu0 0.0
  %2183 = vmatpush1.msra.mxu0 0.0
  %2184 = vmatprep.subr.mxu0 0.0
  %2185 = vmatpush1.msra.mxu0 0.0
  %2186 = vmatprep.subr.mxu0 0.0
  %2187 = vmatpush1.msra.mxu0 0.0
  %2188 = vmatprep.mubr.f32.mxu0 0.0
  %2189 = vmatmul.mubr.f32.gmra.mrb[0].mxu0 %v2122
  %v2190 = vpop.f32.mrb[0].mxu0
  %v2191 = vadd.f32 0.0, %v2190
  %v2192 = vpop.f32.mrb[0].mxu0
  %2193 = vdwg.mxu0
  %2194 = vmatprep.subr.mxu0 0.0
  %2195 = vmatpush1.msra.mxu0 %v415
  %2196 = vmatprep.subr.mxu0 0.0
  %2197 = vmatpush1.msra.mxu0 %v416
  %2198 = vmatprep.subr.mxu0 0.0
  %2199 = vmatpush1.msra.mxu0 %v417
  %2200 = vmatprep.subr.mxu0 0.0
  %2201 = vmatpush1.msra.mxu0 %v418
  %2202 = vmatprep.subr.mxu0 0.0
  %2203 = vmatpush1.msra.mxu0 0.0
  %2204 = vmatprep.subr.mxu0 0.0
  %2205 = vmatpush1.msra.mxu0 0.0
  %2206 = vmatprep.subr.mxu0 0.0
  %2207 = vmatpush1.msra.mxu0 0.0
  %2208 = vmatprep.subr.mxu0 0.0
  %2209 = vmatpush1.msra.mxu0 0.0
  %2210 = vmatprep.subr.mxu0 0.0
  %2211 = vmatpush1.msra.mxu0 0.0
  %2212 = vmatprep.subr.mxu0 0.0
  %2213 = vmatpush1.msra.mxu0 0.0
  %2214 = vmatprep.subr.mxu0 0.0
  %2215 = vmatpush1.msra.mxu0 0.0
  %2216 = vmatprep.subr.mxu0 0.0
  %2217 = vmatpush1.msra.mxu0 0.0
  %2218 = vmatprep.subr.mxu0 0.0
  %2219 = vmatpush1.msra.mxu0 0.0
  %2220 = vmatprep.subr.mxu0 0.0
  %2221 = vmatpush1.msra.mxu0 0.0
  %2222 = vmatprep.subr.mxu0 0.0
  %2223 = vmatpush1.msra.mxu0 0.0
  %2224 = vmatprep.subr.mxu0 0.0
  %2225 = vmatpush1.msra.mxu0 0.0
  %2226 = vmatprep.subr.mxu0 0.0
  %2227 = vmatpush1.msra.mxu0 0.0
  %2228 = vmatprep.subr.mxu0 0.0
  %2229 = vmatpush1.msra.mxu0 0.0
  %2230 = vmatprep.subr.mxu0 0.0
  %2231 = vmatpush1.msra.mxu0 0.0
  %2232 = vmatprep.subr.mxu0 0.0
  %2233 = vmatpush1.msra.mxu0 0.0
  %2234 = vmatprep.subr.mxu0 0.0
  %2235 = vmatpush1.msra.mxu0 0.0
  %2236 = vmatprep.subr.mxu0 0.0
  %2237 = vmatpush1.msra.mxu0 0.0
  %2238 = vmatprep.subr.mxu0 0.0
  %2239 = vmatpush1.msra.mxu0 0.0
  %2240 = vmatprep.subr.mxu0 0.0
  %2241 = vmatpush1.msra.mxu0 0.0
  %2242 = vmatprep.subr.mxu0 0.0
  %2243 = vmatpush1.msra.mxu0 0.0
  %2244 = vmatprep.subr.mxu0 0.0
  %2245 = vmatpush1.msra.mxu0 0.0
  %2246 = vmatprep.subr.mxu0 0.0
  %2247 = vmatpush1.msra.mxu0 0.0
  %2248 = vmatprep.subr.mxu0 0.0
  %2249 = vmatpush1.msra.mxu0 0.0
  %2250 = vmatprep.subr.mxu0 0.0
  %2251 = vmatpush1.msra.mxu0 0.0
  %2252 = vmatprep.subr.mxu0 0.0
  %2253 = vmatpush1.msra.mxu0 0.0
  %2254 = vmatprep.subr.mxu0 0.0
  %2255 = vmatpush1.msra.mxu0 0.0
  %2256 = vmatprep.subr.mxu0 0.0
  %2257 = vmatpush1.msra.mxu0 0.0
  %2258 = vmatprep.mubr.f32.mxu0 0.0
  %2259 = vmatmul.mubr.f32.gmra.mrb[0].mxu0 %v2122
  %v2260 = vpop.f32.mrb[0].mxu0
  %v2261 = vadd.f32 0.0, %v2260
  %v2262 = vpop.f32.mrb[0].mxu0
  %2263 = vdwg.mxu0
  %2264 = vmatprep.subr.mxu0 0.0
  %2265 = vmatpush1.msra.mxu0 %v419
  %2266 = vmatprep.subr.mxu0 0.0
  %2267 = vmatpush1.msra.mxu0 %v420
  %2268 = vmatprep.subr.mxu0 0.0
  %2269 = vmatpush1.msra.mxu0 %v421
  %2270 = vmatprep.subr.mxu0 0.0
  %2271 = vmatpush1.msra.mxu0 %v422
  %2272 = vmatprep.subr.mxu0 0.0
  %2273 = vmatpush1.msra.mxu0 0.0
  %2274 = vmatprep.subr.mxu0 0.0
  %2275 = vmatpush1.msra.mxu0 0.0
  %2276 = vmatprep.subr.mxu0 0.0
  %2277 = vmatpush1.msra.mxu0 0.0
  %2278 = vmatprep.subr.mxu0 0.0
  %2279 = vmatpush1.msra.mxu0 0.0
  %2280 = vmatprep.subr.mxu0 0.0
  %2281 = vmatpush1.msra.mxu0 0.0
  %2282 = vmatprep.subr.mxu0 0.0
  %2283 = vmatpush1.msra.mxu0 0.0
  %2284 = vmatprep.subr.mxu0 0.0
  %2285 = vmatpush1.msra.mxu0 0.0
  %2286 = vmatprep.subr.mxu0 0.0
  %2287 = vmatpush1.msra.mxu0 0.0
  %2288 = vmatprep.subr.mxu0 0.0
  %2289 = vmatpush1.msra.mxu0 0.0
  %2290 = vmatprep.subr.mxu0 0.0
  %2291 = vmatpush1.msra.mxu0 0.0
  %2292 = vmatprep.subr.mxu0 0.0
  %2293 = vmatpush1.msra.mxu0 0.0
  %2294 = vmatprep.subr.mxu0 0.0
  %2295 = vmatpush1.msra.mxu0 0.0
  %2296 = vmatprep.subr.mxu0 0.0
  %2297 = vmatpush1.msra.mxu0 0.0
  %2298 = vmatprep.subr.mxu0 0.0
  %2299 = vmatpush1.msra.mxu0 0.0
  %2300 = vmatprep.subr.mxu0 0.0
  %2301 = vmatpush1.msra.mxu0 0.0
  %2302 = vmatprep.subr.mxu0 0.0
  %2303 = vmatpush1.msra.mxu0 0.0
  %2304 = vmatprep.subr.mxu0 0.0
  %2305 = vmatpush1.msra.mxu0 0.0
  %2306 = vmatprep.subr.mxu0 0.0
  %2307 = vmatpush1.msra.mxu0 0.0
  %2308 = vmatprep.subr.mxu0 0.0
  %2309 = vmatpush1.msra.mxu0 0.0
  %2310 = vmatprep.subr.mxu0 0.0
  %2311 = vmatpush1.msra.mxu0 0.0
  %2312 = vmatprep.subr.mxu0 0.0
  %2313 = vmatpush1.msra.mxu0 0.0
  %2314 = vmatprep.subr.mxu0 0.0
  %2315 = vmatpush1.msra.mxu0 0.0
  %2316 = vmatprep.subr.mxu0 0.0
  %2317 = vmatpush1.msra.mxu0 0.0
  %2318 = vmatprep.subr.mxu0 0.0
  %2319 = vmatpush1.msra.mxu0 0.0
  %2320 = vmatprep.subr.mxu0 0.0
  %2321 = vmatpush1.msra.mxu0 0.0
  %2322 = vmatprep.subr.mxu0 0.0
  %2323 = vmatpush1.msra.mxu0 0.0
  %2324 = vmatprep.subr.mxu0 0.0
  %2325 = vmatpush1.msra.mxu0 0.0
  %2326 = vmatprep.subr.mxu0 0.0
  %2327 = vmatpush1.msra.mxu0 0.0
  %2328 = vmatprep.mubr.f32.mxu0 0.0
  %2329 = vmatmul.mubr.f32.gmra.mrb[0].mxu0 %v2122
  %v2330 = vpop.f32.mrb[0].mxu0
  %v2331 = vadd.f32 %v428, %v2330
  %v2332 = vpop.f32.mrb[0].mxu0
  %2333 = vdwg.mxu0
  %s2334 = scalar_lea.vmem [#allocation4], 56
  %v2335 = vld [vmem:[%s2334] sm:$0xff]
  %v2336 = vadd.f32 %v2335, %v2191
  %v2337 = vxor.u32 %v2336, 2147483648
  %v2338 = vmul.f32 %v2337, 1.442695
  %v2339 = vpow.pop %v2338
  %v2340 = vadd.f32 %v2339, 1.0
  %v2341 = vrcp.pop %v2340
  %v2342 = vmul.f32 1.0, %v2341
  %s2343 = scalar_lea.vmem [#allocation5], 56
  %v2344 = vld [vmem:[%s2343] sm:$0xff]
  %v2345 = vadd.f32 %v2344, %v2261
  %v2346 = vxor.u32 %v2345, 2147483648
  %v2347 = vmul.f32 %v2346, 1.442695
  %v2348 = vpow.pop %v2347
  %v2349 = vadd.f32 %v2348, 1.0
  %v2350 = vrcp.pop %v2349
  %v2351 = vmul.f32 1.0, %v2350
  %s2352 = scalar_lea.vmem [#allocation6], 56
  %v2353 = vld [vmem:[%s2352] sm:$0xff]
  %v2354 = vmul.f32 %v2342, %v2331
  %v2355 = vadd.f32 %v2353, %v2354
  %v2356 = vtanh.pop %v2355
  %v2357 = vsub.f32 1.0, %v2351
  %v2358 = vmul.f32 %v2357, %v2356
  %v2359 = vmul.f32 %v2351, %v2118
  %v2360 = vadd.f32 %v2358, %v2359
  %s2361 = scalar_lea.vmem [#allocation3], 56
  %2362 = vst.msk [vmem:[%s2361] sm:$0xff] %vm330, %v2360
  %2363 = vst.msk [vmem:[#allocation2] sm:$0xff] %vm330, %v2360
  // Predicated region
  $region86: #{gru_critic_forward.1} parent=0 // pred_check
    %p2364 = pneg %p70
  $region87: #{gru_critic_forward.1} parent=0 // pred_check_branch
    %2366 = sbr.rel (%p2364) target = $region89
  $region88: #{gru_critic_forward.1} parent=0 // pred_region
    %2367 = vst.msk [vmem:[%s21] sm:$0xff] %vm330, %v2360
  $region89: #{gru_critic_forward.1} parent=0 // pred_fallthru
    _
  %v2368 = vld [vmem:[#allocation3] sm:$0xff]
  %v2369 = vld [vmem:[#allocation3 + $0x8] sm:$0xff]
  %v2370 = vld [vmem:[#allocation3 + $0x10] sm:$0xff]
  %v2371 = vld [vmem:[#allocation3 + $0x18] sm:$0xff]
  %v2372 = vld [vmem:[#allocation3 + $0x20] sm:$0xff]
  %v2373 = vld [vmem:[#allocation3 + $0x28] sm:$0xff]
  %v2374 = vld [vmem:[#allocation3 + $0x30] sm:$0xff]
  %v2375 = vld [vmem:[#allocation3 + $0x38] sm:$0xff]
  %v2376 = vpack.c.bf16 %v2369, %v2368
  %v2377 = vpack.c.bf16 %v2371, %v2370
  %v2378 = vpack.c.bf16 %v2373, %v2372
  %v2379 = vpack.c.bf16 %v2375, %v2374
  %v2380 = vld [vmem:[%s10] sm:$0xf]
  %v2381 = vld [vmem:[%s10 + $0x4] sm:$0xf]
  %v2382 = vld [vmem:[%s10 + $0x8] sm:$0xf]
  %v2383 = vld [vmem:[%s10 + $0xc] sm:$0xf]
  %v2384 = vld [vmem:[%s11] sm:$0x1]
  %v2386 = vlaneseq
  %v2387 = vshrl.u32 %v2386, 7
  %v2388 = vsub.s32 0, %v2387
  %v2389 = vrot.slane %v2384, %v2388
  %v2395 = vunpack.c.l.b16 %v2380
  %v2396 = vunpack.c.l.b16 %v2381
  %v2397 = vunpack.c.l.b16 %v2382
  %v2398 = vunpack.c.l.b16 %v2383
  %v2399 = vpack.c.b16 %v2396, %v2395
  %v2400 = vpack.c.b16 %v2398, %v2397
  %v2404 = vsel %vm330, %v2376, 0
  %v2407 = vsel %vm330, %v2377, 0
  %v2410 = vsel %vm330, %v2378, 0
  %v2413 = vsel %vm330, %v2379, 0
  %2415 = vmatprep.subr.bf16.mxu0 0
  %2416 = vmatpush1.bf16.msra.mxu0 %v2399
  %2417 = vmatprep.subr.bf16.mxu0 0
  %2418 = vmatpush1.bf16.msra.mxu0 %v2400
  %2419 = vmatprep.subr.bf16.mxu0 0
  %2420 = vmatpush1.bf16.msra.mxu0 0
  %2421 = vmatprep.subr.bf16.mxu0 0
  %2422 = vmatpush1.bf16.msra.mxu0 0
  %2423 = vmatprep.subr.bf16.mxu0 0
  %2424 = vmatpush1.bf16.msra.mxu0 0
  %2425 = vmatprep.subr.bf16.mxu0 0
  %2426 = vmatpush1.bf16.msra.mxu0 0
  %2427 = vmatprep.subr.bf16.mxu0 0
  %2428 = vmatpush1.bf16.msra.mxu0 0
  %2429 = vmatprep.subr.bf16.mxu0 0
  %2430 = vmatpush1.bf16.msra.mxu0 0
  %2431 = vmatprep.subr.bf16.mxu0 0
  %2432 = vmatpush1.bf16.msra.mxu0 0
  %2433 = vmatprep.subr.bf16.mxu0 0
  %2434 = vmatpush1.bf16.msra.mxu0 0
  %2435 = vmatprep.subr.bf16.mxu0 0
  %2436 = vmatpush1.bf16.msra.mxu0 0
  %2437 = vmatprep.subr.bf16.mxu0 0
  %2438 = vmatpush1.bf16.msra.mxu0 0
  %2439 = vmatprep.subr.bf16.mxu0 0
  %2440 = vmatpush1.bf16.msra.mxu0 0
  %2441 = vmatprep.subr.bf16.mxu0 0
  %2442 = vmatpush1.bf16.msra.mxu0 0
  %2443 = vmatprep.subr.bf16.mxu0 0
  %2444 = vmatpush1.bf16.msra.mxu0 0
  %2445 = vmatprep.subr.bf16.mxu0 0
  %2446 = vmatpush1.bf16.msra.mxu0 0
  %2447 = vmatprep.mubr.bf16.mxu0 0
  %2448 = vmatmul.mubr.bf16.gmra.mrb[0].mxu0 %v2404
  %v2449 = vpop.f32.mrb[0].mxu0
  %v2450 = vadd.f32 %v2389, %v2449
  %v2451 = vpop.f32.mrb[0].mxu0
  %v2452 = vpop.f32.mrb[0].mxu0
  %v2453 = vadd.f32 %v2389, %v2452
  %v2454 = vpop.f32.mrb[0].mxu0
  %2455 = vmatprep.mubr.bf16.mxu0 0
  %2456 = vmatmul.mubr.bf16.gmra.mrb[0].mxu0 %v2407
  %v2457 = vpop.f32.mrb[0].mxu0
  %v2458 = vadd.f32 %v2389, %v2457
  %v2459 = vpop.f32.mrb[0].mxu0
  %v2460 = vpop.f32.mrb[0].mxu0
  %v2461 = vadd.f32 %v2389, %v2460
  %v2462 = vpop.f32.mrb[0].mxu0
  %2463 = vmatprep.mubr.bf16.mxu0 0
  %2464 = vmatmul.mubr.bf16.gmra.mrb[0].mxu0 %v2410
  %v2465 = vpop.f32.mrb[0].mxu0
  %v2466 = vadd.f32 %v2389, %v2465
  %v2467 = vpop.f32.mrb[0].mxu0
  %v2468 = vpop.f32.mrb[0].mxu0
  %v2469 = vadd.f32 %v2389, %v2468
  %v2470 = vpop.f32.mrb[0].mxu0
  %2471 = vmatprep.mubr.bf16.mxu0 0
  %2472 = vmatmul.mubr.bf16.gmra.mrb[0].mxu0 %v2413
  %v2473 = vpop.f32.mrb[0].mxu0
  %v2474 = vadd.f32 %v2389, %v2473
  %v2475 = vpop.f32.mrb[0].mxu0
  %v2476 = vpop.f32.mrb[0].mxu0
  %v2477 = vadd.f32 %v2389, %v2476
  %v2478 = vpop.f32.mrb[0].mxu0
  %2479 = vdwg.mxu0
  %v2480 = vld [vmem:[%s12] sm:$0x1]
  %v2481 = vld [vmem:[%s13] sm:$0x1]
  %v2482 = vsel %vm330, %v2450, 0.0
  %2483 = vadd.xlane.f32.xlu0 %v2482
  %v2484 = vpop.xlane.xlu0 %2483
  %v2485 = vsel %vm330, %v2453, 0.0
  %2486 = vadd.xlane.f32.xlu0 %v2485
  %v2487 = vpop.xlane.xlu0 %2486
  %v2488 = vsel %vm330, %v2458, 0.0
  %2489 = vadd.xlane.f32.xlu0 %v2488
  %v2490 = vpop.xlane.xlu0 %2489
  %v2491 = vsel %vm330, %v2461, 0.0
  %2492 = vadd.xlane.f32.xlu0 %v2491
  %v2493 = vpop.xlane.xlu0 %2492
  %v2494 = vsel %vm330, %v2466, 0.0
  %2495 = vadd.xlane.f32.xlu0 %v2494
  %v2496 = vpop.xlane.xlu0 %2495
  %v2497 = vsel %vm330, %v2469, 0.0
  %2498 = vadd.xlane.f32.xlu0 %v2497
  %v2499 = vpop.xlane.xlu0 %2498
  %v2500 = vsel %vm330, %v2474, 0.0
  %2501 = vadd.xlane.f32.xlu0 %v2500
  %v2502 = vpop.xlane.xlu0 %2501
  %v2503 = vsel %vm330, %v2477, 0.0
  %2504 = vadd.xlane.f32.xlu0 %v2503
  %v2505 = vpop.xlane.xlu0 %2504
  %v2506 = vrcp.pop 32.0
  %v2507 = vmul.f32 %v2484, %v2506
  %v2508 = vmul.f32 %v2487, %v2506
  %v2509 = vmul.f32 %v2490, %v2506
  %v2510 = vmul.f32 %v2493, %v2506
  %v2511 = vmul.f32 %v2496, %v2506
  %v2512 = vmul.f32 %v2499, %v2506
  %v2513 = vmul.f32 %v2502, %v2506
  %v2514 = vmul.f32 %v2505, %v2506
  %v2515 = vsub.f32 %v2450, %v2507
  %v2516 = vsub.f32 %v2453, %v2508
  %v2517 = vsub.f32 %v2458, %v2509
  %v2518 = vsub.f32 %v2461, %v2510
  %v2519 = vsub.f32 %v2466, %v2511
  %v2520 = vsub.f32 %v2469, %v2512
  %v2521 = vsub.f32 %v2474, %v2513
  %v2522 = vsub.f32 %v2477, %v2514
  %v2523 = vmul.f32 %v2515, %v2515
  %v2524 = vmul.f32 %v2516, %v2516
  %v2525 = vmul.f32 %v2517, %v2517
  %v2526 = vmul.f32 %v2518, %v2518
  %v2527 = vmul.f32 %v2519, %v2519
  %v2528 = vmul.f32 %v2520, %v2520
  %v2529 = vmul.f32 %v2521, %v2521
  %v2530 = vmul.f32 %v2522, %v2522
  %v2531 = vsel %vm330, %v2523, 0.0
  %2532 = vadd.xlane.f32.xlu0 %v2531
  %v2533 = vpop.xlane.xlu0 %2532
  %v2534 = vsel %vm330, %v2524, 0.0
  %2535 = vadd.xlane.f32.xlu0 %v2534
  %v2536 = vpop.xlane.xlu0 %2535
  %v2537 = vsel %vm330, %v2525, 0.0
  %2538 = vadd.xlane.f32.xlu0 %v2537
  %v2539 = vpop.xlane.xlu0 %2538
  %v2540 = vsel %vm330, %v2526, 0.0
  %2541 = vadd.xlane.f32.xlu0 %v2540
  %v2542 = vpop.xlane.xlu0 %2541
  %v2543 = vsel %vm330, %v2527, 0.0
  %2544 = vadd.xlane.f32.xlu0 %v2543
  %v2545 = vpop.xlane.xlu0 %2544
  %v2546 = vsel %vm330, %v2528, 0.0
  %2547 = vadd.xlane.f32.xlu0 %v2546
  %v2548 = vpop.xlane.xlu0 %2547
  %v2549 = vsel %vm330, %v2529, 0.0
  %2550 = vadd.xlane.f32.xlu0 %v2549
  %v2551 = vpop.xlane.xlu0 %2550
  %v2552 = vsel %vm330, %v2530, 0.0
  %2553 = vadd.xlane.f32.xlu0 %v2552
  %v2554 = vpop.xlane.xlu0 %2553
  %v2555 = vmul.f32 %v2533, %v2506
  %v2556 = vmul.f32 %v2536, %v2506
  %v2557 = vmul.f32 %v2539, %v2506
  %v2558 = vmul.f32 %v2542, %v2506
  %v2559 = vmul.f32 %v2545, %v2506
  %v2560 = vmul.f32 %v2548, %v2506
  %v2561 = vmul.f32 %v2551, %v2506
  %v2562 = vmul.f32 %v2554, %v2506
  %v2563 = vadd.f32 %v2555, 1e-05
  %v2564 = vadd.f32 %v2556, 1e-05
  %v2565 = vadd.f32 %v2557, 1e-05
  %v2566 = vadd.f32 %v2558, 1e-05
  %v2567 = vadd.f32 %v2559, 1e-05
  %v2568 = vadd.f32 %v2560, 1e-05
  %v2569 = vadd.f32 %v2561, 1e-05
  %v2570 = vadd.f32 %v2562, 1e-05
  %v2571 = vrsqrt.pop %v2563
  %v2572 = vrsqrt.pop %v2564
  %v2573 = vrsqrt.pop %v2565
  %v2574 = vrsqrt.pop %v2566
  %v2575 = vrsqrt.pop %v2567
  %v2576 = vrsqrt.pop %v2568
  %v2577 = vrsqrt.pop %v2569
  %v2578 = vrsqrt.pop %v2570
  %v2579 = vmul.f32 %v2515, %v2571
  %v2580 = vmul.f32 %v2516, %v2572
  %v2581 = vmul.f32 %v2517, %v2573
  %v2582 = vmul.f32 %v2518, %v2574
  %v2583 = vmul.f32 %v2519, %v2575
  %v2584 = vmul.f32 %v2520, %v2576
  %v2585 = vmul.f32 %v2521, %v2577
  %v2586 = vmul.f32 %v2522, %v2578
  %v2588 = vlaneseq
  %v2589 = vshrl.u32 %v2588, 7
  %v2590 = vsub.s32 0, %v2589
  %v2591 = vrot.slane %v2480, %v2590
  %v2593 = vmul.f32 %v2579, %v2591
  %v2594 = vmul.f32 %v2580, %v2591
  %v2595 = vmul.f32 %v2581, %v2591
  %v2596 = vmul.f32 %v2582, %v2591
  %v2597 = vmul.f32 %v2583, %v2591
  %v2598 = vmul.f32 %v2584, %v2591
  %v2599 = vmul.f32 %v2585, %v2591
  %v2600 = vmul.f32 %v2586, %v2591
  %v2602 = vlaneseq
  %v2603 = vshrl.u32 %v2602, 7
  %v2604 = vsub.s32 0, %v2603
  %v2605 = vrot.slane %v2481, %v2604
  %v2607 = vadd.f32 %v2593, %v2605
  %v2608 = vadd.f32 %v2594, %v2605
  %v2609 = vadd.f32 %v2595, %v2605
  %v2610 = vadd.f32 %v2596, %v2605
  %v2611 = vadd.f32 %v2597, %v2605
  %v2612 = vadd.f32 %v2598, %v2605
  %v2613 = vadd.f32 %v2599, %v2605
  %v2614 = vadd.f32 %v2600, %v2605
  %vm2615 = vcmp.gt.f32.partialorder %v2607, 0.0
  %vm2616 = vcmp.gt.f32.partialorder %v2608, 0.0
  %vm2617 = vcmp.gt.f32.partialorder %v2609, 0.0
  %vm2618 = vcmp.gt.f32.partialorder %v2610, 0.0
  %vm2619 = vcmp.gt.f32.partialorder %v2611, 0.0
  %vm2620 = vcmp.gt.f32.partialorder %v2612, 0.0
  %vm2621 = vcmp.gt.f32.partialorder %v2613, 0.0
  %vm2622 = vcmp.gt.f32.partialorder %v2614, 0.0
  %v2623 = vmul.f32 %v2607, 0.01
  %v2624 = vmul.f32 %v2608, 0.01
  %v2625 = vmul.f32 %v2609, 0.01
  %v2626 = vmul.f32 %v2610, 0.01
  %v2627 = vmul.f32 %v2611, 0.01
  %v2628 = vmul.f32 %v2612, 0.01
  %v2629 = vmul.f32 %v2613, 0.01
  %v2630 = vmul.f32 %v2614, 0.01
  %v2631 = vsel %vm2615, %v2607, %v2623
  %v2632 = vsel %vm2616, %v2608, %v2624
  %v2633 = vsel %vm2617, %v2609, %v2625
  %v2634 = vsel %vm2618, %v2610, %v2626
  %v2635 = vsel %vm2619, %v2611, %v2627
  %v2636 = vsel %vm2620, %v2612, %v2628
  %v2637 = vsel %vm2621, %v2613, %v2629
  %v2638 = vsel %vm2622, %v2614, %v2630
  %v2639 = vpack.c.bf16 %v2632, %v2631
  %v2640 = vpack.c.bf16 %v2634, %v2633
  %v2641 = vpack.c.bf16 %v2636, %v2635
  %v2642 = vpack.c.bf16 %v2638, %v2637
  %v2643 = vld [vmem:[%s14] sm:$0xf]
  %v2644 = vld [vmem:[%s14 + $0x4] sm:$0xf]
  %v2645 = vld [vmem:[%s14 + $0x8] sm:$0xf]
  %v2646 = vld [vmem:[%s14 + $0xc] sm:$0xf]
  %v2647 = vld [vmem:[%s15] sm:$0x1]
  %v2649 = vlaneseq
  %v2650 = vshrl.u32 %v2649, 7
  %v2651 = vsub.s32 0, %v2650
  %v2652 = vrot.slane %v2647, %v2651
  %v2658 = vunpack.c.l.b16 %v2643
  %v2659 = vunpack.c.l.b16 %v2644
  %v2660 = vunpack.c.l.b16 %v2645
  %v2661 = vunpack.c.l.b16 %v2646
  %v2662 = vpack.c.b16 %v2659, %v2658
  %v2663 = vpack.c.b16 %v2661, %v2660
  %v2667 = vsel %vm330, %v2639, 0
  %v2670 = vsel %vm330, %v2640, 0
  %v2673 = vsel %vm330, %v2641, 0
  %v2676 = vsel %vm330, %v2642, 0
  %2678 = vmatprep.subr.bf16.mxu0 0
  %2679 = vmatpush1.bf16.msra.mxu0 %v2662
  %2680 = vmatprep.subr.bf16.mxu0 0
  %2681 = vmatpush1.bf16.msra.mxu0 %v2663
  %2682 = vmatprep.subr.bf16.mxu0 0
  %2683 = vmatpush1.bf16.msra.mxu0 0
  %2684 = vmatprep.subr.bf16.mxu0 0
  %2685 = vmatpush1.bf16.msra.mxu0 0
  %2686 = vmatprep.subr.bf16.mxu0 0
  %2687 = vmatpush1.bf16.msra.mxu0 0
  %2688 = vmatprep.subr.bf16.mxu0 0
  %2689 = vmatpush1.bf16.msra.mxu0 0
  %2690 = vmatprep.subr.bf16.mxu0 0
  %2691 = vmatpush1.bf16.msra.mxu0 0
  %2692 = vmatprep.subr.bf16.mxu0 0
  %2693 = vmatpush1.bf16.msra.mxu0 0
  %2694 = vmatprep.subr.bf16.mxu0 0
  %2695 = vmatpush1.bf16.msra.mxu0 0
  %2696 = vmatprep.subr.bf16.mxu0 0
  %2697 = vmatpush1.bf16.msra.mxu0 0
  %2698 = vmatprep.subr.bf16.mxu0 0
  %2699 = vmatpush1.bf16.msra.mxu0 0
  %2700 = vmatprep.subr.bf16.mxu0 0
  %2701 = vmatpush1.bf16.msra.mxu0 0
  %2702 = vmatprep.subr.bf16.mxu0 0
  %2703 = vmatpush1.bf16.msra.mxu0 0
  %2704 = vmatprep.subr.bf16.mxu0 0
  %2705 = vmatpush1.bf16.msra.mxu0 0
  %2706 = vmatprep.subr.bf16.mxu0 0
  %2707 = vmatpush1.bf16.msra.mxu0 0
  %2708 = vmatprep.subr.bf16.mxu0 0
  %2709 = vmatpush1.bf16.msra.mxu0 0
  %2710 = vmatprep.mubr.bf16.mxu0 0
  %2711 = vmatmul.mubr.bf16.gmra.mrb[0].mxu0 %v2667
  %v2712 = vpop.f32.mrb[0].mxu0
  %v2713 = vadd.f32 %v2652, %v2712
  %v2714 = vpop.f32.mrb[0].mxu0
  %v2715 = vpop.f32.mrb[0].mxu0
  %v2716 = vadd.f32 %v2652, %v2715
  %v2717 = vpop.f32.mrb[0].mxu0
  %2718 = vmatprep.mubr.bf16.mxu0 0
  %2719 = vmatmul.mubr.bf16.gmra.mrb[0].mxu0 %v2670
  %v2720 = vpop.f32.mrb[0].mxu0
  %v2721 = vadd.f32 %v2652, %v2720
  %v2722 = vpop.f32.mrb[0].mxu0
  %v2723 = vpop.f32.mrb[0].mxu0
  %v2724 = vadd.f32 %v2652, %v2723
  %v2725 = vpop.f32.mrb[0].mxu0
  %2726 = vmatprep.mubr.bf16.mxu0 0
  %2727 = vmatmul.mubr.bf16.gmra.mrb[0].mxu0 %v2673
  %v2728 = vpop.f32.mrb[0].mxu0
  %v2729 = vadd.f32 %v2652, %v2728
  %v2730 = vpop.f32.mrb[0].mxu0
  %v2731 = vpop.f32.mrb[0].mxu0
  %v2732 = vadd.f32 %v2652, %v2731
  %v2733 = vpop.f32.mrb[0].mxu0
  %2734 = vmatprep.mubr.bf16.mxu0 0
  %2735 = vmatmul.mubr.bf16.gmra.mrb[0].mxu0 %v2676
  %v2736 = vpop.f32.mrb[0].mxu0
  %v2737 = vadd.f32 %v2652, %v2736
  %v2738 = vpop.f32.mrb[0].mxu0
  %v2739 = vpop.f32.mrb[0].mxu0
  %v2740 = vadd.f32 %v2652, %v2739
  %v2741 = vpop.f32.mrb[0].mxu0
  %2742 = vdwg.mxu0
  %v2743 = vld [vmem:[%s16] sm:$0x1]
  %v2744 = vld [vmem:[%s17] sm:$0x1]
  %vm2745 = vcmask 130048
  %v2746 = vsel %vm2745, %v2713, 0.0
  %2747 = vadd.xlane.f32.xlu0 %v2746
  %v2748 = vpop.xlane.xlu0 %2747
  %v2749 = vsel %vm2745, %v2716, 0.0
  %2750 = vadd.xlane.f32.xlu0 %v2749
  %v2751 = vpop.xlane.xlu0 %2750
  %v2752 = vsel %vm2745, %v2721, 0.0
  %2753 = vadd.xlane.f32.xlu0 %v2752
  %v2754 = vpop.xlane.xlu0 %2753
  %v2755 = vsel %vm2745, %v2724, 0.0
  %2756 = vadd.xlane.f32.xlu0 %v2755
  %v2757 = vpop.xlane.xlu0 %2756
  %v2758 = vsel %vm2745, %v2729, 0.0
  %2759 = vadd.xlane.f32.xlu0 %v2758
  %v2760 = vpop.xlane.xlu0 %2759
  %v2761 = vsel %vm2745, %v2732, 0.0
  %2762 = vadd.xlane.f32.xlu0 %v2761
  %v2763 = vpop.xlane.xlu0 %2762
  %v2764 = vsel %vm2745, %v2737, 0.0
  %2765 = vadd.xlane.f32.xlu0 %v2764
  %v2766 = vpop.xlane.xlu0 %2765
  %v2767 = vsel %vm2745, %v2740, 0.0
  %2768 = vadd.xlane.f32.xlu0 %v2767
  %v2769 = vpop.xlane.xlu0 %2768
  %v2770 = vrcp.pop 16.0
  %v2771 = vmul.f32 %v2748, %v2770
  %v2772 = vmul.f32 %v2751, %v2770
  %v2773 = vmul.f32 %v2754, %v2770
  %v2774 = vmul.f32 %v2757, %v2770
  %v2775 = vmul.f32 %v2760, %v2770
  %v2776 = vmul.f32 %v2763, %v2770
  %v2777 = vmul.f32 %v2766, %v2770
  %v2778 = vmul.f32 %v2769, %v2770
  %v2779 = vsub.f32 %v2713, %v2771
  %v2780 = vsub.f32 %v2716, %v2772
  %v2781 = vsub.f32 %v2721, %v2773
  %v2782 = vsub.f32 %v2724, %v2774
  %v2783 = vsub.f32 %v2729, %v2775
  %v2784 = vsub.f32 %v2732, %v2776
  %v2785 = vsub.f32 %v2737, %v2777
  %v2786 = vsub.f32 %v2740, %v2778
  %v2787 = vmul.f32 %v2779, %v2779
  %v2788 = vmul.f32 %v2780, %v2780
  %v2789 = vmul.f32 %v2781, %v2781
  %v2790 = vmul.f32 %v2782, %v2782
  %v2791 = vmul.f32 %v2783, %v2783
  %v2792 = vmul.f32 %v2784, %v2784
  %v2793 = vmul.f32 %v2785, %v2785
  %v2794 = vmul.f32 %v2786, %v2786
  %v2795 = vsel %vm2745, %v2787, 0.0
  %2796 = vadd.xlane.f32.xlu0 %v2795
  %v2797 = vpop.xlane.xlu0 %2796
  %v2798 = vsel %vm2745, %v2788, 0.0
  %2799 = vadd.xlane.f32.xlu0 %v2798
  %v2800 = vpop.xlane.xlu0 %2799
  %v2801 = vsel %vm2745, %v2789, 0.0
  %2802 = vadd.xlane.f32.xlu0 %v2801
  %v2803 = vpop.xlane.xlu0 %2802
  %v2804 = vsel %vm2745, %v2790, 0.0
  %2805 = vadd.xlane.f32.xlu0 %v2804
  %v2806 = vpop.xlane.xlu0 %2805
  %v2807 = vsel %vm2745, %v2791, 0.0
  %2808 = vadd.xlane.f32.xlu0 %v2807
  %v2809 = vpop.xlane.xlu0 %2808
  %v2810 = vsel %vm2745, %v2792, 0.0
  %2811 = vadd.xlane.f32.xlu0 %v2810
  %v2812 = vpop.xlane.xlu0 %2811
  %v2813 = vsel %vm2745, %v2793, 0.0
  %2814 = vadd.xlane.f32.xlu0 %v2813
  %v2815 = vpop.xlane.xlu0 %2814
  %v2816 = vsel %vm2745, %v2794, 0.0
  %2817 = vadd.xlane.f32.xlu0 %v2816
  %v2818 = vpop.xlane.xlu0 %2817
  %v2819 = vmul.f32 %v2797, %v2770
  %v2820 = vmul.f32 %v2800, %v2770
  %v2821 = vmul.f32 %v2803, %v2770
  %v2822 = vmul.f32 %v2806, %v2770
  %v2823 = vmul.f32 %v2809, %v2770
  %v2824 = vmul.f32 %v2812, %v2770
  %v2825 = vmul.f32 %v2815, %v2770
  %v2826 = vmul.f32 %v2818, %v2770
  %v2827 = vadd.f32 %v2819, 1e-05
  %v2828 = vadd.f32 %v2820, 1e-05
  %v2829 = vadd.f32 %v2821, 1e-05
  %v2830 = vadd.f32 %v2822, 1e-05
  %v2831 = vadd.f32 %v2823, 1e-05
  %v2832 = vadd.f32 %v2824, 1e-05
  %v2833 = vadd.f32 %v2825, 1e-05
  %v2834 = vadd.f32 %v2826, 1e-05
  %v2835 = vrsqrt.pop %v2827
  %v2836 = vrsqrt.pop %v2828
  %v2837 = vrsqrt.pop %v2829
  %v2838 = vrsqrt.pop %v2830
  %v2839 = vrsqrt.pop %v2831
  %v2840 = vrsqrt.pop %v2832
  %v2841 = vrsqrt.pop %v2833
  %v2842 = vrsqrt.pop %v2834
  %v2843 = vmul.f32 %v2779, %v2835
  %v2844 = vmul.f32 %v2780, %v2836
  %v2845 = vmul.f32 %v2781, %v2837
  %v2846 = vmul.f32 %v2782, %v2838
  %v2847 = vmul.f32 %v2783, %v2839
  %v2848 = vmul.f32 %v2784, %v2840
  %v2849 = vmul.f32 %v2785, %v2841
  %v2850 = vmul.f32 %v2786, %v2842
  %v2852 = vlaneseq
  %v2853 = vshrl.u32 %v2852, 7
  %v2854 = vsub.s32 0, %v2853
  %v2855 = vrot.slane %v2743, %v2854
  %v2857 = vmul.f32 %v2843, %v2855
  %v2858 = vmul.f32 %v2844, %v2855
  %v2859 = vmul.f32 %v2845, %v2855
  %v2860 = vmul.f32 %v2846, %v2855
  %v2861 = vmul.f32 %v2847, %v2855
  %v2862 = vmul.f32 %v2848, %v2855
  %v2863 = vmul.f32 %v2849, %v2855
  %v2864 = vmul.f32 %v2850, %v2855
  %v2866 = vlaneseq
  %v2867 = vshrl.u32 %v2866, 7
  %v2868 = vsub.s32 0, %v2867
  %v2869 = vrot.slane %v2744, %v2868
  %v2871 = vadd.f32 %v2857, %v2869
  %v2872 = vadd.f32 %v2858, %v2869
  %v2873 = vadd.f32 %v2859, %v2869
  %v2874 = vadd.f32 %v2860, %v2869
  %v2875 = vadd.f32 %v2861, %v2869
  %v2876 = vadd.f32 %v2862, %v2869
  %v2877 = vadd.f32 %v2863, %v2869
  %v2878 = vadd.f32 %v2864, %v2869
  %vm2879 = vcmp.gt.f32.partialorder %v2871, 0.0
  %vm2880 = vcmp.gt.f32.partialorder %v2872, 0.0
  %vm2881 = vcmp.gt.f32.partialorder %v2873, 0.0
  %vm2882 = vcmp.gt.f32.partialorder %v2874, 0.0
  %vm2883 = vcmp.gt.f32.partialorder %v2875, 0.0
  %vm2884 = vcmp.gt.f32.partialorder %v2876, 0.0
  %vm2885 = vcmp.gt.f32.partialorder %v2877, 0.0
  %vm2886 = vcmp.gt.f32.partialorder %v2878, 0.0
  %v2887 = vmul.f32 %v2871, 0.01
  %v2888 = vmul.f32 %v2872, 0.01
  %v2889 = vmul.f32 %v2873, 0.01
  %v2890 = vmul.f32 %v2874, 0.01
  %v2891 = vmul.f32 %v2875, 0.01
  %v2892 = vmul.f32 %v2876, 0.01
  %v2893 = vmul.f32 %v2877, 0.01
  %v2894 = vmul.f32 %v2878, 0.01
  %v2895 = vsel %vm2879, %v2871, %v2887
  %v2896 = vsel %vm2880, %v2872, %v2888
  %v2897 = vsel %vm2881, %v2873, %v2889
  %v2898 = vsel %vm2882, %v2874, %v2890
  %v2899 = vsel %vm2883, %v2875, %v2891
  %v2900 = vsel %vm2884, %v2876, %v2892
  %v2901 = vsel %vm2885, %v2877, %v2893
  %v2902 = vsel %vm2886, %v2878, %v2894
  %v2903 = vld [vmem:[%s18] sm:$0x1]
  %v2905 = vlaneseq
  %v2906 = vshrl.u32 %v2905, 7
  %v2907 = vsub.s32 0, %v2906
  %v2908 = vrot.slane %v2903, %v2907
  %v2910 = vmul.f32 %v2895, %v2908
  %v2911 = vmul.f32 %v2896, %v2908
  %v2912 = vmul.f32 %v2897, %v2908
  %v2913 = vmul.f32 %v2898, %v2908
  %v2914 = vmul.f32 %v2899, %v2908
  %v2915 = vmul.f32 %v2900, %v2908
  %v2916 = vmul.f32 %v2901, %v2908
  %v2917 = vmul.f32 %v2902, %v2908
  %v2918 = vsel %vm2745, %v2910, 0.0
  %2919 = vadd.xlane.f32.xlu0 %v2918
  %v2920 = vpop.xlane.xlu0 %2919
  %v2921 = vsel %vm2745, %v2911, 0.0
  %2922 = vadd.xlane.f32.xlu0 %v2921
  %v2923 = vpop.xlane.xlu0 %2922
  %v2924 = vsel %vm2745, %v2912, 0.0
  %2925 = vadd.xlane.f32.xlu0 %v2924
  %v2926 = vpop.xlane.xlu0 %2925
  %v2927 = vsel %vm2745, %v2913, 0.0
  %2928 = vadd.xlane.f32.xlu0 %v2927
  %v2929 = vpop.xlane.xlu0 %2928
  %v2930 = vsel %vm2745, %v2914, 0.0
  %2931 = vadd.xlane.f32.xlu0 %v2930
  %v2932 = vpop.xlane.xlu0 %2931
  %v2933 = vsel %vm2745, %v2915, 0.0
  %2934 = vadd.xlane.f32.xlu0 %v2933
  %v2935 = vpop.xlane.xlu0 %2934
  %v2936 = vsel %vm2745, %v2916, 0.0
  %2937 = vadd.xlane.f32.xlu0 %v2936
  %v2938 = vpop.xlane.xlu0 %2937
  %v2939 = vsel %vm2745, %v2917, 0.0
  %2940 = vadd.xlane.f32.xlu0 %v2939
  %v2941 = vpop.xlane.xlu0 %2940
  %v2942 = vld [vmem:[#allocation7] sm:$0x1]
  %v2944 = vlaneseq
  %v2945 = vshrl.u32 %v2944, 7
  %v2946 = vsub.s32 0, %v2945
  %v2947 = vrot.slane %v2942, %v2946
  %2948 = vset.pattern.permute.xlu0 0
  %2949 = vperm.xlu0 %2948, %v2947
  %v2950 = vpop.permute.xlu0 %2949
  %v2952 = vadd.f32 %v2920, %v2950
  %v2953 = vadd.f32 %v2923, %v2950
  %v2954 = vadd.f32 %v2926, %v2950
  %v2955 = vadd.f32 %v2929, %v2950
  %v2956 = vadd.f32 %v2932, %v2950
  %v2957 = vadd.f32 %v2935, %v2950
  %v2958 = vadd.f32 %v2938, %v2950
  %v2959 = vadd.f32 %v2941, %v2950
  %v2968 = vlaneseq
  %v2969 = vand.u32 %v2968, 127
  %v2970 = vlaneseq
  %v2971 = vshrl.u32 %v2970, 7
  %v2972 = vsub.s32 %v2969, %v2971
  %v2973 = vrot.slane %v2952, %v2972
  %v2974 = vlaneseq
  %v2975 = vshrl.u32 %v2974, 7
  %v2976 = vsub.s32 %v2969, %v2975
  %v2977 = vrot.slane %v2953, %v2976
  %v2978 = vlaneseq
  %v2979 = vshrl.u32 %v2978, 7
  %v2980 = vsub.s32 %v2969, %v2979
  %v2981 = vrot.slane %v2954, %v2980
  %v2982 = vlaneseq
  %v2983 = vshrl.u32 %v2982, 7
  %v2984 = vsub.s32 %v2969, %v2983
  %v2985 = vrot.slane %v2955, %v2984
  %v2986 = vlaneseq
  %v2987 = vshrl.u32 %v2986, 7
  %v2988 = vsub.s32 %v2969, %v2987
  %v2989 = vrot.slane %v2956, %v2988
  %v2990 = vlaneseq
  %v2991 = vshrl.u32 %v2990, 7
  %v2992 = vsub.s32 %v2969, %v2991
  %v2993 = vrot.slane %v2957, %v2992
  %v2994 = vlaneseq
  %v2995 = vshrl.u32 %v2994, 7
  %v2996 = vsub.s32 %v2969, %v2995
  %v2997 = vrot.slane %v2958, %v2996
  %v2998 = vlaneseq
  %v2999 = vshrl.u32 %v2998, 7
  %v3000 = vsub.s32 %v2969, %v2999
  %v3001 = vrot.slane %v2959, %v3000
  %vm3002 = vcmask 1041409
  %v3003 = vsel %vm3002, %v2977, %v2973
  %vm3004 = vcmask 1042434
  %v3005 = vsel %vm3004, %v2981, %v3003
  %vm3006 = vcmask 1043459
  %v3007 = vsel %vm3006, %v2985, %v3005
  %vm3008 = vcmask 1044484
  %v3009 = vsel %vm3008, %v2989, %v3007
  %vm3010 = vcmask 1045509
  %v3011 = vsel %vm3010, %v2993, %v3009
  %vm3012 = vcmask 1046534
  %v3013 = vsel %vm3012, %v2997, %v3011
  %vm3014 = vcmask 1047559
  %v3015 = vsel %vm3014, %v3001, %v3013
  %vm3017 = vcmask 64512
  %3018 = vst.msk [vmem:[%s20] sm:$0xff] %vm3017, %v3015
  // Predicated region
  $region90: #{gru_critic_forward.1} parent=0 // pred_check
    _
  $region91: #{gru_critic_forward.1} parent=0 // pred_check_branch
    %3020 = sbr.rel (0) target = $region93
  $region92: #{gru_critic_forward.1} parent=0 // pred_region
    _
  $region93: #{gru_critic_forward.1} parent=0 // pred_fallthru
    _
  // Predicated region
  $region94: #{gru_critic_forward.1} parent=0 // pred_check
    _
  $region95: #{gru_critic_forward.1} parent=0 // pred_check_branch
    %3022 = sbr.rel (0) target = $region97
  $region96: #{gru_critic_forward.1} parent=0 // pred_region
    _
  $region97: #{gru_critic_forward.1} parent=0 // pred_fallthru
    _
  // Predicated region
  $region98: #{gru_critic_forward.1} parent=0 // pred_check
    _
  $region99: #{gru_critic_forward.1} parent=0 // pred_check_branch
    %3024 = sbr.rel (0) target = $region101
  $region100: #{gru_critic_forward.1} parent=0 // pred_region
    _
  $region101: #{gru_critic_forward.1} parent=0 // pred_fallthru
    _
  // Predicated region
  $region102: #{gru_critic_forward.1} parent=0 // pred_check
    _
  $region103: #{gru_critic_forward.1} parent=0 // pred_check_branch
    %3026 = sbr.rel (0) target = $region105
  $region104: #{gru_critic_forward.1} parent=0 // pred_region
    _
  $region105: #{gru_critic_forward.1} parent=0 // pred_fallthru
    _

</llo_original>
